<compile_context>
chip_gen: v5e
topology: v5e:2x2
jax: 0.10.0
libtpu: 0.0.40
codegen_flags: <defaults>
</compile_context>

<pallas_src>
import jax
import jax.numpy as jnp
from jax import lax
from jax.experimental import pallas as pl
from jax.experimental.pallas import tpu as pltpu


# ----------------------------- helpers ----------------------------------------

def _sigmoid(x):
    return 1.0 / (1.0 + jnp.exp(-x))


def _largest_divisor(n, cap):
    for d in range(min(n, cap), 0, -1):
        if n % d == 0:
            return d
    return 1


def _fit(dim, cap):
    # Use `cap` as the tile if it evenly divides `dim`, otherwise fall back to the full dim.
    return dim if (dim <= cap or dim % cap != 0) else cap


# ----------------------------- Pallas kernels ----------------------------------

def conv1d_relu_kernel(x_ref, w_ref, b_ref, o_ref, acc_ref):
    """Conv1d + bias + ReLU as an accumulation over kernel taps (no im2col in HBM).

    x_ref:   (1, L, Cin)   per-batch activation, channels-last
    w_ref:   (KC, Cin, Cout) one K-chunk of the weight
    b_ref:   (1, Cout)
    o_ref:   (1, T, Cout)  resident across the K-chunk grid axis
    acc_ref: (T, Cout) f32 accumulator
    """
    kc = pl.program_id(1)
    KC, Cin, _ = w_ref.shape
    T = acc_ref.shape[0]

    @pl.when(kc == 0)
    def _():
        acc_ref[...] = jnp.zeros_like(acc_ref)

    acc = acc_ref[...]
    for kk in range(KC):                                   # static unroll over this chunk
        xs = x_ref[0, pl.ds(kc * KC + kk, T), :]           # shifted (T, Cin) window
        if Cin == 1:
            acc = acc + xs * w_ref[kk]                     # (T,1)*(1,Cout) broadcast
        else:
            acc = acc + jnp.dot(xs, w_ref[kk], preferred_element_type=jnp.float32)
    acc_ref[...] = acc

    @pl.when(kc == pl.num_programs(1) - 1)
    def _():
        o_ref[0] = jnp.maximum(acc_ref[...] + b_ref[...], 0.0)


def matmul_bias_kernel(a_ref, w_ref, b_ref, o_ref, acc_ref):
    """Tiled matmul + bias with an f32 accumulator over the K grid axis."""
    k = pl.program_id(2)

    @pl.when(k == 0)
    def _():
        acc_ref[...] = jnp.zeros_like(acc_ref)

    acc_ref[...] += jnp.dot(a_ref[...], w_ref[...], preferred_element_type=jnp.float32)

    @pl.when(k == pl.num_programs(2) - 1)
    def _():
        o_ref[...] = acc_ref[...] + b_ref[...]


def _bidir_lstm_steps(gx_ref, whh_ref, h_scr, c_scr, hseq_scr):
    """Shared bidirectional LSTM recurrence (both directions fused at the lane level).

    gx_ref:   (T, B, 8H) precomputed X@W_ih + bias, gate layout [i_f i_b|f_f f_b|g_f g_b|o_f o_b]
    whh_ref:  (2H, 8H)   block-diagonal recurrent weights in the same layout
    h_scr/c_scr: (B, 2H) state ([fwd | bwd])
    hseq_scr: (T, B, 2H) hseq_scr[t] = [h_fwd(step t) | h_bwd(step t)]
    Returns a (B, 2H) boolean lane mask that is True on the forward-half lanes.
    """
    T = gx_ref.shape[0]
    G = gx_ref.shape[2]
    B, H2 = h_scr.shape
    H = H2 // 2

    h_scr[...] = jnp.zeros_like(h_scr)
    c_scr[...] = jnp.zeros_like(c_scr)
    whh = whh_ref[...]                                     # loaded once, reused every step

    col = lax.broadcasted_iota(jnp.int32, (B, G), 1)
    fwd_cols = (col % H2) < H                              # fwd columns within each gate block

    def step(t, carry):
        rt = T - 1 - t
        # forward direction consumes time t, backward consumes time T-1-t
        gx = jnp.where(fwd_cols, gx_ref[t], gx_ref[rt])    # (B, 8H)
        gates = gx + jnp.dot(h_scr[...], whh, preferred_element_type=jnp.float32)
        # PyTorch gate order i, f, g, o; each slice is a 128-lane-aligned [fwd|bwd] pair.
        i = _sigmoid(gates[:, 0 * H2:1 * H2])
        f = _sigmoid(gates[:, 1 * H2:2 * H2])
        g = jnp.tanh(gates[:, 2 * H2:3 * H2])
        o = _sigmoid(gates[:, 3 * H2:4 * H2])
        c = f * c_scr[...] + i * g
        h = o * jnp.tanh(c)
        c_scr[...] = c
        h_scr[...] = h
        hseq_scr[t] = h                                    # lane-dense (B, 2H) VMEM store
        return carry

    lax.fori_loop(0, T, step, 0)
    return fwd_cols[:, 0:H2]                               # (B, 2H) mask: first H lanes True


def lstm_seq_kernel(gx_ref, whh_ref, o_ref, h_scr, c_scr, hseq_scr):
    """Bidirectional LSTM layer producing the full (T, B, 2H) sequence output."""
    T = gx_ref.shape[0]
    lane_fwd = _bidir_lstm_steps(gx_ref, whh_ref, h_scr, c_scr, hseq_scr)

    def combine(t, carry):
        rt = T - 1 - t
        # output[t] = [h_fwd(at position t) | h_bwd(at position t)]; the bwd value for
        # position t was computed at recurrence step rt.
        o_ref[t] = jnp.where(lane_fwd, hseq_scr[t], hseq_scr[rt])
        return carry

    lax.fori_loop(0, T, combine, 0)


def lstm_fc_kernel(gx_ref, whh_ref, fcw_ref, fcb_ref, o_ref, h_scr, c_scr, hseq_scr):
    """Last bidirectional LSTM layer with the FC + sigmoid head fused into the epilogue."""
    T = gx_ref.shape[0]
    lane_fwd = _bidir_lstm_steps(gx_ref, whh_ref, h_scr, c_scr, hseq_scr)
    # output[:, -1, :] == [h_fwd(last step) | h_bwd(first step)]
    last = jnp.where(lane_fwd, hseq_scr[T - 1], hseq_scr[0])            # (B, 2H)
    logits = jnp.dot(last, fcw_ref[...], preferred_element_type=jnp.float32) + fcb_ref[...]
    o_ref[...] = _sigmoid(logits)


# ----------------------------- wrappers ----------------------------------------

def conv1d_relu(x_blc, w, b, *, kc_cap=32, vmem_limit=48 * 1024 * 1024):
    """x_blc: (B, L, Cin) channels-last; w: (Cout, Cin, K); b: (Cout,) -> (B, T, Cout)."""
    B, L, Cin = x_blc.shape
    Cout, _, K = w.shape
    T = L - K + 1
    KC = _largest_divisor(K, kc_cap)
    nkc = K // KC
    w_kcio = jnp.transpose(w, (2, 1, 0))                   # (K, Cin, Cout)
    bias = b.reshape(1, Cout)
    return pl.pallas_call(
        conv1d_relu_kernel,
        out_shape=jax.ShapeDtypeStruct((B, T, Cout), jnp.float32),
        grid=(B, nkc),
        in_specs=[
            pl.BlockSpec((1, L, Cin), lambda b_, k_: (b_, 0, 0)),
            pl.BlockSpec((KC, Cin, Cout), lambda b_, k_: (k_, 0, 0)),
            pl.BlockSpec((1, Cout), lambda b_, k_: (0, 0)),
        ],
        out_specs=pl.BlockSpec((1, T, Cout), lambda b_, k_: (b_, 0, 0)),
        scratch_shapes=[pltpu.VMEM((T, Cout), jnp.float32)],
        compiler_params=pltpu.CompilerParams(
            dimension_semantics=("parallel", "arbitrary"),
            vmem_limit_bytes=vmem_limit),
    )(x_blc, w_kcio, bias)


def matmul_bias(a, w, b, *, tm=256, tn=512, tk=512, vmem_limit=48 * 1024 * 1024):
    """a: (M, K), w: (K, N), b: (1, N) -> (M, N) f32, tiled over all three axes."""
    M, K = a.shape
    N = w.shape[1]
    tm, tn, tk = _fit(M, tm), _fit(N, tn), _fit(K, tk)
    grid = (M // tm, N // tn, K // tk)
    return pl.pallas_call(
        matmul_bias_kernel,
        out_shape=jax.ShapeDtypeStruct((M, N), jnp.float32),
        grid=grid,
        in_specs=[
            pl.BlockSpec((tm, tk), lambda i, j, k: (i, k)),
            pl.BlockSpec((tk, tn), lambda i, j, k: (k, j)),
            pl.BlockSpec((1, tn), lambda i, j, k: (0, j)),
        ],
        out_specs=pl.BlockSpec((tm, tn), lambda i, j, k: (i, j)),
        scratch_shapes=[pltpu.VMEM((tm, tn), jnp.float32)],
        compiler_params=pltpu.CompilerParams(
            dimension_semantics=("parallel", "parallel", "arbitrary"),
            vmem_limit_bytes=vmem_limit),
    )(a, w, b)


def bidir_lstm_layer(gx, w_hh_cat):
    """gx: (T, B, 8H); w_hh_cat: (2H, 8H) -> (T, B, 2H)."""
    T, B, G = gx.shape
    H2 = G // 4
    return pl.pallas_call(
        lstm_seq_kernel,
        out_shape=jax.ShapeDtypeStruct((T, B, H2), jnp.float32),
        scratch_shapes=[pltpu.VMEM((B, H2), jnp.float32),
                        pltpu.VMEM((B, H2), jnp.float32),
                        pltpu.VMEM((T, B, H2), jnp.float32)],
    )(gx, w_hh_cat)


def bidir_lstm_fc_layer(gx, w_hh_cat, fc_w_t, fc_b):
    """Last layer: gx (T, B, 8H), fc_w_t (2H, n_cat), fc_b (1, n_cat) -> (B, n_cat)."""
    T, B, G = gx.shape
    H2 = G // 4
    n_cat = fc_w_t.shape[1]
    return pl.pallas_call(
        lstm_fc_kernel,
        out_shape=jax.ShapeDtypeStruct((B, n_cat), jnp.float32),
        scratch_shapes=[pltpu.VMEM((B, H2), jnp.float32),
                        pltpu.VMEM((B, H2), jnp.float32),
                        pltpu.VMEM((T, B, H2), jnp.float32)],
    )(gx, w_hh_cat, fc_w_t, fc_b)


# ----------------------------- parameters --------------------------------------

def _build_bidir_cat(fwd, bwd, H):
    """Build lane-interleaved bidirectional LSTM weights.

    fwd/bwd: (w_ih (4H, Din), w_hh (4H, H), b (4H,)) with PyTorch gate order i,f,g,o and
    b = b_ih + b_hh.  Column layout of the result: per gate a 2H block [fwd H | bwd H],
    so with H=64 every gate slice is 128-lane aligned.
    """
    w_ih_f, w_hh_f, b_f = fwd
    w_ih_b, w_hh_b, b_b = bwd
    Din = w_ih_f.shape[1]

    wif = w_ih_f.T.reshape(Din, 4, 1, H)
    wib = w_ih_b.T.reshape(Din, 4, 1, H)
    w_ih_cat = jnp.concatenate([wif, wib], axis=2).reshape(Din, 8 * H)

    whf = w_hh_f.T.reshape(H, 4, 1, H)
    whb = w_hh_b.T.reshape(H, 4, 1, H)
    z = jnp.zeros_like(whf)
    top = jnp.concatenate([whf, z], axis=2).reshape(H, 8 * H)    # rows 0:H  = fwd hidden
    bot = jnp.concatenate([z, whb], axis=2).reshape(H, 8 * H)    # rows H:2H = bwd hidden
    w_hh_cat = jnp.concatenate([top, bot], axis=0)               # (2H, 8H) block-diagonal

    b_cat = jnp.concatenate([b_f.reshape(4, 1, H), b_b.reshape(4, 1, H)],
                            axis=1).reshape(1, 8 * H)
    return w_ih_cat, w_hh_cat, b_cat


def init_params(key, n_joints, kernel_size, n_hidden, n_categories, n_layer):
    assert n_joints == 1  # module's conv1 takes 1 input channel
    keys = iter(jax.random.split(key, 128))

    def u(shape, fan_in):
        scale = 1.0 / jnp.sqrt(jnp.float32(fan_in))
        return jax.random.uniform(next(keys), shape, jnp.float32, -scale, scale)

    params = {
        "conv1_w": u((32, 1, kernel_size), 1 * kernel_size),
        "conv1_b": u((32,), 1 * kernel_size),
        "conv2_w": u((64, 32, kernel_size), 32 * kernel_size),
        "conv2_b": u((64,), 32 * kernel_size),
    }
    fc_w = u((n_categories, 2 * n_hidden), 2 * n_hidden)
    fc_b = u((n_categories,), 2 * n_hidden)
    params["fc_w_t"] = fc_w.T                               # (2H, n_cat)
    params["fc_b"] = fc_b.reshape(1, n_categories)

    H = n_hidden
    lstm = []
    for layer in range(n_layer):
        d_in = 64 if layer == 0 else 2 * H
        dirs = []
        for _ in range(2):                                  # fwd, bwd
            w_ih = u((4 * H, d_in), H)
            w_hh = u((4 * H, H), H)
            b_ih = u((4 * H,), H)
            b_hh = u((4 * H,), H)
            dirs.append((w_ih, w_hh, b_ih + b_hh))
        lstm.append(_build_bidir_cat(dirs[0], dirs[1], H))
    params["lstm"] = lstm
    return params


# ----------------------------- model -------------------------------------------

def crnn_forward(x, params):
    """x: (B, L, n_joints=1) -> (B, n_categories). Matches PyTorch CRNN.forward."""
    # Convs work channels-last; (B, L, 1) is already the channels-last view of permute(0,2,1).
    h = conv1d_relu(x, params["conv1_w"], params["conv1_b"])          # (B, T1, 32)
    h = conv1d_relu(h, params["conv2_w"], params["conv2_b"])          # (B, T2, 64)
    seq = jnp.transpose(h, (1, 0, 2))                                 # (T2, B, 64) time-major

    T, B, _ = seq.shape
    n_layers = len(params["lstm"])
    out = None
    for li, (w_ih_cat, w_hh_cat, b_cat) in enumerate(params["lstm"]):
        d_in = w_ih_cat.shape[0]
        g8 = w_ih_cat.shape[1]
        # Hoisted input projection for all timesteps + both directions: one big MXU matmul.
        gx = matmul_bias(seq.reshape(T * B, d_in), w_ih_cat, b_cat)   # (T*B, 8H)
        gx = gx.reshape(T, B, g8)
        if li + 1 < n_layers:
            seq = bidir_lstm_layer(gx, w_hh_cat)                      # (T, B, 2H)
        else:
            out = bidir_lstm_fc_layer(gx, w_hh_cat,
                                      params["fc_w_t"], params["fc_b"])
    return out


# ----------------------------- main ---------------------------------------------

if __name__ == "__main__":
    n_categories = 1
    n_hidden = 64
    n_layer = 3
    n_joints = 1
    kernel_size = 8      # module hard-codes 1440; reduced so a small sequence works

    B, L = 2, 32         # input: (batch, seq_len, n_joints)
    key = jax.random.PRNGKey(0)
    k_param, k_data = jax.random.split(key)

    params = init_params(k_param, n_joints, kernel_size, n_hidden, n_categories, n_layer)
    x = jax.random.normal(k_data, (B, L, n_joints), dtype=jnp.float32)

    out = jax.jit(crnn_forward)(x, params)
    jax.block_until_ready(out)
    assert out.shape == (B, n_categories)
    assert bool(jnp.all(jnp.isfinite(out)))
    print("KERNEL_OK")
</pallas_src>

<mosaic_0001>
module attributes {stable_mosaic.version = 11 : i64} {
  func.func @conv1d_relu_kernel(%arg0: i32, %arg1: i32, %arg2: memref<1x32x1xf32, #tpu.memory_space<vmem>>, %arg3: memref<8x1x32xf32, #tpu.memory_space<vmem>>, %arg4: memref<1x32xf32, #tpu.memory_space<vmem>>, %arg5: memref<1x25x32xf32, #tpu.memory_space<vmem>>, %arg6: memref<25x32xf32, #tpu.memory_space<vmem>>) attributes {dimension_semantics = [#tpu.dimension_semantics<parallel>, #tpu.dimension_semantics<arbitrary>], iteration_bounds = array<i64: 2, 1>, scalar_prefetch = 0 : i64, scratch_operands = 1 : i64, tpu.core_type = #tpu.core_type<tc>, window_params = [{transform_indices = @transform_0, window_bounds = array<i64: 1, 32, 1>}, {transform_indices = @transform_1, window_bounds = array<i64: 8, 1, 32>}, {pipeline_mode = #tpu.pipeline_mode<synchronous>, transform_indices = @transform_2, window_bounds = array<i64: 1, 32>}, {transform_indices = @transform_3, window_bounds = array<i64: 1, 25, 32>}]} {
    %c0_i32 = arith.constant 0 : i32
    %0 = arith.cmpi eq, %arg1, %c0_i32 : i32
    %1 = arith.extui %0 : i1 to i32
    %c0_i32_0 = arith.constant 0 : i32
    %2 = arith.cmpi ne, %1, %c0_i32_0 : i32
    scf.if %2 {
      %cst = arith.constant 0.000000e+00 : f32
      %96 = vector.broadcast %cst : f32 to vector<25x32xf32>
      %c0_47 = arith.constant 0 : index
      %c0_48 = arith.constant 0 : index
      %97 = vector.load %arg6[%c0_47, %c0_48] : memref<25x32xf32, #tpu.memory_space<vmem>>, vector<25x32xf32>
      tpu.vector_store %arg6[%c0_47, %c0_48], %96 {strides = array<i32>} : memref<25x32xf32, #tpu.memory_space<vmem>>, vector<25x32xf32>,
    } else {
    }
    %c0 = arith.constant 0 : index
    %c0_1 = arith.constant 0 : index
    %3 = vector.load %arg6[%c0, %c0_1] : memref<25x32xf32, #tpu.memory_space<vmem>>, vector<25x32xf32>
    %c8_i32 = arith.constant 8 : i32
    %4 = arith.muli %arg1, %c8_i32 : i32
    %c0_i32_2 = arith.constant 0 : i32
    %5 = arith.addi %4, %c0_i32_2 : i32
    %c0_3 = arith.constant 0 : index
    %6 = arith.index_cast %5 : i32 to index
    %c0_4 = arith.constant 0 : index
    %7 = vector.load %arg2[%c0_3, %6, %c0_4] : memref<1x32x1xf32, #tpu.memory_space<vmem>>, vector<1x25x1xf32>
    %8 = vector.shape_cast %7 : vector<1x25x1xf32> to vector<25x1xf32>
    %c0_5 = arith.constant 0 : index
    %c0_6 = arith.constant 0 : index
    %c0_7 = arith.constant 0 : index
    %9 = vector.load %arg3[%c0_5, %c0_6, %c0_7] : memref<8x1x32xf32, #tpu.memory_space<vmem>>, vector<1x1x32xf32>
    %10 = vector.shape_cast %9 : vector<1x1x32xf32> to vector<1x32xf32>
    %11 = vector.broadcast %8 : vector<25x1xf32> to vector<25x32xf32>
    %12 = vector.broadcast %10 : vector<1x32xf32> to vector<25x32xf32>
    %13 = arith.mulf %11, %12 : vector<25x32xf32>
    %14 = arith.addf %3, %13 : vector<25x32xf32>
    %c8_i32_8 = arith.constant 8 : i32
    %15 = arith.muli %arg1, %c8_i32_8 : i32
    %c1_i32 = arith.constant 1 : i32
    %16 = arith.addi %15, %c1_i32 : i32
    %c0_9 = arith.constant 0 : index
    %17 = arith.index_cast %16 : i32 to index
    %c0_10 = arith.constant 0 : index
    %18 = vector.load %arg2[%c0_9, %17, %c0_10] : memref<1x32x1xf32, #tpu.memory_space<vmem>>, vector<1x25x1xf32>
    %19 = vector.shape_cast %18 : vector<1x25x1xf32> to vector<25x1xf32>
    %c1 = arith.constant 1 : index
    %c0_11 = arith.constant 0 : index
    %c0_12 = arith.constant 0 : index
    %20 = vector.load %arg3[%c1, %c0_11, %c0_12] : memref<8x1x32xf32, #tpu.memory_space<vmem>>, vector<1x1x32xf32>
    %21 = vector.shape_cast %20 : vector<1x1x32xf32> to vector<1x32xf32>
    %22 = vector.broadcast %19 : vector<25x1xf32> to vector<25x32xf32>
    %23 = vector.broadcast %21 : vector<1x32xf32> to vector<25x32xf32>
    %24 = arith.mulf %22, %23 : vector<25x32xf32>
    %25 = arith.addf %14, %24 : vector<25x32xf32>
    %c8_i32_13 = arith.constant 8 : i32
    %26 = arith.muli %arg1, %c8_i32_13 : i32
    %c2_i32 = arith.constant 2 : i32
    %27 = arith.addi %26, %c2_i32 : i32
    %c0_14 = arith.constant 0 : index
    %28 = arith.index_cast %27 : i32 to index
    %c0_15 = arith.constant 0 : index
    %29 = vector.load %arg2[%c0_14, %28, %c0_15] : memref<1x32x1xf32, #tpu.memory_space<vmem>>, vector<1x25x1xf32>
    %30 = vector.shape_cast %29 : vector<1x25x1xf32> to vector<25x1xf32>
    %c2 = arith.constant 2 : index
    %c0_16 = arith.constant 0 : index
    %c0_17 = arith.constant 0 : index
    %31 = vector.load %arg3[%c2, %c0_16, %c0_17] : memref<8x1x32xf32, #tpu.memory_space<vmem>>, vector<1x1x32xf32>
    %32 = vector.shape_cast %31 : vector<1x1x32xf32> to vector<1x32xf32>
    %33 = vector.broadcast %30 : vector<25x1xf32> to vector<25x32xf32>
    %34 = vector.broadcast %32 : vector<1x32xf32> to vector<25x32xf32>
    %35 = arith.mulf %33, %34 : vector<25x32xf32>
    %36 = arith.addf %25, %35 : vector<25x32xf32>
    %c8_i32_18 = arith.constant 8 : i32
    %37 = arith.muli %arg1, %c8_i32_18 : i32
    %c3_i32 = arith.constant 3 : i32
    %38 = arith.addi %37, %c3_i32 : i32
    %c0_19 = arith.constant 0 : index
    %39 = arith.index_cast %38 : i32 to index
    %c0_20 = arith.constant 0 : index
    %40 = vector.load %arg2[%c0_19, %39, %c0_20] : memref<1x32x1xf32, #tpu.memory_space<vmem>>, vector<1x25x1xf32>
    %41 = vector.shape_cast %40 : vector<1x25x1xf32> to vector<25x1xf32>
    %c3 = arith.constant 3 : index
    %c0_21 = arith.constant 0 : index
    %c0_22 = arith.constant 0 : index
    %42 = vector.load %arg3[%c3, %c0_21, %c0_22] : memref<8x1x32xf32, #tpu.memory_space<vmem>>, vector<1x1x32xf32>
    %43 = vector.shape_cast %42 : vector<1x1x32xf32> to vector<1x32xf32>
    %44 = vector.broadcast %41 : vector<25x1xf32> to vector<25x32xf32>
    %45 = vector.broadcast %43 : vector<1x32xf32> to vector<25x32xf32>
    %46 = arith.mulf %44, %45 : vector<25x32xf32>
    %47 = arith.addf %36, %46 : vector<25x32xf32>
    %c8_i32_23 = arith.constant 8 : i32
    %48 = arith.muli %arg1, %c8_i32_23 : i32
    %c4_i32 = arith.constant 4 : i32
    %49 = arith.addi %48, %c4_i32 : i32
    %c0_24 = arith.constant 0 : index
    %50 = arith.index_cast %49 : i32 to index
    %c0_25 = arith.constant 0 : index
    %51 = vector.load %arg2[%c0_24, %50, %c0_25] : memref<1x32x1xf32, #tpu.memory_space<vmem>>, vector<1x25x1xf32>
    %52 = vector.shape_cast %51 : vector<1x25x1xf32> to vector<25x1xf32>
    %c4 = arith.constant 4 : index
    %c0_26 = arith.constant 0 : index
    %c0_27 = arith.constant 0 : index
    %53 = vector.load %arg3[%c4, %c0_26, %c0_27] : memref<8x1x32xf32, #tpu.memory_space<vmem>>, vector<1x1x32xf32>
    %54 = vector.shape_cast %53 : vector<1x1x32xf32> to vector<1x32xf32>
    %55 = vector.broadcast %52 : vector<25x1xf32> to vector<25x32xf32>
    %56 = vector.broadcast %54 : vector<1x32xf32> to vector<25x32xf32>
    %57 = arith.mulf %55, %56 : vector<25x32xf32>
    %58 = arith.addf %47, %57 : vector<25x32xf32>
    %c8_i32_28 = arith.constant 8 : i32
    %59 = arith.muli %arg1, %c8_i32_28 : i32
    %c5_i32 = arith.constant 5 : i32
    %60 = arith.addi %59, %c5_i32 : i32
    %c0_29 = arith.constant 0 : index
    %61 = arith.index_cast %60 : i32 to index
    %c0_30 = arith.constant 0 : index
    %62 = vector.load %arg2[%c0_29, %61, %c0_30] : memref<1x32x1xf32, #tpu.memory_space<vmem>>, vector<1x25x1xf32>
    %63 = vector.shape_cast %62 : vector<1x25x1xf32> to vector<25x1xf32>
    %c5 = arith.constant 5 : index
    %c0_31 = arith.constant 0 : index
    %c0_32 = arith.constant 0 : index
    %64 = vector.load %arg3[%c5, %c0_31, %c0_32] : memref<8x1x32xf32, #tpu.memory_space<vmem>>, vector<1x1x32xf32>
    %65 = vector.shape_cast %64 : vector<1x1x32xf32> to vector<1x32xf32>
    %66 = vector.broadcast %63 : vector<25x1xf32> to vector<25x32xf32>
    %67 = vector.broadcast %65 : vector<1x32xf32> to vector<25x32xf32>
    %68 = arith.mulf %66, %67 : vector<25x32xf32>
    %69 = arith.addf %58, %68 : vector<25x32xf32>
    %c8_i32_33 = arith.constant 8 : i32
    %70 = arith.muli %arg1, %c8_i32_33 : i32
    %c6_i32 = arith.constant 6 : i32
    %71 = arith.addi %70, %c6_i32 : i32
    %c0_34 = arith.constant 0 : index
    %72 = arith.index_cast %71 : i32 to index
    %c0_35 = arith.constant 0 : index
    %73 = vector.load %arg2[%c0_34, %72, %c0_35] : memref<1x32x1xf32, #tpu.memory_space<vmem>>, vector<1x25x1xf32>
    %74 = vector.shape_cast %73 : vector<1x25x1xf32> to vector<25x1xf32>
    %c6 = arith.constant 6 : index
    %c0_36 = arith.constant 0 : index
    %c0_37 = arith.constant 0 : index
    %75 = vector.load %arg3[%c6, %c0_36, %c0_37] : memref<8x1x32xf32, #tpu.memory_space<vmem>>, vector<1x1x32xf32>
    %76 = vector.shape_cast %75 : vector<1x1x32xf32> to vector<1x32xf32>
    %77 = vector.broadcast %74 : vector<25x1xf32> to vector<25x32xf32>
    %78 = vector.broadcast %76 : vector<1x32xf32> to vector<25x32xf32>
    %79 = arith.mulf %77, %78 : vector<25x32xf32>
    %80 = arith.addf %69, %79 : vector<25x32xf32>
    %c8_i32_38 = arith.constant 8 : i32
    %81 = arith.muli %arg1, %c8_i32_38 : i32
    %c7_i32 = arith.constant 7 : i32
    %82 = arith.addi %81, %c7_i32 : i32
    %c0_39 = arith.constant 0 : index
    %83 = arith.index_cast %82 : i32 to index
    %c0_40 = arith.constant 0 : index
    %84 = vector.load %arg2[%c0_39, %83, %c0_40] : memref<1x32x1xf32, #tpu.memory_space<vmem>>, vector<1x25x1xf32>
    %85 = vector.shape_cast %84 : vector<1x25x1xf32> to vector<25x1xf32>
    %c7 = arith.constant 7 : index
    %c0_41 = arith.constant 0 : index
    %c0_42 = arith.constant 0 : index
    %86 = vector.load %arg3[%c7, %c0_41, %c0_42] : memref<8x1x32xf32, #tpu.memory_space<vmem>>, vector<1x1x32xf32>
    %87 = vector.shape_cast %86 : vector<1x1x32xf32> to vector<1x32xf32>
    %88 = vector.broadcast %85 : vector<25x1xf32> to vector<25x32xf32>
    %89 = vector.broadcast %87 : vector<1x32xf32> to vector<25x32xf32>
    %90 = arith.mulf %88, %89 : vector<25x32xf32>
    %91 = arith.addf %80, %90 : vector<25x32xf32>
    %c0_43 = arith.constant 0 : index
    %c0_44 = arith.constant 0 : index
    %92 = vector.load %arg6[%c0_43, %c0_44] : memref<25x32xf32, #tpu.memory_space<vmem>>, vector<25x32xf32>
    tpu.vector_store %arg6[%c0_43, %c0_44], %91 {strides = array<i32>} : memref<25x32xf32, #tpu.memory_space<vmem>>, vector<25x32xf32>,
    %c0_i32_45 = arith.constant 0 : i32
    %93 = arith.cmpi eq, %arg1, %c0_i32_45 : i32
    %94 = arith.extui %93 : i1 to i32
    %c0_i32_46 = arith.constant 0 : i32
    %95 = arith.cmpi ne, %94, %c0_i32_46 : i32
    scf.if %95 {
      %c0_47 = arith.constant 0 : index
      %c0_48 = arith.constant 0 : index
      %96 = vector.load %arg6[%c0_47, %c0_48] : memref<25x32xf32, #tpu.memory_space<vmem>>, vector<25x32xf32>
      %c0_49 = arith.constant 0 : index
      %c0_50 = arith.constant 0 : index
      %97 = vector.load %arg4[%c0_49, %c0_50] : memref<1x32xf32, #tpu.memory_space<vmem>>, vector<1x32xf32>
      %98 = vector.broadcast %97 : vector<1x32xf32> to vector<25x32xf32>
      %99 = arith.addf %96, %98 : vector<25x32xf32>
      %cst = arith.constant 0.000000e+00 : f32
      %100 = vector.broadcast %cst : f32 to vector<25x32xf32>
      %101 = arith.maximumf %99, %100 : vector<25x32xf32>
      %c0_51 = arith.constant 0 : index
      %c0_52 = arith.constant 0 : index
      %c0_53 = arith.constant 0 : index
      %102 = vector.load %arg5[%c0_51, %c0_52, %c0_53] : memref<1x25x32xf32, #tpu.memory_space<vmem>>, vector<1x25x32xf32>
      %103 = vector.shape_cast %102 : vector<1x25x32xf32> to vector<25x32xf32>
      %104 = vector.shape_cast %101 : vector<25x32xf32> to vector<1x25x32xf32>
      tpu.vector_store %arg5[%c0_51, %c0_52, %c0_53], %104 {strides = array<i32>} : memref<1x25x32xf32, #tpu.memory_space<vmem>>, vector<1x25x32xf32>,
    } else {
    }
    return
  }
  func.func @transform_0(%arg0: i32, %arg1: i32) -> (i32, i32, i32) {
    %c0_i32 = arith.constant 0 : i32
    %c0_i32_0 = arith.constant 0 : i32
    %c0_i32_1 = arith.constant 0 : i32
    return %arg0, %c0_i32, %c0_i32_0 : i32, i32, i32
  }
  func.func @transform_1(%arg0: i32, %arg1: i32) -> (i32, i32, i32) {
    %c0_i32 = arith.constant 0 : i32
    %c0_i32_0 = arith.constant 0 : i32
    %c0_i32_1 = arith.constant 0 : i32
    return %arg1, %c0_i32, %c0_i32_0 : i32, i32, i32
  }
  func.func @transform_2(%arg0: i32, %arg1: i32) -> (i32, i32) {
    %c0_i32 = arith.constant 0 : i32
    %c0_i32_0 = arith.constant 0 : i32
    %c0_i32_1 = arith.constant 0 : i32
    return %c0_i32, %c0_i32_0 : i32, i32
  }
  func.func @transform_3(%arg0: i32, %arg1: i32) -> (i32, i32, i32) {
    %c0_i32 = arith.constant 0 : i32
    %c0_i32_0 = arith.constant 0 : i32
    %c0_i32_1 = arith.constant 0 : i32
    return %arg0, %c0_i32, %c0_i32_0 : i32, i32, i32
  }
}

module attributes {stable_mosaic.version = 11 : i64} {
  func.func @conv1d_relu_kernel(%arg0: i32, %arg1: i32, %arg2: memref<1x25x32xf32, #tpu.memory_space<vmem>>, %arg3: memref<8x32x64xf32, #tpu.memory_space<vmem>>, %arg4: memref<1x64xf32, #tpu.memory_space<vmem>>, %arg5: memref<1x18x64xf32, #tpu.memory_space<vmem>>, %arg6: memref<18x64xf32, #tpu.memory_space<vmem>>) attributes {dimension_semantics = [#tpu.dimension_semantics<parallel>, #tpu.dimension_semantics<arbitrary>], iteration_bounds = array<i64: 2, 1>, scalar_prefetch = 0 : i64, scratch_operands = 1 : i64, tpu.core_type = #tpu.core_type<tc>, window_params = [{transform_indices = @transform_0, window_bounds = array<i64: 1, 25, 32>}, {transform_indices = @transform_1, window_bounds = array<i64: 8, 32, 64>}, {pipeline_mode = #tpu.pipeline_mode<synchronous>, transform_indices = @transform_2, window_bounds = array<i64: 1, 64>}, {transform_indices = @transform_3, window_bounds = array<i64: 1, 18, 64>}]} {
    %c0_i32 = arith.constant 0 : i32
    %0 = arith.cmpi eq, %arg1, %c0_i32 : i32
    %1 = arith.extui %0 : i1 to i32
    %c0_i32_0 = arith.constant 0 : i32
    %2 = arith.cmpi ne, %1, %c0_i32_0 : i32
    scf.if %2 {
      %cst_54 = arith.constant 0.000000e+00 : f32
      %80 = vector.broadcast %cst_54 : f32 to vector<18x64xf32>
      %c0_55 = arith.constant 0 : index
      %c0_56 = arith.constant 0 : index
      %81 = vector.load %arg6[%c0_55, %c0_56] : memref<18x64xf32, #tpu.memory_space<vmem>>, vector<18x64xf32>
      tpu.vector_store %arg6[%c0_55, %c0_56], %80 {strides = array<i32>} : memref<18x64xf32, #tpu.memory_space<vmem>>, vector<18x64xf32>,
    } else {
    }
    %c0 = arith.constant 0 : index
    %c0_1 = arith.constant 0 : index
    %3 = vector.load %arg6[%c0, %c0_1] : memref<18x64xf32, #tpu.memory_space<vmem>>, vector<18x64xf32>
    %c8_i32 = arith.constant 8 : i32
    %4 = arith.muli %arg1, %c8_i32 : i32
    %c0_i32_2 = arith.constant 0 : i32
    %5 = arith.addi %4, %c0_i32_2 : i32
    %c0_3 = arith.constant 0 : index
    %6 = arith.index_cast %5 : i32 to index
    %c0_4 = arith.constant 0 : index
    %7 = vector.load %arg2[%c0_3, %6, %c0_4] : memref<1x25x32xf32, #tpu.memory_space<vmem>>, vector<1x18x32xf32>
    %8 = vector.shape_cast %7 : vector<1x18x32xf32> to vector<18x32xf32>
    %c0_5 = arith.constant 0 : index
    %c0_6 = arith.constant 0 : index
    %c0_7 = arith.constant 0 : index
    %9 = vector.load %arg3[%c0_5, %c0_6, %c0_7] : memref<8x32x64xf32, #tpu.memory_space<vmem>>, vector<1x32x64xf32>
    %10 = vector.shape_cast %9 : vector<1x32x64xf32> to vector<32x64xf32>
    %cst = arith.constant dense<0.000000e+00> : vector<18x64xf32>
    %11 = tpu.matmul %8, %10, %cst {dimension_numbers = #tpu.dot_dimension_numbers<[1], [0], [0], [1], [0, 0, 1, 1], [], []>} : vector<18x32xf32>, vector<32x64xf32>, vector<18x64xf32> -> vector<18x64xf32>
    %12 = arith.addf %3, %11 : vector<18x64xf32>
    %c8_i32_8 = arith.constant 8 : i32
    %13 = arith.muli %arg1, %c8_i32_8 : i32
    %c1_i32 = arith.constant 1 : i32
    %14 = arith.addi %13, %c1_i32 : i32
    %c0_9 = arith.constant 0 : index
    %15 = arith.index_cast %14 : i32 to index
    %c0_10 = arith.constant 0 : index
    %16 = vector.load %arg2[%c0_9, %15, %c0_10] : memref<1x25x32xf32, #tpu.memory_space<vmem>>, vector<1x18x32xf32>
    %17 = vector.shape_cast %16 : vector<1x18x32xf32> to vector<18x32xf32>
    %c1 = arith.constant 1 : index
    %c0_11 = arith.constant 0 : index
    %c0_12 = arith.constant 0 : index
    %18 = vector.load %arg3[%c1, %c0_11, %c0_12] : memref<8x32x64xf32, #tpu.memory_space<vmem>>, vector<1x32x64xf32>
    %19 = vector.shape_cast %18 : vector<1x32x64xf32> to vector<32x64xf32>
    %cst_13 = arith.constant dense<0.000000e+00> : vector<18x64xf32>
    %20 = tpu.matmul %17, %19, %cst_13 {dimension_numbers = #tpu.dot_dimension_numbers<[1], [0], [0], [1], [0, 0, 1, 1], [], []>} : vector<18x32xf32>, vector<32x64xf32>, vector<18x64xf32> -> vector<18x64xf32>
    %21 = arith.addf %12, %20 : vector<18x64xf32>
    %c8_i32_14 = arith.constant 8 : i32
    %22 = arith.muli %arg1, %c8_i32_14 : i32
    %c2_i32 = arith.constant 2 : i32
    %23 = arith.addi %22, %c2_i32 : i32
    %c0_15 = arith.constant 0 : index
    %24 = arith.index_cast %23 : i32 to index
    %c0_16 = arith.constant 0 : index
    %25 = vector.load %arg2[%c0_15, %24, %c0_16] : memref<1x25x32xf32, #tpu.memory_space<vmem>>, vector<1x18x32xf32>
    %26 = vector.shape_cast %25 : vector<1x18x32xf32> to vector<18x32xf32>
    %c2 = arith.constant 2 : index
    %c0_17 = arith.constant 0 : index
    %c0_18 = arith.constant 0 : index
    %27 = vector.load %arg3[%c2, %c0_17, %c0_18] : memref<8x32x64xf32, #tpu.memory_space<vmem>>, vector<1x32x64xf32>
    %28 = vector.shape_cast %27 : vector<1x32x64xf32> to vector<32x64xf32>
    %cst_19 = arith.constant dense<0.000000e+00> : vector<18x64xf32>
    %29 = tpu.matmul %26, %28, %cst_19 {dimension_numbers = #tpu.dot_dimension_numbers<[1], [0], [0], [1], [0, 0, 1, 1], [], []>} : vector<18x32xf32>, vector<32x64xf32>, vector<18x64xf32> -> vector<18x64xf32>
    %30 = arith.addf %21, %29 : vector<18x64xf32>
    %c8_i32_20 = arith.constant 8 : i32
    %31 = arith.muli %arg1, %c8_i32_20 : i32
    %c3_i32 = arith.constant 3 : i32
    %32 = arith.addi %31, %c3_i32 : i32
    %c0_21 = arith.constant 0 : index
    %33 = arith.index_cast %32 : i32 to index
    %c0_22 = arith.constant 0 : index
    %34 = vector.load %arg2[%c0_21, %33, %c0_22] : memref<1x25x32xf32, #tpu.memory_space<vmem>>, vector<1x18x32xf32>
    %35 = vector.shape_cast %34 : vector<1x18x32xf32> to vector<18x32xf32>
    %c3 = arith.constant 3 : index
    %c0_23 = arith.constant 0 : index
    %c0_24 = arith.constant 0 : index
    %36 = vector.load %arg3[%c3, %c0_23, %c0_24] : memref<8x32x64xf32, #tpu.memory_space<vmem>>, vector<1x32x64xf32>
    %37 = vector.shape_cast %36 : vector<1x32x64xf32> to vector<32x64xf32>
    %cst_25 = arith.constant dense<0.000000e+00> : vector<18x64xf32>
    %38 = tpu.matmul %35, %37, %cst_25 {dimension_numbers = #tpu.dot_dimension_numbers<[1], [0], [0], [1], [0, 0, 1, 1], [], []>} : vector<18x32xf32>, vector<32x64xf32>, vector<18x64xf32> -> vector<18x64xf32>
    %39 = arith.addf %30, %38 : vector<18x64xf32>
    %c8_i32_26 = arith.constant 8 : i32
    %40 = arith.muli %arg1, %c8_i32_26 : i32
    %c4_i32 = arith.constant 4 : i32
    %41 = arith.addi %40, %c4_i32 : i32
    %c0_27 = arith.constant 0 : index
    %42 = arith.index_cast %41 : i32 to index
    %c0_28 = arith.constant 0 : index
    %43 = vector.load %arg2[%c0_27, %42, %c0_28] : memref<1x25x32xf32, #tpu.memory_space<vmem>>, vector<1x18x32xf32>
    %44 = vector.shape_cast %43 : vector<1x18x32xf32> to vector<18x32xf32>
    %c4 = arith.constant 4 : index
    %c0_29 = arith.constant 0 : index
    %c0_30 = arith.constant 0 : index
    %45 = vector.load %arg3[%c4, %c0_29, %c0_30] : memref<8x32x64xf32, #tpu.memory_space<vmem>>, vector<1x32x64xf32>
    %46 = vector.shape_cast %45 : vector<1x32x64xf32> to vector<32x64xf32>
    %cst_31 = arith.constant dense<0.000000e+00> : vector<18x64xf32>
    %47 = tpu.matmul %44, %46, %cst_31 {dimension_numbers = #tpu.dot_dimension_numbers<[1], [0], [0], [1], [0, 0, 1, 1], [], []>} : vector<18x32xf32>, vector<32x64xf32>, vector<18x64xf32> -> vector<18x64xf32>
    %48 = arith.addf %39, %47 : vector<18x64xf32>
    %c8_i32_32 = arith.constant 8 : i32
    %49 = arith.muli %arg1, %c8_i32_32 : i32
    %c5_i32 = arith.constant 5 : i32
    %50 = arith.addi %49, %c5_i32 : i32
    %c0_33 = arith.constant 0 : index
    %51 = arith.index_cast %50 : i32 to index
    %c0_34 = arith.constant 0 : index
    %52 = vector.load %arg2[%c0_33, %51, %c0_34] : memref<1x25x32xf32, #tpu.memory_space<vmem>>, vector<1x18x32xf32>
    %53 = vector.shape_cast %52 : vector<1x18x32xf32> to vector<18x32xf32>
    %c5 = arith.constant 5 : index
    %c0_35 = arith.constant 0 : index
    %c0_36 = arith.constant 0 : index
    %54 = vector.load %arg3[%c5, %c0_35, %c0_36] : memref<8x32x64xf32, #tpu.memory_space<vmem>>, vector<1x32x64xf32>
    %55 = vector.shape_cast %54 : vector<1x32x64xf32> to vector<32x64xf32>
    %cst_37 = arith.constant dense<0.000000e+00> : vector<18x64xf32>
    %56 = tpu.matmul %53, %55, %cst_37 {dimension_numbers = #tpu.dot_dimension_numbers<[1], [0], [0], [1], [0, 0, 1, 1], [], []>} : vector<18x32xf32>, vector<32x64xf32>, vector<18x64xf32> -> vector<18x64xf32>
    %57 = arith.addf %48, %56 : vector<18x64xf32>
    %c8_i32_38 = arith.constant 8 : i32
    %58 = arith.muli %arg1, %c8_i32_38 : i32
    %c6_i32 = arith.constant 6 : i32
    %59 = arith.addi %58, %c6_i32 : i32
    %c0_39 = arith.constant 0 : index
    %60 = arith.index_cast %59 : i32 to index
    %c0_40 = arith.constant 0 : index
    %61 = vector.load %arg2[%c0_39, %60, %c0_40] : memref<1x25x32xf32, #tpu.memory_space<vmem>>, vector<1x18x32xf32>
    %62 = vector.shape_cast %61 : vector<1x18x32xf32> to vector<18x32xf32>
    %c6 = arith.constant 6 : index
    %c0_41 = arith.constant 0 : index
    %c0_42 = arith.constant 0 : index
    %63 = vector.load %arg3[%c6, %c0_41, %c0_42] : memref<8x32x64xf32, #tpu.memory_space<vmem>>, vector<1x32x64xf32>
    %64 = vector.shape_cast %63 : vector<1x32x64xf32> to vector<32x64xf32>
    %cst_43 = arith.constant dense<0.000000e+00> : vector<18x64xf32>
    %65 = tpu.matmul %62, %64, %cst_43 {dimension_numbers = #tpu.dot_dimension_numbers<[1], [0], [0], [1], [0, 0, 1, 1], [], []>} : vector<18x32xf32>, vector<32x64xf32>, vector<18x64xf32> -> vector<18x64xf32>
    %66 = arith.addf %57, %65 : vector<18x64xf32>
    %c8_i32_44 = arith.constant 8 : i32
    %67 = arith.muli %arg1, %c8_i32_44 : i32
    %c7_i32 = arith.constant 7 : i32
    %68 = arith.addi %67, %c7_i32 : i32
    %c0_45 = arith.constant 0 : index
    %69 = arith.index_cast %68 : i32 to index
    %c0_46 = arith.constant 0 : index
    %70 = vector.load %arg2[%c0_45, %69, %c0_46] : memref<1x25x32xf32, #tpu.memory_space<vmem>>, vector<1x18x32xf32>
    %71 = vector.shape_cast %70 : vector<1x18x32xf32> to vector<18x32xf32>
    %c7 = arith.constant 7 : index
    %c0_47 = arith.constant 0 : index
    %c0_48 = arith.constant 0 : index
    %72 = vector.load %arg3[%c7, %c0_47, %c0_48] : memref<8x32x64xf32, #tpu.memory_space<vmem>>, vector<1x32x64xf32>
    %73 = vector.shape_cast %72 : vector<1x32x64xf32> to vector<32x64xf32>
    %cst_49 = arith.constant dense<0.000000e+00> : vector<18x64xf32>
    %74 = tpu.matmul %71, %73, %cst_49 {dimension_numbers = #tpu.dot_dimension_numbers<[1], [0], [0], [1], [0, 0, 1, 1], [], []>} : vector<18x32xf32>, vector<32x64xf32>, vector<18x64xf32> -> vector<18x64xf32>
    %75 = arith.addf %66, %74 : vector<18x64xf32>
    %c0_50 = arith.constant 0 : index
    %c0_51 = arith.constant 0 : index
    %76 = vector.load %arg6[%c0_50, %c0_51] : memref<18x64xf32, #tpu.memory_space<vmem>>, vector<18x64xf32>
    tpu.vector_store %arg6[%c0_50, %c0_51], %75 {strides = array<i32>} : memref<18x64xf32, #tpu.memory_space<vmem>>, vector<18x64xf32>,
    %c0_i32_52 = arith.constant 0 : i32
    %77 = arith.cmpi eq, %arg1, %c0_i32_52 : i32
    %78 = arith.extui %77 : i1 to i32
    %c0_i32_53 = arith.constant 0 : i32
    %79 = arith.cmpi ne, %78, %c0_i32_53 : i32
    scf.if %79 {
      %c0_54 = arith.constant 0 : index
      %c0_55 = arith.constant 0 : index
      %80 = vector.load %arg6[%c0_54, %c0_55] : memref<18x64xf32, #tpu.memory_space<vmem>>, vector<18x64xf32>
      %c0_56 = arith.constant 0 : index
      %c0_57 = arith.constant 0 : index
      %81 = vector.load %arg4[%c0_56, %c0_57] : memref<1x64xf32, #tpu.memory_space<vmem>>, vector<1x64xf32>
      %82 = vector.broadcast %81 : vector<1x64xf32> to vector<18x64xf32>
      %83 = arith.addf %80, %82 : vector<18x64xf32>
      %cst_58 = arith.constant 0.000000e+00 : f32
      %84 = vector.broadcast %cst_58 : f32 to vector<18x64xf32>
      %85 = arith.maximumf %83, %84 : vector<18x64xf32>
      %c0_59 = arith.constant 0 : index
      %c0_60 = arith.constant 0 : index
      %c0_61 = arith.constant 0 : index
      %86 = vector.load %arg5[%c0_59, %c0_60, %c0_61] : memref<1x18x64xf32, #tpu.memory_space<vmem>>, vector<1x18x64xf32>
      %87 = vector.shape_cast %86 : vector<1x18x64xf32> to vector<18x64xf32>
      %88 = vector.shape_cast %85 : vector<18x64xf32> to vector<1x18x64xf32>
      tpu.vector_store %arg5[%c0_59, %c0_60, %c0_61], %88 {strides = array<i32>} : memref<1x18x64xf32, #tpu.memory_space<vmem>>, vector<1x18x64xf32>,
    } else {
    }
    return
  }
  func.func @transform_0(%arg0: i32, %arg1: i32) -> (i32, i32, i32) {
    %c0_i32 = arith.constant 0 : i32
    %c0_i32_0 = arith.constant 0 : i32
    %c0_i32_1 = arith.constant 0 : i32
    return %arg0, %c0_i32, %c0_i32_0 : i32, i32, i32
  }
  func.func @transform_1(%arg0: i32, %arg1: i32) -> (i32, i32, i32) {
    %c0_i32 = arith.constant 0 : i32
    %c0_i32_0 = arith.constant 0 : i32
    %c0_i32_1 = arith.constant 0 : i32
    return %arg1, %c0_i32, %c0_i32_0 : i32, i32, i32
  }
  func.func @transform_2(%arg0: i32, %arg1: i32) -> (i32, i32) {
    %c0_i32 = arith.constant 0 : i32
    %c0_i32_0 = arith.constant 0 : i32
    %c0_i32_1 = arith.constant 0 : i32
    return %c0_i32, %c0_i32_0 : i32, i32
  }
  func.func @transform_3(%arg0: i32, %arg1: i32) -> (i32, i32, i32) {
    %c0_i32 = arith.constant 0 : i32
    %c0_i32_0 = arith.constant 0 : i32
    %c0_i32_1 = arith.constant 0 : i32
    return %arg0, %c0_i32, %c0_i32_0 : i32, i32, i32
  }
}

module attributes {stable_mosaic.version = 11 : i64} {
  func.func @matmul_bias_kernel(%arg0: i32, %arg1: i32, %arg2: i32, %arg3: memref<36x64xf32, #tpu.memory_space<vmem>>, %arg4: memref<64x512xf32, #tpu.memory_space<vmem>>, %arg5: memref<1x512xf32, #tpu.memory_space<vmem>>, %arg6: memref<36x512xf32, #tpu.memory_space<vmem>>, %arg7: memref<36x512xf32, #tpu.memory_space<vmem>>) attributes {dimension_semantics = [#tpu.dimension_semantics<parallel>, #tpu.dimension_semantics<parallel>, #tpu.dimension_semantics<arbitrary>], iteration_bounds = array<i64: 1, 1, 1>, scalar_prefetch = 0 : i64, scratch_operands = 1 : i64, tpu.core_type = #tpu.core_type<tc>, window_params = [{transform_indices = @transform_0, window_bounds = array<i64: 36, 64>}, {transform_indices = @transform_1, window_bounds = array<i64: 64, 512>}, {transform_indices = @transform_2, window_bounds = array<i64: 1, 512>}, {transform_indices = @transform_3, window_bounds = array<i64: 36, 512>}]} {
    %c0_i32 = arith.constant 0 : i32
    %0 = arith.cmpi eq, %arg2, %c0_i32 : i32
    %1 = arith.extui %0 : i1 to i32
    %c0_i32_0 = arith.constant 0 : i32
    %2 = arith.cmpi ne, %1, %c0_i32_0 : i32
    scf.if %2 {
      %cst_10 = arith.constant 0.000000e+00 : f32
      %12 = vector.broadcast %cst_10 : f32 to vector<36x512xf32>
      %c0_11 = arith.constant 0 : index
      %c0_12 = arith.constant 0 : index
      %13 = vector.load %arg7[%c0_11, %c0_12] : memref<36x512xf32, #tpu.memory_space<vmem>>, vector<36x512xf32>
      tpu.vector_store %arg7[%c0_11, %c0_12], %12 {strides = array<i32>} : memref<36x512xf32, #tpu.memory_space<vmem>>, vector<36x512xf32>,
    } else {
    }
    %c0 = arith.constant 0 : index
    %c0_1 = arith.constant 0 : index
    %3 = vector.load %arg7[%c0, %c0_1] : memref<36x512xf32, #tpu.memory_space<vmem>>, vector<36x512xf32>
    %c0_2 = arith.constant 0 : index
    %c0_3 = arith.constant 0 : index
    %4 = vector.load %arg3[%c0_2, %c0_3] : memref<36x64xf32, #tpu.memory_space<vmem>>, vector<36x64xf32>
    %c0_4 = arith.constant 0 : index
    %c0_5 = arith.constant 0 : index
    %5 = vector.load %arg4[%c0_4, %c0_5] : memref<64x512xf32, #tpu.memory_space<vmem>>, vector<64x512xf32>
    %cst = arith.constant dense<0.000000e+00> : vector<36x512xf32>
    %6 = tpu.matmul %4, %5, %cst {dimension_numbers = #tpu.dot_dimension_numbers<[1], [0], [0], [1], [0, 0, 1, 1], [], []>} : vector<36x64xf32>, vector<64x512xf32>, vector<36x512xf32> -> vector<36x512xf32>
    %7 = arith.addf %3, %6 : vector<36x512xf32>
    %c0_6 = arith.constant 0 : index
    %c0_7 = arith.constant 0 : index
    %8 = vector.load %arg7[%c0_6, %c0_7] : memref<36x512xf32, #tpu.memory_space<vmem>>, vector<36x512xf32>
    tpu.vector_store %arg7[%c0_6, %c0_7], %7 {strides = array<i32>} : memref<36x512xf32, #tpu.memory_space<vmem>>, vector<36x512xf32>,
    %c0_i32_8 = arith.constant 0 : i32
    %9 = arith.cmpi eq, %arg2, %c0_i32_8 : i32
    %10 = arith.extui %9 : i1 to i32
    %c0_i32_9 = arith.constant 0 : i32
    %11 = arith.cmpi ne, %10, %c0_i32_9 : i32
    scf.if %11 {
      %c0_10 = arith.constant 0 : index
      %c0_11 = arith.constant 0 : index
      %12 = vector.load %arg7[%c0_10, %c0_11] : memref<36x512xf32, #tpu.memory_space<vmem>>, vector<36x512xf32>
      %c0_12 = arith.constant 0 : index
      %c0_13 = arith.constant 0 : index
      %13 = vector.load %arg5[%c0_12, %c0_13] : memref<1x512xf32, #tpu.memory_space<vmem>>, vector<1x512xf32>
      %14 = vector.broadcast %13 : vector<1x512xf32> to vector<36x512xf32>
      %15 = arith.addf %12, %14 : vector<36x512xf32>
      %c0_14 = arith.constant 0 : index
      %c0_15 = arith.constant 0 : index
      %16 = vector.load %arg6[%c0_14, %c0_15] : memref<36x512xf32, #tpu.memory_space<vmem>>, vector<36x512xf32>
      tpu.vector_store %arg6[%c0_14, %c0_15], %15 {strides = array<i32>} : memref<36x512xf32, #tpu.memory_space<vmem>>, vector<36x512xf32>,
    } else {
    }
    return
  }
  func.func @transform_0(%arg0: i32, %arg1: i32, %arg2: i32) -> (i32, i32) {
    %c0_i32 = arith.constant 0 : i32
    return %arg0, %arg2 : i32, i32
  }
  func.func @transform_1(%arg0: i32, %arg1: i32, %arg2: i32) -> (i32, i32) {
    %c0_i32 = arith.constant 0 : i32
    return %arg2, %arg1 : i32, i32
  }
  func.func @transform_2(%arg0: i32, %arg1: i32, %arg2: i32) -> (i32, i32) {
    %c0_i32 = arith.constant 0 : i32
    %c0_i32_0 = arith.constant 0 : i32
    return %c0_i32, %arg1 : i32, i32
  }
  func.func @transform_3(%arg0: i32, %arg1: i32, %arg2: i32) -> (i32, i32) {
    %c0_i32 = arith.constant 0 : i32
    return %arg0, %arg1 : i32, i32
  }
}

module attributes {stable_mosaic.version = 11 : i64} {
  func.func @lstm_seq_kernel(%arg0: memref<18x2x512xf32, #tpu.memory_space<vmem>>, %arg1: memref<128x512xf32, #tpu.memory_space<vmem>>, %arg2: memref<18x2x128xf32, #tpu.memory_space<vmem>>, %arg3: memref<2x128xf32, #tpu.memory_space<vmem>>, %arg4: memref<2x128xf32, #tpu.memory_space<vmem>>, %arg5: memref<18x2x128xf32, #tpu.memory_space<vmem>>) attributes {dimension_semantics = [], scalar_prefetch = 0 : i64, scratch_operands = 3 : i64, tpu.core_type = #tpu.core_type<tc>} {
    %cst = arith.constant 0.000000e+00 : f32
    %0 = vector.broadcast %cst : f32 to vector<2x128xf32>
    %c0 = arith.constant 0 : index
    %c0_0 = arith.constant 0 : index
    %1 = vector.load %arg3[%c0, %c0_0] : memref<2x128xf32, #tpu.memory_space<vmem>>, vector<2x128xf32>
    tpu.vector_store %arg3[%c0, %c0_0], %0 {strides = array<i32>} : memref<2x128xf32, #tpu.memory_space<vmem>>, vector<2x128xf32>,
    %cst_1 = arith.constant 0.000000e+00 : f32
    %2 = vector.broadcast %cst_1 : f32 to vector<2x128xf32>
    %c0_2 = arith.constant 0 : index
    %c0_3 = arith.constant 0 : index
    %3 = vector.load %arg4[%c0_2, %c0_3] : memref<2x128xf32, #tpu.memory_space<vmem>>, vector<2x128xf32>
    tpu.vector_store %arg4[%c0_2, %c0_3], %2 {strides = array<i32>} : memref<2x128xf32, #tpu.memory_space<vmem>>, vector<2x128xf32>,
    %c0_4 = arith.constant 0 : index
    %c0_5 = arith.constant 0 : index
    %4 = vector.load %arg1[%c0_4, %c0_5] : memref<128x512xf32, #tpu.memory_space<vmem>>, vector<128x512xf32>
    %5 = tpu.iota {dimensions = array<i32: 1>} : vector<2x512xi32>
    %c128_i32 = arith.constant 128 : i32
    %c0_i32 = arith.constant 0 : i32
    %6 = arith.cmpi eq, %c128_i32, %c0_i32 : i32
    %c1_i32 = arith.constant 1 : i32
    %7 = arith.select %6, %c1_i32, %c128_i32 : i32
    %8 = vector.broadcast %7 : i32 to vector<2x512xi32>
    %9 = arith.remsi %5, %8 : vector<2x512xi32>
    %c0_i32_6 = arith.constant 0 : i32
    %10 = vector.broadcast %c0_i32_6 : i32 to vector<2x512xi32>
    %11 = arith.cmpi ne, %9, %10 : vector<2x512xi32>
    %c0_i32_7 = arith.constant 0 : i32
    %12 = vector.broadcast %c0_i32_7 : i32 to vector<2x512xi32>
    %13 = arith.cmpi slt, %9, %12 : vector<2x512xi32>
    %c0_i32_8 = arith.constant 0 : i32
    %14 = arith.cmpi slt, %7, %c0_i32_8 : i32
    %15 = vector.broadcast %14 : i1 to vector<2x512xi1>
    %16 = vector.broadcast %15 : vector<2x512xi1> to vector<2x512xi1>
    %17 = arith.xori %13, %16 : vector<2x512xi1>
    %18 = arith.andi %17, %11 : vector<2x512xi1>
    %19 = vector.broadcast %7 : i32 to vector<2x512xi32>
    %20 = arith.addi %9, %19 : vector<2x512xi32>
    %21 = arith.select %18, %20, %9 : vector<2x512xi1>, vector<2x512xi32>
    %c64_i32 = arith.constant 64 : i32
    %22 = vector.broadcast %c64_i32 : i32 to vector<2x512xi32>
    %23 = arith.cmpi slt, %21, %22 : vector<2x512xi32>
    %c0_i32_9 = arith.constant 0 : i32
    %c18_i32 = arith.constant 18 : i32
    %24 = arith.addi %c0_i32_9, %c18_i32 : i32
    %c1_i32_10 = arith.constant 1 : i32
    scf.for %arg6 = %c0_i32_9 to %24 step %c1_i32_10  : i32 {
      %c17_i32 = arith.constant 17 : i32
      %27 = arith.subi %c17_i32, %arg6 : i32
      %28 = arith.index_cast %arg6 : i32 to index
      %c0_16 = arith.constant 0 : index
      %c0_17 = arith.constant 0 : index
      %29 = vector.load %arg0[%28, %c0_16, %c0_17] : memref<18x2x512xf32, #tpu.memory_space<vmem>>, vector<1x2x512xf32>
      %30 = vector.shape_cast %29 : vector<1x2x512xf32> to vector<2x512xf32>
      %31 = arith.index_cast %27 : i32 to index
      %c0_18 = arith.constant 0 : index
      %c0_19 = arith.constant 0 : index
      %32 = vector.load %arg0[%31, %c0_18, %c0_19] : memref<18x2x512xf32, #tpu.memory_space<vmem>>, vector<1x2x512xf32>
      %33 = vector.shape_cast %32 : vector<1x2x512xf32> to vector<2x512xf32>
      %34 = arith.select %23, %30, %33 : vector<2x512xi1>, vector<2x512xf32>
      %c0_20 = arith.constant 0 : index
      %c0_21 = arith.constant 0 : index
      %35 = vector.load %arg3[%c0_20, %c0_21] : memref<2x128xf32, #tpu.memory_space<vmem>>, vector<2x128xf32>
      %cst_22 = arith.constant dense<0.000000e+00> : vector<2x512xf32>
      %36 = tpu.matmul %35, %4, %cst_22 {dimension_numbers = #tpu.dot_dimension_numbers<[1], [0], [0], [1], [0, 0, 1, 1], [], []>} : vector<2x128xf32>, vector<128x512xf32>, vector<2x512xf32> -> vector<2x512xf32>
      %37 = arith.addf %34, %36 : vector<2x512xf32>
      %38 = vector.extract_strided_slice %37 {offsets = [0, 0], sizes = [2, 128], strides = [1, 1]} : vector<2x512xf32> to vector<2x128xf32>
      %cst_23 = arith.constant 0.000000e+00 : f32
      %39 = vector.broadcast %cst_23 : f32 to vector<2x128xf32>
      %40 = arith.subf %39, %38 : vector<2x128xf32>
      %41 = math.exp %40 : vector<2x128xf32>
      %cst_24 = arith.constant 1.000000e+00 : f32
      %42 = vector.broadcast %cst_24 : f32 to vector<2x128xf32>
      %43 = arith.addf %42, %41 : vector<2x128xf32>
      %cst_25 = arith.constant 1.000000e+00 : f32
      %44 = vector.broadcast %cst_25 : f32 to vector<2x128xf32>
      %45 = arith.divf %44, %43 : vector<2x128xf32>
      %46 = vector.extract_strided_slice %37 {offsets = [0, 128], sizes = [2, 128], strides = [1, 1]} : vector<2x512xf32> to vector<2x128xf32>
      %cst_26 = arith.constant 0.000000e+00 : f32
      %47 = vector.broadcast %cst_26 : f32 to vector<2x128xf32>
      %48 = arith.subf %47, %46 : vector<2x128xf32>
      %49 = math.exp %48 : vector<2x128xf32>
      %cst_27 = arith.constant 1.000000e+00 : f32
      %50 = vector.broadcast %cst_27 : f32 to vector<2x128xf32>
      %51 = arith.addf %50, %49 : vector<2x128xf32>
      %cst_28 = arith.constant 1.000000e+00 : f32
      %52 = vector.broadcast %cst_28 : f32 to vector<2x128xf32>
      %53 = arith.divf %52, %51 : vector<2x128xf32>
      %54 = vector.extract_strided_slice %37 {offsets = [0, 256], sizes = [2, 128], strides = [1, 1]} : vector<2x512xf32> to vector<2x128xf32>
      %55 = math.tanh %54 : vector<2x128xf32>
      %56 = vector.extract_strided_slice %37 {offsets = [0, 384], sizes = [2, 128], strides = [1, 1]} : vector<2x512xf32> to vector<2x128xf32>
      %cst_29 = arith.constant 0.000000e+00 : f32
      %57 = vector.broadcast %cst_29 : f32 to vector<2x128xf32>
      %58 = arith.subf %57, %56 : vector<2x128xf32>
      %59 = math.exp %58 : vector<2x128xf32>
      %cst_30 = arith.constant 1.000000e+00 : f32
      %60 = vector.broadcast %cst_30 : f32 to vector<2x128xf32>
      %61 = arith.addf %60, %59 : vector<2x128xf32>
      %cst_31 = arith.constant 1.000000e+00 : f32
      %62 = vector.broadcast %cst_31 : f32 to vector<2x128xf32>
      %63 = arith.divf %62, %61 : vector<2x128xf32>
      %c0_32 = arith.constant 0 : index
      %c0_33 = arith.constant 0 : index
      %64 = vector.load %arg4[%c0_32, %c0_33] : memref<2x128xf32, #tpu.memory_space<vmem>>, vector<2x128xf32>
      %65 = arith.mulf %53, %64 : vector<2x128xf32>
      %66 = arith.mulf %45, %55 : vector<2x128xf32>
      %67 = arith.addf %65, %66 : vector<2x128xf32>
      %68 = math.tanh %67 : vector<2x128xf32>
      %69 = arith.mulf %63, %68 : vector<2x128xf32>
      %c0_34 = arith.constant 0 : index
      %c0_35 = arith.constant 0 : index
      %70 = vector.load %arg4[%c0_34, %c0_35] : memref<2x128xf32, #tpu.memory_space<vmem>>, vector<2x128xf32>
      tpu.vector_store %arg4[%c0_34, %c0_35], %67 {strides = array<i32>} : memref<2x128xf32, #tpu.memory_space<vmem>>, vector<2x128xf32>,
      %c0_36 = arith.constant 0 : index
      %c0_37 = arith.constant 0 : index
      %71 = vector.load %arg3[%c0_36, %c0_37] : memref<2x128xf32, #tpu.memory_space<vmem>>, vector<2x128xf32>
      tpu.vector_store %arg3[%c0_36, %c0_37], %69 {strides = array<i32>} : memref<2x128xf32, #tpu.memory_space<vmem>>, vector<2x128xf32>,
      %72 = arith.index_cast %arg6 : i32 to index
      %c0_38 = arith.constant 0 : index
      %c0_39 = arith.constant 0 : index
      %73 = vector.load %arg5[%72, %c0_38, %c0_39] : memref<18x2x128xf32, #tpu.memory_space<vmem>>, vector<1x2x128xf32>
      %74 = vector.shape_cast %73 : vector<1x2x128xf32> to vector<2x128xf32>
      %75 = vector.shape_cast %69 : vector<2x128xf32> to vector<1x2x128xf32>
      tpu.vector_store %arg5[%72, %c0_38, %c0_39], %75 {strides = array<i32>} : memref<18x2x128xf32, #tpu.memory_space<vmem>>, vector<1x2x128xf32>,
    }
    %c18_i32_11 = arith.constant 18 : i32
    %25 = vector.extract_strided_slice %23 {offsets = [0, 0], sizes = [2, 128], strides = [1, 1]} : vector<2x512xi1> to vector<2x128xi1>
    %c0_i32_12 = arith.constant 0 : i32
    %c18_i32_13 = arith.constant 18 : i32
    %26 = arith.addi %c0_i32_12, %c18_i32_13 : i32
    %c1_i32_14 = arith.constant 1 : i32
    scf.for %arg6 = %c0_i32_12 to %26 step %c1_i32_14  : i32 {
      %c17_i32 = arith.constant 17 : i32
      %27 = arith.subi %c17_i32, %arg6 : i32
      %28 = arith.index_cast %arg6 : i32 to index
      %c0_16 = arith.constant 0 : index
      %c0_17 = arith.constant 0 : index
      %29 = vector.load %arg5[%28, %c0_16, %c0_17] : memref<18x2x128xf32, #tpu.memory_space<vmem>>, vector<1x2x128xf32>
      %30 = vector.shape_cast %29 : vector<1x2x128xf32> to vector<2x128xf32>
      %31 = arith.index_cast %27 : i32 to index
      %c0_18 = arith.constant 0 : index
      %c0_19 = arith.constant 0 : index
      %32 = vector.load %arg5[%31, %c0_18, %c0_19] : memref<18x2x128xf32, #tpu.memory_space<vmem>>, vector<1x2x128xf32>
      %33 = vector.shape_cast %32 : vector<1x2x128xf32> to vector<2x128xf32>
      %34 = arith.select %25, %30, %33 : vector<2x128xi1>, vector<2x128xf32>
      %35 = arith.index_cast %arg6 : i32 to index
      %c0_20 = arith.constant 0 : index
      %c0_21 = arith.constant 0 : index
      %36 = vector.load %arg2[%35, %c0_20, %c0_21] : memref<18x2x128xf32, #tpu.memory_space<vmem>>, vector<1x2x128xf32>
      %37 = vector.shape_cast %36 : vector<1x2x128xf32> to vector<2x128xf32>
      %38 = vector.shape_cast %34 : vector<2x128xf32> to vector<1x2x128xf32>
      tpu.vector_store %arg2[%35, %c0_20, %c0_21], %38 {strides = array<i32>} : memref<18x2x128xf32, #tpu.memory_space<vmem>>, vector<1x2x128xf32>,
    }
    %c18_i32_15 = arith.constant 18 : i32
    return
  }
}

module attributes {stable_mosaic.version = 11 : i64} {
  func.func @matmul_bias_kernel(%arg0: i32, %arg1: i32, %arg2: i32, %arg3: memref<36x128xf32, #tpu.memory_space<vmem>>, %arg4: memref<128x512xf32, #tpu.memory_space<vmem>>, %arg5: memref<1x512xf32, #tpu.memory_space<vmem>>, %arg6: memref<36x512xf32, #tpu.memory_space<vmem>>, %arg7: memref<36x512xf32, #tpu.memory_space<vmem>>) attributes {dimension_semantics = [#tpu.dimension_semantics<parallel>, #tpu.dimension_semantics<parallel>, #tpu.dimension_semantics<arbitrary>], iteration_bounds = array<i64: 1, 1, 1>, scalar_prefetch = 0 : i64, scratch_operands = 1 : i64, tpu.core_type = #tpu.core_type<tc>, window_params = [{transform_indices = @transform_0, window_bounds = array<i64: 36, 128>}, {transform_indices = @transform_1, window_bounds = array<i64: 128, 512>}, {transform_indices = @transform_2, window_bounds = array<i64: 1, 512>}, {transform_indices = @transform_3, window_bounds = array<i64: 36, 512>}]} {
    %c0_i32 = arith.constant 0 : i32
    %0 = arith.cmpi eq, %arg2, %c0_i32 : i32
    %1 = arith.extui %0 : i1 to i32
    %c0_i32_0 = arith.constant 0 : i32
    %2 = arith.cmpi ne, %1, %c0_i32_0 : i32
    scf.if %2 {
      %cst_10 = arith.constant 0.000000e+00 : f32
      %12 = vector.broadcast %cst_10 : f32 to vector<36x512xf32>
      %c0_11 = arith.constant 0 : index
      %c0_12 = arith.constant 0 : index
      %13 = vector.load %arg7[%c0_11, %c0_12] : memref<36x512xf32, #tpu.memory_space<vmem>>, vector<36x512xf32>
      tpu.vector_store %arg7[%c0_11, %c0_12], %12 {strides = array<i32>} : memref<36x512xf32, #tpu.memory_space<vmem>>, vector<36x512xf32>,
    } else {
    }
    %c0 = arith.constant 0 : index
    %c0_1 = arith.constant 0 : index
    %3 = vector.load %arg7[%c0, %c0_1] : memref<36x512xf32, #tpu.memory_space<vmem>>, vector<36x512xf32>
    %c0_2 = arith.constant 0 : index
    %c0_3 = arith.constant 0 : index
    %4 = vector.load %arg3[%c0_2, %c0_3] : memref<36x128xf32, #tpu.memory_space<vmem>>, vector<36x128xf32>
    %c0_4 = arith.constant 0 : index
    %c0_5 = arith.constant 0 : index
    %5 = vector.load %arg4[%c0_4, %c0_5] : memref<128x512xf32, #tpu.memory_space<vmem>>, vector<128x512xf32>
    %cst = arith.constant dense<0.000000e+00> : vector<36x512xf32>
    %6 = tpu.matmul %4, %5, %cst {dimension_numbers = #tpu.dot_dimension_numbers<[1], [0], [0], [1], [0, 0, 1, 1], [], []>} : vector<36x128xf32>, vector<128x512xf32>, vector<36x512xf32> -> vector<36x512xf32>
    %7 = arith.addf %3, %6 : vector<36x512xf32>
    %c0_6 = arith.constant 0 : index
    %c0_7 = arith.constant 0 : index
    %8 = vector.load %arg7[%c0_6, %c0_7] : memref<36x512xf32, #tpu.memory_space<vmem>>, vector<36x512xf32>
    tpu.vector_store %arg7[%c0_6, %c0_7], %7 {strides = array<i32>} : memref<36x512xf32, #tpu.memory_space<vmem>>, vector<36x512xf32>,
    %c0_i32_8 = arith.constant 0 : i32
    %9 = arith.cmpi eq, %arg2, %c0_i32_8 : i32
    %10 = arith.extui %9 : i1 to i32
    %c0_i32_9 = arith.constant 0 : i32
    %11 = arith.cmpi ne, %10, %c0_i32_9 : i32
    scf.if %11 {
      %c0_10 = arith.constant 0 : index
      %c0_11 = arith.constant 0 : index
      %12 = vector.load %arg7[%c0_10, %c0_11] : memref<36x512xf32, #tpu.memory_space<vmem>>, vector<36x512xf32>
      %c0_12 = arith.constant 0 : index
      %c0_13 = arith.constant 0 : index
      %13 = vector.load %arg5[%c0_12, %c0_13] : memref<1x512xf32, #tpu.memory_space<vmem>>, vector<1x512xf32>
      %14 = vector.broadcast %13 : vector<1x512xf32> to vector<36x512xf32>
      %15 = arith.addf %12, %14 : vector<36x512xf32>
      %c0_14 = arith.constant 0 : index
      %c0_15 = arith.constant 0 : index
      %16 = vector.load %arg6[%c0_14, %c0_15] : memref<36x512xf32, #tpu.memory_space<vmem>>, vector<36x512xf32>
      tpu.vector_store %arg6[%c0_14, %c0_15], %15 {strides = array<i32>} : memref<36x512xf32, #tpu.memory_space<vmem>>, vector<36x512xf32>,
    } else {
    }
    return
  }
  func.func @transform_0(%arg0: i32, %arg1: i32, %arg2: i32) -> (i32, i32) {
    %c0_i32 = arith.constant 0 : i32
    return %arg0, %arg2 : i32, i32
  }
  func.func @transform_1(%arg0: i32, %arg1: i32, %arg2: i32) -> (i32, i32) {
    %c0_i32 = arith.constant 0 : i32
    return %arg2, %arg1 : i32, i32
  }
  func.func @transform_2(%arg0: i32, %arg1: i32, %arg2: i32) -> (i32, i32) {
    %c0_i32 = arith.constant 0 : i32
    %c0_i32_0 = arith.constant 0 : i32
    return %c0_i32, %arg1 : i32, i32
  }
  func.func @transform_3(%arg0: i32, %arg1: i32, %arg2: i32) -> (i32, i32) {
    %c0_i32 = arith.constant 0 : i32
    return %arg0, %arg1 : i32, i32
  }
}

module attributes {stable_mosaic.version = 11 : i64} {
  func.func @lstm_seq_kernel(%arg0: memref<18x2x512xf32, #tpu.memory_space<vmem>>, %arg1: memref<128x512xf32, #tpu.memory_space<vmem>>, %arg2: memref<18x2x128xf32, #tpu.memory_space<vmem>>, %arg3: memref<2x128xf32, #tpu.memory_space<vmem>>, %arg4: memref<2x128xf32, #tpu.memory_space<vmem>>, %arg5: memref<18x2x128xf32, #tpu.memory_space<vmem>>) attributes {dimension_semantics = [], scalar_prefetch = 0 : i64, scratch_operands = 3 : i64, tpu.core_type = #tpu.core_type<tc>} {
    %cst = arith.constant 0.000000e+00 : f32
    %0 = vector.broadcast %cst : f32 to vector<2x128xf32>
    %c0 = arith.constant 0 : index
    %c0_0 = arith.constant 0 : index
    %1 = vector.load %arg3[%c0, %c0_0] : memref<2x128xf32, #tpu.memory_space<vmem>>, vector<2x128xf32>
    tpu.vector_store %arg3[%c0, %c0_0], %0 {strides = array<i32>} : memref<2x128xf32, #tpu.memory_space<vmem>>, vector<2x128xf32>,
    %cst_1 = arith.constant 0.000000e+00 : f32
    %2 = vector.broadcast %cst_1 : f32 to vector<2x128xf32>
    %c0_2 = arith.constant 0 : index
    %c0_3 = arith.constant 0 : index
    %3 = vector.load %arg4[%c0_2, %c0_3] : memref<2x128xf32, #tpu.memory_space<vmem>>, vector<2x128xf32>
    tpu.vector_store %arg4[%c0_2, %c0_3], %2 {strides = array<i32>} : memref<2x128xf32, #tpu.memory_space<vmem>>, vector<2x128xf32>,
    %c0_4 = arith.constant 0 : index
    %c0_5 = arith.constant 0 : index
    %4 = vector.load %arg1[%c0_4, %c0_5] : memref<128x512xf32, #tpu.memory_space<vmem>>, vector<128x512xf32>
    %5 = tpu.iota {dimensions = array<i32: 1>} : vector<2x512xi32>
    %c128_i32 = arith.constant 128 : i32
    %c0_i32 = arith.constant 0 : i32
    %6 = arith.cmpi eq, %c128_i32, %c0_i32 : i32
    %c1_i32 = arith.constant 1 : i32
    %7 = arith.select %6, %c1_i32, %c128_i32 : i32
    %8 = vector.broadcast %7 : i32 to vector<2x512xi32>
    %9 = arith.remsi %5, %8 : vector<2x512xi32>
    %c0_i32_6 = arith.constant 0 : i32
    %10 = vector.broadcast %c0_i32_6 : i32 to vector<2x512xi32>
    %11 = arith.cmpi ne, %9, %10 : vector<2x512xi32>
    %c0_i32_7 = arith.constant 0 : i32
    %12 = vector.broadcast %c0_i32_7 : i32 to vector<2x512xi32>
    %13 = arith.cmpi slt, %9, %12 : vector<2x512xi32>
    %c0_i32_8 = arith.constant 0 : i32
    %14 = arith.cmpi slt, %7, %c0_i32_8 : i32
    %15 = vector.broadcast %14 : i1 to vector<2x512xi1>
    %16 = vector.broadcast %15 : vector<2x512xi1> to vector<2x512xi1>
    %17 = arith.xori %13, %16 : vector<2x512xi1>
    %18 = arith.andi %17, %11 : vector<2x512xi1>
    %19 = vector.broadcast %7 : i32 to vector<2x512xi32>
    %20 = arith.addi %9, %19 : vector<2x512xi32>
    %21 = arith.select %18, %20, %9 : vector<2x512xi1>, vector<2x512xi32>
    %c64_i32 = arith.constant 64 : i32
    %22 = vector.broadcast %c64_i32 : i32 to vector<2x512xi32>
    %23 = arith.cmpi slt, %21, %22 : vector<2x512xi32>
    %c0_i32_9 = arith.constant 0 : i32
    %c18_i32 = arith.constant 18 : i32
    %24 = arith.addi %c0_i32_9, %c18_i32 : i32
    %c1_i32_10 = arith.constant 1 : i32
    scf.for %arg6 = %c0_i32_9 to %24 step %c1_i32_10  : i32 {
      %c17_i32 = arith.constant 17 : i32
      %27 = arith.subi %c17_i32, %arg6 : i32
      %28 = arith.index_cast %arg6 : i32 to index
      %c0_16 = arith.constant 0 : index
      %c0_17 = arith.constant 0 : index
      %29 = vector.load %arg0[%28, %c0_16, %c0_17] : memref<18x2x512xf32, #tpu.memory_space<vmem>>, vector<1x2x512xf32>
      %30 = vector.shape_cast %29 : vector<1x2x512xf32> to vector<2x512xf32>
      %31 = arith.index_cast %27 : i32 to index
      %c0_18 = arith.constant 0 : index
      %c0_19 = arith.constant 0 : index
      %32 = vector.load %arg0[%31, %c0_18, %c0_19] : memref<18x2x512xf32, #tpu.memory_space<vmem>>, vector<1x2x512xf32>
      %33 = vector.shape_cast %32 : vector<1x2x512xf32> to vector<2x512xf32>
      %34 = arith.select %23, %30, %33 : vector<2x512xi1>, vector<2x512xf32>
      %c0_20 = arith.constant 0 : index
      %c0_21 = arith.constant 0 : index
      %35 = vector.load %arg3[%c0_20, %c0_21] : memref<2x128xf32, #tpu.memory_space<vmem>>, vector<2x128xf32>
      %cst_22 = arith.constant dense<0.000000e+00> : vector<2x512xf32>
      %36 = tpu.matmul %35, %4, %cst_22 {dimension_numbers = #tpu.dot_dimension_numbers<[1], [0], [0], [1], [0, 0, 1, 1], [], []>} : vector<2x128xf32>, vector<128x512xf32>, vector<2x512xf32> -> vector<2x512xf32>
      %37 = arith.addf %34, %36 : vector<2x512xf32>
      %38 = vector.extract_strided_slice %37 {offsets = [0, 0], sizes = [2, 128], strides = [1, 1]} : vector<2x512xf32> to vector<2x128xf32>
      %cst_23 = arith.constant 0.000000e+00 : f32
      %39 = vector.broadcast %cst_23 : f32 to vector<2x128xf32>
      %40 = arith.subf %39, %38 : vector<2x128xf32>
      %41 = math.exp %40 : vector<2x128xf32>
      %cst_24 = arith.constant 1.000000e+00 : f32
      %42 = vector.broadcast %cst_24 : f32 to vector<2x128xf32>
      %43 = arith.addf %42, %41 : vector<2x128xf32>
      %cst_25 = arith.constant 1.000000e+00 : f32
      %44 = vector.broadcast %cst_25 : f32 to vector<2x128xf32>
      %45 = arith.divf %44, %43 : vector<2x128xf32>
      %46 = vector.extract_strided_slice %37 {offsets = [0, 128], sizes = [2, 128], strides = [1, 1]} : vector<2x512xf32> to vector<2x128xf32>
      %cst_26 = arith.constant 0.000000e+00 : f32
      %47 = vector.broadcast %cst_26 : f32 to vector<2x128xf32>
      %48 = arith.subf %47, %46 : vector<2x128xf32>
      %49 = math.exp %48 : vector<2x128xf32>
      %cst_27 = arith.constant 1.000000e+00 : f32
      %50 = vector.broadcast %cst_27 : f32 to vector<2x128xf32>
      %51 = arith.addf %50, %49 : vector<2x128xf32>
      %cst_28 = arith.constant 1.000000e+00 : f32
      %52 = vector.broadcast %cst_28 : f32 to vector<2x128xf32>
      %53 = arith.divf %52, %51 : vector<2x128xf32>
      %54 = vector.extract_strided_slice %37 {offsets = [0, 256], sizes = [2, 128], strides = [1, 1]} : vector<2x512xf32> to vector<2x128xf32>
      %55 = math.tanh %54 : vector<2x128xf32>
      %56 = vector.extract_strided_slice %37 {offsets = [0, 384], sizes = [2, 128], strides = [1, 1]} : vector<2x512xf32> to vector<2x128xf32>
      %cst_29 = arith.constant 0.000000e+00 : f32
      %57 = vector.broadcast %cst_29 : f32 to vector<2x128xf32>
      %58 = arith.subf %57, %56 : vector<2x128xf32>
      %59 = math.exp %58 : vector<2x128xf32>
      %cst_30 = arith.constant 1.000000e+00 : f32
      %60 = vector.broadcast %cst_30 : f32 to vector<2x128xf32>
      %61 = arith.addf %60, %59 : vector<2x128xf32>
      %cst_31 = arith.constant 1.000000e+00 : f32
      %62 = vector.broadcast %cst_31 : f32 to vector<2x128xf32>
      %63 = arith.divf %62, %61 : vector<2x128xf32>
      %c0_32 = arith.constant 0 : index
      %c0_33 = arith.constant 0 : index
      %64 = vector.load %arg4[%c0_32, %c0_33] : memref<2x128xf32, #tpu.memory_space<vmem>>, vector<2x128xf32>
      %65 = arith.mulf %53, %64 : vector<2x128xf32>
      %66 = arith.mulf %45, %55 : vector<2x128xf32>
      %67 = arith.addf %65, %66 : vector<2x128xf32>
      %68 = math.tanh %67 : vector<2x128xf32>
      %69 = arith.mulf %63, %68 : vector<2x128xf32>
      %c0_34 = arith.constant 0 : index
      %c0_35 = arith.constant 0 : index
      %70 = vector.load %arg4[%c0_34, %c0_35] : memref<2x128xf32, #tpu.memory_space<vmem>>, vector<2x128xf32>
      tpu.vector_store %arg4[%c0_34, %c0_35], %67 {strides = array<i32>} : memref<2x128xf32, #tpu.memory_space<vmem>>, vector<2x128xf32>,
      %c0_36 = arith.constant 0 : index
      %c0_37 = arith.constant 0 : index
      %71 = vector.load %arg3[%c0_36, %c0_37] : memref<2x128xf32, #tpu.memory_space<vmem>>, vector<2x128xf32>
      tpu.vector_store %arg3[%c0_36, %c0_37], %69 {strides = array<i32>} : memref<2x128xf32, #tpu.memory_space<vmem>>, vector<2x128xf32>,
      %72 = arith.index_cast %arg6 : i32 to index
      %c0_38 = arith.constant 0 : index
      %c0_39 = arith.constant 0 : index
      %73 = vector.load %arg5[%72, %c0_38, %c0_39] : memref<18x2x128xf32, #tpu.memory_space<vmem>>, vector<1x2x128xf32>
      %74 = vector.shape_cast %73 : vector<1x2x128xf32> to vector<2x128xf32>
      %75 = vector.shape_cast %69 : vector<2x128xf32> to vector<1x2x128xf32>
      tpu.vector_store %arg5[%72, %c0_38, %c0_39], %75 {strides = array<i32>} : memref<18x2x128xf32, #tpu.memory_space<vmem>>, vector<1x2x128xf32>,
    }
    %c18_i32_11 = arith.constant 18 : i32
    %25 = vector.extract_strided_slice %23 {offsets = [0, 0], sizes = [2, 128], strides = [1, 1]} : vector<2x512xi1> to vector<2x128xi1>
    %c0_i32_12 = arith.constant 0 : i32
    %c18_i32_13 = arith.constant 18 : i32
    %26 = arith.addi %c0_i32_12, %c18_i32_13 : i32
    %c1_i32_14 = arith.constant 1 : i32
    scf.for %arg6 = %c0_i32_12 to %26 step %c1_i32_14  : i32 {
      %c17_i32 = arith.constant 17 : i32
      %27 = arith.subi %c17_i32, %arg6 : i32
      %28 = arith.index_cast %arg6 : i32 to index
      %c0_16 = arith.constant 0 : index
      %c0_17 = arith.constant 0 : index
      %29 = vector.load %arg5[%28, %c0_16, %c0_17] : memref<18x2x128xf32, #tpu.memory_space<vmem>>, vector<1x2x128xf32>
      %30 = vector.shape_cast %29 : vector<1x2x128xf32> to vector<2x128xf32>
      %31 = arith.index_cast %27 : i32 to index
      %c0_18 = arith.constant 0 : index
      %c0_19 = arith.constant 0 : index
      %32 = vector.load %arg5[%31, %c0_18, %c0_19] : memref<18x2x128xf32, #tpu.memory_space<vmem>>, vector<1x2x128xf32>
      %33 = vector.shape_cast %32 : vector<1x2x128xf32> to vector<2x128xf32>
      %34 = arith.select %25, %30, %33 : vector<2x128xi1>, vector<2x128xf32>
      %35 = arith.index_cast %arg6 : i32 to index
      %c0_20 = arith.constant 0 : index
      %c0_21 = arith.constant 0 : index
      %36 = vector.load %arg2[%35, %c0_20, %c0_21] : memref<18x2x128xf32, #tpu.memory_space<vmem>>, vector<1x2x128xf32>
      %37 = vector.shape_cast %36 : vector<1x2x128xf32> to vector<2x128xf32>
      %38 = vector.shape_cast %34 : vector<2x128xf32> to vector<1x2x128xf32>
      tpu.vector_store %arg2[%35, %c0_20, %c0_21], %38 {strides = array<i32>} : memref<18x2x128xf32, #tpu.memory_space<vmem>>, vector<1x2x128xf32>,
    }
    %c18_i32_15 = arith.constant 18 : i32
    return
  }
}

module attributes {stable_mosaic.version = 11 : i64} {
  func.func @matmul_bias_kernel(%arg0: i32, %arg1: i32, %arg2: i32, %arg3: memref<36x128xf32, #tpu.memory_space<vmem>>, %arg4: memref<128x512xf32, #tpu.memory_space<vmem>>, %arg5: memref<1x512xf32, #tpu.memory_space<vmem>>, %arg6: memref<36x512xf32, #tpu.memory_space<vmem>>, %arg7: memref<36x512xf32, #tpu.memory_space<vmem>>) attributes {dimension_semantics = [#tpu.dimension_semantics<parallel>, #tpu.dimension_semantics<parallel>, #tpu.dimension_semantics<arbitrary>], iteration_bounds = array<i64: 1, 1, 1>, scalar_prefetch = 0 : i64, scratch_operands = 1 : i64, tpu.core_type = #tpu.core_type<tc>, window_params = [{transform_indices = @transform_0, window_bounds = array<i64: 36, 128>}, {transform_indices = @transform_1, window_bounds = array<i64: 128, 512>}, {transform_indices = @transform_2, window_bounds = array<i64: 1, 512>}, {transform_indices = @transform_3, window_bounds = array<i64: 36, 512>}]} {
    %c0_i32 = arith.constant 0 : i32
    %0 = arith.cmpi eq, %arg2, %c0_i32 : i32
    %1 = arith.extui %0 : i1 to i32
    %c0_i32_0 = arith.constant 0 : i32
    %2 = arith.cmpi ne, %1, %c0_i32_0 : i32
    scf.if %2 {
      %cst_10 = arith.constant 0.000000e+00 : f32
      %12 = vector.broadcast %cst_10 : f32 to vector<36x512xf32>
      %c0_11 = arith.constant 0 : index
      %c0_12 = arith.constant 0 : index
      %13 = vector.load %arg7[%c0_11, %c0_12] : memref<36x512xf32, #tpu.memory_space<vmem>>, vector<36x512xf32>
      tpu.vector_store %arg7[%c0_11, %c0_12], %12 {strides = array<i32>} : memref<36x512xf32, #tpu.memory_space<vmem>>, vector<36x512xf32>,
    } else {
    }
    %c0 = arith.constant 0 : index
    %c0_1 = arith.constant 0 : index
    %3 = vector.load %arg7[%c0, %c0_1] : memref<36x512xf32, #tpu.memory_space<vmem>>, vector<36x512xf32>
    %c0_2 = arith.constant 0 : index
    %c0_3 = arith.constant 0 : index
    %4 = vector.load %arg3[%c0_2, %c0_3] : memref<36x128xf32, #tpu.memory_space<vmem>>, vector<36x128xf32>
    %c0_4 = arith.constant 0 : index
    %c0_5 = arith.constant 0 : index
    %5 = vector.load %arg4[%c0_4, %c0_5] : memref<128x512xf32, #tpu.memory_space<vmem>>, vector<128x512xf32>
    %cst = arith.constant dense<0.000000e+00> : vector<36x512xf32>
    %6 = tpu.matmul %4, %5, %cst {dimension_numbers = #tpu.dot_dimension_numbers<[1], [0], [0], [1], [0, 0, 1, 1], [], []>} : vector<36x128xf32>, vector<128x512xf32>, vector<36x512xf32> -> vector<36x512xf32>
    %7 = arith.addf %3, %6 : vector<36x512xf32>
    %c0_6 = arith.constant 0 : index
    %c0_7 = arith.constant 0 : index
    %8 = vector.load %arg7[%c0_6, %c0_7] : memref<36x512xf32, #tpu.memory_space<vmem>>, vector<36x512xf32>
    tpu.vector_store %arg7[%c0_6, %c0_7], %7 {strides = array<i32>} : memref<36x512xf32, #tpu.memory_space<vmem>>, vector<36x512xf32>,
    %c0_i32_8 = arith.constant 0 : i32
    %9 = arith.cmpi eq, %arg2, %c0_i32_8 : i32
    %10 = arith.extui %9 : i1 to i32
    %c0_i32_9 = arith.constant 0 : i32
    %11 = arith.cmpi ne, %10, %c0_i32_9 : i32
    scf.if %11 {
      %c0_10 = arith.constant 0 : index
      %c0_11 = arith.constant 0 : index
      %12 = vector.load %arg7[%c0_10, %c0_11] : memref<36x512xf32, #tpu.memory_space<vmem>>, vector<36x512xf32>
      %c0_12 = arith.constant 0 : index
      %c0_13 = arith.constant 0 : index
      %13 = vector.load %arg5[%c0_12, %c0_13] : memref<1x512xf32, #tpu.memory_space<vmem>>, vector<1x512xf32>
      %14 = vector.broadcast %13 : vector<1x512xf32> to vector<36x512xf32>
      %15 = arith.addf %12, %14 : vector<36x512xf32>
      %c0_14 = arith.constant 0 : index
      %c0_15 = arith.constant 0 : index
      %16 = vector.load %arg6[%c0_14, %c0_15] : memref<36x512xf32, #tpu.memory_space<vmem>>, vector<36x512xf32>
      tpu.vector_store %arg6[%c0_14, %c0_15], %15 {strides = array<i32>} : memref<36x512xf32, #tpu.memory_space<vmem>>, vector<36x512xf32>,
    } else {
    }
    return
  }
  func.func @transform_0(%arg0: i32, %arg1: i32, %arg2: i32) -> (i32, i32) {
    %c0_i32 = arith.constant 0 : i32
    return %arg0, %arg2 : i32, i32
  }
  func.func @transform_1(%arg0: i32, %arg1: i32, %arg2: i32) -> (i32, i32) {
    %c0_i32 = arith.constant 0 : i32
    return %arg2, %arg1 : i32, i32
  }
  func.func @transform_2(%arg0: i32, %arg1: i32, %arg2: i32) -> (i32, i32) {
    %c0_i32 = arith.constant 0 : i32
    %c0_i32_0 = arith.constant 0 : i32
    return %c0_i32, %arg1 : i32, i32
  }
  func.func @transform_3(%arg0: i32, %arg1: i32, %arg2: i32) -> (i32, i32) {
    %c0_i32 = arith.constant 0 : i32
    return %arg0, %arg1 : i32, i32
  }
}

module attributes {stable_mosaic.version = 11 : i64} {
  func.func @lstm_fc_kernel(%arg0: memref<18x2x512xf32, #tpu.memory_space<vmem>>, %arg1: memref<128x512xf32, #tpu.memory_space<vmem>>, %arg2: memref<128x1xf32, #tpu.memory_space<vmem>>, %arg3: memref<1x1xf32, #tpu.memory_space<vmem>>, %arg4: memref<2x1xf32, #tpu.memory_space<vmem>>, %arg5: memref<2x128xf32, #tpu.memory_space<vmem>>, %arg6: memref<2x128xf32, #tpu.memory_space<vmem>>, %arg7: memref<18x2x128xf32, #tpu.memory_space<vmem>>) attributes {dimension_semantics = [], scalar_prefetch = 0 : i64, scratch_operands = 3 : i64, tpu.core_type = #tpu.core_type<tc>} {
    %cst = arith.constant 0.000000e+00 : f32
    %0 = vector.broadcast %cst : f32 to vector<2x128xf32>
    %c0 = arith.constant 0 : index
    %c0_0 = arith.constant 0 : index
    %1 = vector.load %arg5[%c0, %c0_0] : memref<2x128xf32, #tpu.memory_space<vmem>>, vector<2x128xf32>
    tpu.vector_store %arg5[%c0, %c0_0], %0 {strides = array<i32>} : memref<2x128xf32, #tpu.memory_space<vmem>>, vector<2x128xf32>,
    %cst_1 = arith.constant 0.000000e+00 : f32
    %2 = vector.broadcast %cst_1 : f32 to vector<2x128xf32>
    %c0_2 = arith.constant 0 : index
    %c0_3 = arith.constant 0 : index
    %3 = vector.load %arg6[%c0_2, %c0_3] : memref<2x128xf32, #tpu.memory_space<vmem>>, vector<2x128xf32>
    tpu.vector_store %arg6[%c0_2, %c0_3], %2 {strides = array<i32>} : memref<2x128xf32, #tpu.memory_space<vmem>>, vector<2x128xf32>,
    %c0_4 = arith.constant 0 : index
    %c0_5 = arith.constant 0 : index
    %4 = vector.load %arg1[%c0_4, %c0_5] : memref<128x512xf32, #tpu.memory_space<vmem>>, vector<128x512xf32>
    %5 = tpu.iota {dimensions = array<i32: 1>} : vector<2x512xi32>
    %c128_i32 = arith.constant 128 : i32
    %c0_i32 = arith.constant 0 : i32
    %6 = arith.cmpi eq, %c128_i32, %c0_i32 : i32
    %c1_i32 = arith.constant 1 : i32
    %7 = arith.select %6, %c1_i32, %c128_i32 : i32
    %8 = vector.broadcast %7 : i32 to vector<2x512xi32>
    %9 = arith.remsi %5, %8 : vector<2x512xi32>
    %c0_i32_6 = arith.constant 0 : i32
    %10 = vector.broadcast %c0_i32_6 : i32 to vector<2x512xi32>
    %11 = arith.cmpi ne, %9, %10 : vector<2x512xi32>
    %c0_i32_7 = arith.constant 0 : i32
    %12 = vector.broadcast %c0_i32_7 : i32 to vector<2x512xi32>
    %13 = arith.cmpi slt, %9, %12 : vector<2x512xi32>
    %c0_i32_8 = arith.constant 0 : i32
    %14 = arith.cmpi slt, %7, %c0_i32_8 : i32
    %15 = vector.broadcast %14 : i1 to vector<2x512xi1>
    %16 = vector.broadcast %15 : vector<2x512xi1> to vector<2x512xi1>
    %17 = arith.xori %13, %16 : vector<2x512xi1>
    %18 = arith.andi %17, %11 : vector<2x512xi1>
    %19 = vector.broadcast %7 : i32 to vector<2x512xi32>
    %20 = arith.addi %9, %19 : vector<2x512xi32>
    %21 = arith.select %18, %20, %9 : vector<2x512xi1>, vector<2x512xi32>
    %c64_i32 = arith.constant 64 : i32
    %22 = vector.broadcast %c64_i32 : i32 to vector<2x512xi32>
    %23 = arith.cmpi slt, %21, %22 : vector<2x512xi32>
    %c0_i32_9 = arith.constant 0 : i32
    %c18_i32 = arith.constant 18 : i32
    %24 = arith.addi %c0_i32_9, %c18_i32 : i32
    %c1_i32_10 = arith.constant 1 : i32
    scf.for %arg8 = %c0_i32_9 to %24 step %c1_i32_10  : i32 {
      %c17_i32 = arith.constant 17 : i32
      %44 = arith.subi %c17_i32, %arg8 : i32
      %45 = arith.index_cast %arg8 : i32 to index
      %c0_27 = arith.constant 0 : index
      %c0_28 = arith.constant 0 : index
      %46 = vector.load %arg0[%45, %c0_27, %c0_28] : memref<18x2x512xf32, #tpu.memory_space<vmem>>, vector<1x2x512xf32>
      %47 = vector.shape_cast %46 : vector<1x2x512xf32> to vector<2x512xf32>
      %48 = arith.index_cast %44 : i32 to index
      %c0_29 = arith.constant 0 : index
      %c0_30 = arith.constant 0 : index
      %49 = vector.load %arg0[%48, %c0_29, %c0_30] : memref<18x2x512xf32, #tpu.memory_space<vmem>>, vector<1x2x512xf32>
      %50 = vector.shape_cast %49 : vector<1x2x512xf32> to vector<2x512xf32>
      %51 = arith.select %23, %47, %50 : vector<2x512xi1>, vector<2x512xf32>
      %c0_31 = arith.constant 0 : index
      %c0_32 = arith.constant 0 : index
      %52 = vector.load %arg5[%c0_31, %c0_32] : memref<2x128xf32, #tpu.memory_space<vmem>>, vector<2x128xf32>
      %cst_33 = arith.constant dense<0.000000e+00> : vector<2x512xf32>
      %53 = tpu.matmul %52, %4, %cst_33 {dimension_numbers = #tpu.dot_dimension_numbers<[1], [0], [0], [1], [0, 0, 1, 1], [], []>} : vector<2x128xf32>, vector<128x512xf32>, vector<2x512xf32> -> vector<2x512xf32>
      %54 = arith.addf %51, %53 : vector<2x512xf32>
      %55 = vector.extract_strided_slice %54 {offsets = [0, 0], sizes = [2, 128], strides = [1, 1]} : vector<2x512xf32> to vector<2x128xf32>
      %cst_34 = arith.constant 0.000000e+00 : f32
      %56 = vector.broadcast %cst_34 : f32 to vector<2x128xf32>
      %57 = arith.subf %56, %55 : vector<2x128xf32>
      %58 = math.exp %57 : vector<2x128xf32>
      %cst_35 = arith.constant 1.000000e+00 : f32
      %59 = vector.broadcast %cst_35 : f32 to vector<2x128xf32>
      %60 = arith.addf %59, %58 : vector<2x128xf32>
      %cst_36 = arith.constant 1.000000e+00 : f32
      %61 = vector.broadcast %cst_36 : f32 to vector<2x128xf32>
      %62 = arith.divf %61, %60 : vector<2x128xf32>
      %63 = vector.extract_strided_slice %54 {offsets = [0, 128], sizes = [2, 128], strides = [1, 1]} : vector<2x512xf32> to vector<2x128xf32>
      %cst_37 = arith.constant 0.000000e+00 : f32
      %64 = vector.broadcast %cst_37 : f32 to vector<2x128xf32>
      %65 = arith.subf %64, %63 : vector<2x128xf32>
      %66 = math.exp %65 : vector<2x128xf32>
      %cst_38 = arith.constant 1.000000e+00 : f32
      %67 = vector.broadcast %cst_38 : f32 to vector<2x128xf32>
      %68 = arith.addf %67, %66 : vector<2x128xf32>
      %cst_39 = arith.constant 1.000000e+00 : f32
      %69 = vector.broadcast %cst_39 : f32 to vector<2x128xf32>
      %70 = arith.divf %69, %68 : vector<2x128xf32>
      %71 = vector.extract_strided_slice %54 {offsets = [0, 256], sizes = [2, 128], strides = [1, 1]} : vector<2x512xf32> to vector<2x128xf32>
      %72 = math.tanh %71 : vector<2x128xf32>
      %73 = vector.extract_strided_slice %54 {offsets = [0, 384], sizes = [2, 128], strides = [1, 1]} : vector<2x512xf32> to vector<2x128xf32>
      %cst_40 = arith.constant 0.000000e+00 : f32
      %74 = vector.broadcast %cst_40 : f32 to vector<2x128xf32>
      %75 = arith.subf %74, %73 : vector<2x128xf32>
      %76 = math.exp %75 : vector<2x128xf32>
      %cst_41 = arith.constant 1.000000e+00 : f32
      %77 = vector.broadcast %cst_41 : f32 to vector<2x128xf32>
      %78 = arith.addf %77, %76 : vector<2x128xf32>
      %cst_42 = arith.constant 1.000000e+00 : f32
      %79 = vector.broadcast %cst_42 : f32 to vector<2x128xf32>
      %80 = arith.divf %79, %78 : vector<2x128xf32>
      %c0_43 = arith.constant 0 : index
      %c0_44 = arith.constant 0 : index
      %81 = vector.load %arg6[%c0_43, %c0_44] : memref<2x128xf32, #tpu.memory_space<vmem>>, vector<2x128xf32>
      %82 = arith.mulf %70, %81 : vector<2x128xf32>
      %83 = arith.mulf %62, %72 : vector<2x128xf32>
      %84 = arith.addf %82, %83 : vector<2x128xf32>
      %85 = math.tanh %84 : vector<2x128xf32>
      %86 = arith.mulf %80, %85 : vector<2x128xf32>
      %c0_45 = arith.constant 0 : index
      %c0_46 = arith.constant 0 : index
      %87 = vector.load %arg6[%c0_45, %c0_46] : memref<2x128xf32, #tpu.memory_space<vmem>>, vector<2x128xf32>
      tpu.vector_store %arg6[%c0_45, %c0_46], %84 {strides = array<i32>} : memref<2x128xf32, #tpu.memory_space<vmem>>, vector<2x128xf32>,
      %c0_47 = arith.constant 0 : index
      %c0_48 = arith.constant 0 : index
      %88 = vector.load %arg5[%c0_47, %c0_48] : memref<2x128xf32, #tpu.memory_space<vmem>>, vector<2x128xf32>
      tpu.vector_store %arg5[%c0_47, %c0_48], %86 {strides = array<i32>} : memref<2x128xf32, #tpu.memory_space<vmem>>, vector<2x128xf32>,
      %89 = arith.index_cast %arg8 : i32 to index
      %c0_49 = arith.constant 0 : index
      %c0_50 = arith.constant 0 : index
      %90 = vector.load %arg7[%89, %c0_49, %c0_50] : memref<18x2x128xf32, #tpu.memory_space<vmem>>, vector<1x2x128xf32>
      %91 = vector.shape_cast %90 : vector<1x2x128xf32> to vector<2x128xf32>
      %92 = vector.shape_cast %86 : vector<2x128xf32> to vector<1x2x128xf32>
      tpu.vector_store %arg7[%89, %c0_49, %c0_50], %92 {strides = array<i32>} : memref<18x2x128xf32, #tpu.memory_space<vmem>>, vector<1x2x128xf32>,
    }
    %c18_i32_11 = arith.constant 18 : i32
    %25 = vector.extract_strided_slice %23 {offsets = [0, 0], sizes = [2, 128], strides = [1, 1]} : vector<2x512xi1> to vector<2x128xi1>
    %c17 = arith.constant 17 : index
    %c0_12 = arith.constant 0 : index
    %c0_13 = arith.constant 0 : index
    %26 = vector.load %arg7[%c17, %c0_12, %c0_13] : memref<18x2x128xf32, #tpu.memory_space<vmem>>, vector<1x2x128xf32>
    %27 = vector.shape_cast %26 : vector<1x2x128xf32> to vector<2x128xf32>
    %c0_14 = arith.constant 0 : index
    %c0_15 = arith.constant 0 : index
    %c0_16 = arith.constant 0 : index
    %28 = vector.load %arg7[%c0_14, %c0_15, %c0_16] : memref<18x2x128xf32, #tpu.memory_space<vmem>>, vector<1x2x128xf32>
    %29 = vector.shape_cast %28 : vector<1x2x128xf32> to vector<2x128xf32>
    %30 = arith.select %25, %27, %29 : vector<2x128xi1>, vector<2x128xf32>
    %c0_17 = arith.constant 0 : index
    %c0_18 = arith.constant 0 : index
    %31 = vector.load %arg2[%c0_17, %c0_18] : memref<128x1xf32, #tpu.memory_space<vmem>>, vector<128x1xf32>
    %cst_19 = arith.constant dense<0.000000e+00> : vector<2x1xf32>
    %32 = tpu.matmul %30, %31, %cst_19 {dimension_numbers = #tpu.dot_dimension_numbers<[1], [0], [0], [1], [0, 0, 1, 1], [], []>} : vector<2x128xf32>, vector<128x1xf32>, vector<2x1xf32> -> vector<2x1xf32>
    %c0_20 = arith.constant 0 : index
    %c0_21 = arith.constant 0 : index
    %33 = vector.load %arg3[%c0_20, %c0_21] : memref<1x1xf32, #tpu.memory_space<vmem>>, vector<1x1xf32>
    %34 = vector.broadcast %33 : vector<1x1xf32> to vector<2x1xf32>
    %35 = arith.addf %32, %34 : vector<2x1xf32>
    %cst_22 = arith.constant 0.000000e+00 : f32
    %36 = vector.broadcast %cst_22 : f32 to vector<2x1xf32>
    %37 = arith.subf %36, %35 : vector<2x1xf32>
    %38 = math.exp %37 : vector<2x1xf32>
    %cst_23 = arith.constant 1.000000e+00 : f32
    %39 = vector.broadcast %cst_23 : f32 to vector<2x1xf32>
    %40 = arith.addf %39, %38 : vector<2x1xf32>
    %cst_24 = arith.constant 1.000000e+00 : f32
    %41 = vector.broadcast %cst_24 : f32 to vector<2x1xf32>
    %42 = arith.divf %41, %40 : vector<2x1xf32>
    %c0_25 = arith.constant 0 : index
    %c0_26 = arith.constant 0 : index
    %43 = vector.load %arg4[%c0_25, %c0_26] : memref<2x1xf32, #tpu.memory_space<vmem>>, vector<2x1xf32>
    tpu.vector_store %arg4[%c0_25, %c0_26], %42 {strides = array<i32>} : memref<2x1xf32, #tpu.memory_space<vmem>>, vector<2x1xf32>,
    return
  }
}

</mosaic_0001>

<llo_original>
// kernel: crnn_forward.9
$region0: #{crnn_forward.9}
  #allocation0 [shape = 'u32[]', space=smem, size = 0x4, offset = 0x4, fixed_abs, tag = 'smem constant byte address 0x4 - core index']
  #allocation1 [shape = 'u32[72,128]{1,0:T(1,128)}', space=vmem, size = 0x9000, scoped, tag = 'internal scratch']
  #allocation2 [shape = 'f32[18,64]{1,0:T(8,128)}', space=vmem, size = 0x3000, scoped, tag = 'scratch operand']
  %s0 = inlined_call_operand.vmem [shape: f32[2,25,32], index: 0, kind: input, shape index: {}]
  %s1 = inlined_call_operand.vmem [shape: f32[8,32,64], index: 1, kind: input, shape index: {}]
  %s2 = inlined_call_operand.vmem [shape: f32[1,64], index: 2, kind: input, shape index: {}]
  %s3 = inlined_call_operand.vmem [shape: f32[2,18,64], index: 3, kind: output, shape index: {}]
  %s4 = sld [smem:[#allocation0]]
  $region53: #{crnn_forward.9} parent=0
    _
  %s6 = ssub.s32 1, %s4
  %s7 = scalar_select 0, %s6, %s4
  loop: start=0, step=1, limit=4
  $region2: #{crnn_forward.9} parent=0 // loop_pre_header
    _
  $region3: #{crnn_forward.9} parent=0 // loop_header
    %s9 = sphi 0, %s13
    %p10 = scmp.ge.s32.totalorder %s9, 4
    %s16 = sphi 0, %s28
    %s17 = sphi 0, %s24
    %s18 = sphi 0, %s16
    %s19 = sphi 0, %s17
    %s20 = sphi 0, %s18
    %s21 = sphi 0, %s19
    %s31 = sphi 0, %s33
    %s34 = sphi 0, %s31
    %s35 = sphi 0, %s34
    %s51 = sphi 0, %s35
    %s57 = sphi 0, %s59
    %s60 = sphi 0, %s57
    %s61 = sphi 0, %s60
    %s77 = sphi 0, %s61
    %s81 = sphi 0, %s81
    %s83 = sphi 0, %s81
    %s84 = sphi 0, %s83
    %s98 = sphi 0, %s84
    %s104 = sphi 0, %s106
    %s107 = sphi 0, %s104
    %s108 = sphi 0, %s107
    %s124 = sphi 0, %s108
  $region4: #{crnn_forward.9} parent=0 // loop_header_branch
    %12 = sbr.rel (%p10) target = $region8
  $region5: #{crnn_forward.9} parent=0 // loop_body
    %s14 = ssub.s32 %s9, 1
    %s15 = ssub.s32 %s9, 2
    %s22 = sadd.s32 1, %s17
    %p23 = scmp.ge.s32.totalorder %s22, 1
    %s24 = scalar_select %p23, 0, %s22
    %s25 = sadd.s32 1, %s16
    %s26 = scalar_select %p23, %s25, %s16
    %p27 = scmp.ge.s32.totalorder %s26, 2
    %s28 = scalar_select %p27, 0, %s26
    %s29 = ssub.s32 %s16, %s28
    %p30 = scmp.eq.s32.totalorder %s29, 0
    %s32 = sadd.s32 %s31, 1
    %s33 = scalar_select %p30, %s31, %s32
    %p36 = pneg %p30
    %p37 = scmp.eq.s32.totalorder %s9, 1
    %p38 = por %p36, %p37
    %p39 = scmp.ne.s32.totalorder %s31, %s34
    %p40 = scmp.eq.s32.totalorder %s9, 0
    %p41 = por %p39, %p40
    %p42 = scmp.ne.s32.totalorder %s31, %s34
    %p43 = scmp.eq.s32.totalorder %s14, 1
    %p44 = por %p42, %p43
    %p45 = scmp.ne.s32.totalorder %s34, %s35
    %p46 = scmp.eq.s32.totalorder %s14, 0
    %p47 = por %p45, %p46
    %p48 = scmp.ne.s32.totalorder %s34, %s35
    %p49 = scmp.eq.s32.totalorder %s15, 1
    %p50 = por %p48, %p49
    %p52 = scmp.ne.s32.totalorder %s35, %s51
    %p53 = scmp.eq.s32.totalorder %s15, 0
    %p54 = por %p52, %p53
    %s55 = ssub.s32 %s17, %s24
    %p56 = scmp.eq.s32.totalorder %s55, 0
    %s58 = sadd.s32 %s57, 1
    %s59 = scalar_select %p56, %s57, %s58
    %p62 = pneg %p56
    %p63 = scmp.eq.s32.totalorder %s9, 1
    %p64 = por %p62, %p63
    %p65 = scmp.ne.s32.totalorder %s57, %s60
    %p66 = scmp.eq.s32.totalorder %s9, 0
    %p67 = por %p65, %p66
    %p68 = scmp.ne.s32.totalorder %s57, %s60
    %p69 = scmp.eq.s32.totalorder %s14, 1
    %p70 = por %p68, %p69
    %p71 = scmp.ne.s32.totalorder %s60, %s61
    %p72 = scmp.eq.s32.totalorder %s14, 0
    %p73 = por %p71, %p72
    %p74 = scmp.ne.s32.totalorder %s60, %s61
    %p75 = scmp.eq.s32.totalorder %s15, 1
    %p76 = por %p74, %p75
    %p78 = scmp.ne.s32.totalorder %s61, %s77
    %p79 = scmp.eq.s32.totalorder %s15, 0
    %p80 = por %p78, %p79
    %s82 = sadd.s32 %s81, 1
    %p85 = scmp.eq.s32.totalorder %s9, 1
    %p86 = scmp.ne.s32.totalorder %s81, %s83
    %p87 = scmp.eq.s32.totalorder %s9, 0
    %p88 = por %p86, %p87
    %p89 = scmp.ne.s32.totalorder %s81, %s83
    %p90 = scmp.eq.s32.totalorder %s14, 1
    %p91 = por %p89, %p90
    %p92 = scmp.ne.s32.totalorder %s83, %s84
    %p93 = scmp.eq.s32.totalorder %s14, 0
    %p94 = por %p92, %p93
    %p95 = scmp.ne.s32.totalorder %s83, %s84
    %p96 = scmp.eq.s32.totalorder %s15, 1
    %p97 = por %p95, %p96
    %p99 = scmp.ne.s32.totalorder %s84, %s98
    %p100 = scmp.eq.s32.totalorder %s15, 0
    %p101 = por %p99, %p100
    %s102 = ssub.s32 %s16, %s28
    %p103 = scmp.eq.s32.totalorder %s102, 0
    %s105 = sadd.s32 %s104, 1
    %s106 = scalar_select %p103, %s104, %s105
    %p109 = pneg %p103
    %p110 = scmp.eq.s32.totalorder %s9, 1
    %p111 = por %p109, %p110
    %p112 = scmp.ne.s32.totalorder %s104, %s107
    %p113 = scmp.eq.s32.totalorder %s9, 0
    %p114 = por %p112, %p113
    %p115 = scmp.ne.s32.totalorder %s104, %s107
    %p116 = scmp.eq.s32.totalorder %s14, 1
    %p117 = por %p115, %p116
    %p118 = scmp.ne.s32.totalorder %s107, %s108
    %p119 = scmp.eq.s32.totalorder %s14, 0
    %p120 = por %p118, %p119
    %p121 = scmp.ne.s32.totalorder %s107, %s108
    %p122 = scmp.eq.s32.totalorder %s15, 1
    %p123 = por %p121, %p122
    %p125 = scmp.ne.s32.totalorder %s108, %s124
    %p126 = scmp.eq.s32.totalorder %s15, 0
    %p127 = por %p125, %p126
    %p128 = scmp.le.s32.totalorder 1, %s9
    %p129 = scmp.lt.s32.totalorder %s9, 3
    %p130 = pnand %p128, %p129
    %p131 = pneg %p130
    // Predicated region
    $region9: #{crnn_forward.9} parent=5 // pred_check
      _
    $region10: #{crnn_forward.9} parent=5 // pred_check_branch
      %133 = sbr.rel (%p130) target = $region12
    $region11: #{crnn_forward.9} parent=5 // pred_region
      %s134 = ssub.s32 %s9, 1
      // Predicated region
      $region13: #{crnn_forward.9} parent=11 // pred_check
        %p135 = pneg %p73
      $region14: #{crnn_forward.9} parent=11 // pred_check_branch
        %137 = sbr.rel (%p135) target = $region16
      $region15: #{crnn_forward.9} parent=11 // pred_region
        %s138 = smul.u32 8, %s19
        %p139 = scmp.lt.s32.totalorder %s138, 7
        %s140 = scalar_select %p139, %s138, 7
        %s141 = smul.addr %s140, 4
        %s142 = smul.addr %s141, 8
        %s143 = scalar_lea.vmem %s1, %s142
        %s144 = smul.u32 8, %s19
      $region16: #{crnn_forward.9} parent=11 // pred_fallthru
        _
      // Predicated region
      $region17: #{crnn_forward.9} parent=11 // pred_check
        %p145 = pneg %p94
      $region18: #{crnn_forward.9} parent=11 // pred_check_branch
        %147 = sbr.rel (%p145) target = $region20
      $region19: #{crnn_forward.9} parent=11 // pred_region
        _
      $region20: #{crnn_forward.9} parent=11 // pred_fallthru
        _
    $region12: #{crnn_forward.9} parent=5 // pred_fallthru
      _
    %p148 = scmp.lt.s32.totalorder %s9, 2
    // Predicated region
    $region21: #{crnn_forward.9} parent=5 // pred_check
      %p149 = pneg %p148
    $region22: #{crnn_forward.9} parent=5 // pred_check_branch
      %151 = sbr.rel (%p149) target = $region24
    $region23: #{crnn_forward.9} parent=5 // pred_region
      // Predicated region
      $region25: #{crnn_forward.9} parent=23 // pred_check
        %p152 = pneg %p41
      $region26: #{crnn_forward.9} parent=23 // pred_check_branch
        %154 = sbr.rel (%p152) target = $region28
      $region27: #{crnn_forward.9} parent=23 // pred_region
        %p155 = scmp.lt.s32.totalorder %s16, 1
        %s156 = scalar_select %p155, %s16, 1
        %s157 = smul.addr %s156, 4
        %s158 = smul.addr %s157, 8
        %s159 = scalar_lea.vmem %s0, %s158
      $region28: #{crnn_forward.9} parent=23 // pred_fallthru
        _
    $region24: #{crnn_forward.9} parent=5 // pred_fallthru
      _
    %p160 = scmp.le.s32.totalorder 1, %s9
    %p161 = scmp.lt.s32.totalorder %s9, 3
    %p162 = pnand %p160, %p161
    %p163 = pneg %p162
    // Predicated region
    $region29: #{crnn_forward.9} parent=5 // pred_check
      _
    $region30: #{crnn_forward.9} parent=5 // pred_check_branch
      %165 = sbr.rel (%p162) target = $region32
    $region31: #{crnn_forward.9} parent=5 // pred_region
      %s166 = ssub.s32 %s9, 1
      %p167 = scmp.lt.s32.totalorder %s18, 1
      %s168 = scalar_select %p167, %s18, 1
      %s169 = smul.addr %s168, 4
      %s170 = smul.addr %s169, 8
      %s171 = scalar_lea.vmem %s0, %s170
      %p172 = pneg %p47
      %p173 = pneg %p44
      %s174 = smul.u32 8, %s19
      %p175 = scmp.lt.s32.totalorder %s174, 7
      %s176 = scalar_select %p175, %s174, 7
      %s177 = smul.addr %s176, 4
      %s178 = smul.addr %s177, 8
      %s179 = scalar_lea.vmem %s1, %s178
      %p180 = pneg %p73
      %p181 = pneg %p70
      %p182 = pneg %p94
      %p183 = pneg %p91
      %p184 = pneg %p120
      %p185 = pneg %p117
      %p186 = scmp.lt.s32.totalorder %s18, 1
      %s187 = scalar_select %p186, %s18, 1
      %s188 = smul.addr %s187, 3
      %s189 = smul.addr %s188, 8
      %s190 = scalar_lea.vmem %s3, %s189
      %p191 = scmp.lt.s32.totalorder %s18, 1
      %s192 = scalar_select %p191, %s18, 1
      %s193 = smul.addr %s192, 4
      %s194 = smul.addr %s193, 8
      %s195 = scalar_lea.vmem %s0, %s194
      %s196 = smul.u32 8, %s19
      %p197 = scmp.lt.s32.totalorder %s196, 7
      %s198 = scalar_select %p197, %s196, 7
      %s199 = smul.addr %s198, 4
      %s200 = smul.addr %s199, 8
      %s201 = scalar_lea.vmem %s1, %s200
      %s202 = smul.u32 8, %s19
      %p203 = scmp.lt.s32.totalorder %s18, 1
      %s204 = scalar_select %p203, %s18, 1
      %s205 = smul.addr %s204, 3
      %s206 = smul.addr %s205, 8
      %s207 = scalar_lea.vmem %s3, %s206
      %p208 = scmp.eq.s32.totalorder %s19, 0
      // Predicated region
      $region33: #{crnn_forward.9} parent=31 // pred_check
        %p209 = pneg %p208
      $region34: #{crnn_forward.9} parent=31 // pred_check_branch
        %211 = sbr.rel (%p209) target = $region36
      $region35: #{crnn_forward.9} parent=31 // pred_region
        %vm212 = vcmask 523264
        %213 = vst.msk [vmem:[#allocation2] sm:$0xff] %vm212, 0.0
        %214 = vst.msk [vmem:[#allocation2 + $0x8] sm:$0xff] %vm212, 0.0
        %vm215 = vcmask 517120
        %216 = vst.msk [vmem:[#allocation2 + $0x10] sm:$0x3] %vm215, 0.0
      $region36: #{crnn_forward.9} parent=31 // pred_fallthru
        _
      %v217 = vld [vmem:[#allocation2] sm:$0xff]
      %v218 = vld [vmem:[#allocation2 + $0x8] sm:$0xff]
      %v219 = vld [vmem:[#allocation2 + $0x10] sm:$0x3]
      %s220 = smul.u32 %s19, 8
      %s221 = scalar_lea.vmem %s195, %s220
      %v222 = vld [vmem:[%s221] sm:$0xff]
      %v223 = vld [vmem:[%s221 + $0x8] sm:$0xff]
      %v224 = vld [vmem:[%s221 + $0x10] sm:$0x3]
      %v225 = vld [vmem:[%s201] sm:$0xff]
      %v226 = vld [vmem:[%s201 + $0x8] sm:$0xff]
      %v227 = vld [vmem:[%s201 + $0x10] sm:$0xff]
      %v228 = vld [vmem:[%s201 + $0x18] sm:$0xff]
      %vm229 = vcmask 261120
      %v231 = vsel %vm229, %v222, 0
      %v234 = vsel %vm229, %v223, 0
      %v237 = vsel %vm229, %v224, 0
      %239 = vmatpush.msra.mxu0 0.0
      %240 = vmatpush.msra.mxu0 0.0
      %241 = vmatpush.msra.mxu0 0.0
      %242 = vmatpush.msra.mxu0 0.0
      %243 = vmatpush.msra.mxu0 0.0
      %244 = vmatpush.msra.mxu0 0.0
      %245 = vmatpush.msra.mxu0 0.0
      %246 = vmatpush.msra.mxu0 0.0
      %247 = vmatpush.msra.mxu0 0.0
      %248 = vmatpush.msra.mxu0 0.0
      %249 = vmatpush.msra.mxu0 0.0
      %250 = vmatpush.msra.mxu0 0.0
      %251 = vmatpush.msra.mxu0 %v228
      %252 = vmatpush.msra.mxu0 %v227
      %253 = vmatpush.msra.mxu0 %v226
      %254 = vmatpush.msra.mxu0 %v225
      %255 = vmatmul.f32.gmra.mxu0 %v231
      %v256 = vpop.f32.mrf.mxu0
      %v257 = vadd.f32 0.0, %v256
      %258 = vmatmul.f32.gmra.mxu0 %v234
      %v259 = vpop.f32.mrf.mxu0
      %v260 = vadd.f32 0.0, %v259
      %261 = vmatmul.f32.gmra.mxu0 %v237
      %v262 = vpop.f32.mrf.mxu0
      %v263 = vadd.f32 0.0, %v262
      %264 = vdwg.mxu0
      %v265 = vadd.f32 %v217, %v257
      %v266 = vadd.f32 %v218, %v260
      %v267 = vadd.f32 %v219, %v263
      %s268 = sadd.s32 %s220, 1
      %s269 = scalar_lea.vmem %s195, %s268
      %v270 = vld [vmem:[%s269] sm:$0xff]
      %v271 = vld [vmem:[%s269 + $0x8] sm:$0xff]
      %v272 = vld [vmem:[%s269 + $0x10] sm:$0x3]
      %s273 = scalar_lea.vmem %s201, 32
      %v274 = vld [vmem:[%s273] sm:$0xff]
      %v275 = vld [vmem:[%s273 + $0x8] sm:$0xff]
      %v276 = vld [vmem:[%s273 + $0x10] sm:$0xff]
      %v277 = vld [vmem:[%s273 + $0x18] sm:$0xff]
      %v279 = vsel %vm229, %v270, 0
      %v282 = vsel %vm229, %v271, 0
      %v285 = vsel %vm229, %v272, 0
      %287 = vmatpush.msra.mxu0 0.0
      %288 = vmatpush.msra.mxu0 0.0
      %289 = vmatpush.msra.mxu0 0.0
      %290 = vmatpush.msra.mxu0 0.0
      %291 = vmatpush.msra.mxu0 0.0
      %292 = vmatpush.msra.mxu0 0.0
      %293 = vmatpush.msra.mxu0 0.0
      %294 = vmatpush.msra.mxu0 0.0
      %295 = vmatpush.msra.mxu0 0.0
      %296 = vmatpush.msra.mxu0 0.0
      %297 = vmatpush.msra.mxu0 0.0
      %298 = vmatpush.msra.mxu0 0.0
      %299 = vmatpush.msra.mxu0 %v277
      %300 = vmatpush.msra.mxu0 %v276
      %301 = vmatpush.msra.mxu0 %v275
      %302 = vmatpush.msra.mxu0 %v274
      %303 = vmatmul.f32.gmra.mxu0 %v279
      %v304 = vpop.f32.mrf.mxu0
      %v305 = vadd.f32 0.0, %v304
      %306 = vmatmul.f32.gmra.mxu0 %v282
      %v307 = vpop.f32.mrf.mxu0
      %v308 = vadd.f32 0.0, %v307
      %309 = vmatmul.f32.gmra.mxu0 %v285
      %v310 = vpop.f32.mrf.mxu0
      %v311 = vadd.f32 0.0, %v310
      %312 = vdwg.mxu0
      %v313 = vadd.f32 %v265, %v305
      %v314 = vadd.f32 %v266, %v308
      %v315 = vadd.f32 %v267, %v311
      %s316 = sadd.s32 %s220, 2
      %s317 = scalar_lea.vmem %s195, %s316
      %v318 = vld [vmem:[%s317] sm:$0xff]
      %v319 = vld [vmem:[%s317 + $0x8] sm:$0xff]
      %v320 = vld [vmem:[%s317 + $0x10] sm:$0x3]
      %s321 = scalar_lea.vmem %s201, 64
      %v322 = vld [vmem:[%s321] sm:$0xff]
      %v323 = vld [vmem:[%s321 + $0x8] sm:$0xff]
      %v324 = vld [vmem:[%s321 + $0x10] sm:$0xff]
      %v325 = vld [vmem:[%s321 + $0x18] sm:$0xff]
      %v327 = vsel %vm229, %v318, 0
      %v330 = vsel %vm229, %v319, 0
      %v333 = vsel %vm229, %v320, 0
      %335 = vmatpush.msra.mxu0 0.0
      %336 = vmatpush.msra.mxu0 0.0
      %337 = vmatpush.msra.mxu0 0.0
      %338 = vmatpush.msra.mxu0 0.0
      %339 = vmatpush.msra.mxu0 0.0
      %340 = vmatpush.msra.mxu0 0.0
      %341 = vmatpush.msra.mxu0 0.0
      %342 = vmatpush.msra.mxu0 0.0
      %343 = vmatpush.msra.mxu0 0.0
      %344 = vmatpush.msra.mxu0 0.0
      %345 = vmatpush.msra.mxu0 0.0
      %346 = vmatpush.msra.mxu0 0.0
      %347 = vmatpush.msra.mxu0 %v325
      %348 = vmatpush.msra.mxu0 %v324
      %349 = vmatpush.msra.mxu0 %v323
      %350 = vmatpush.msra.mxu0 %v322
      %351 = vmatmul.f32.gmra.mxu0 %v327
      %v352 = vpop.f32.mrf.mxu0
      %v353 = vadd.f32 0.0, %v352
      %354 = vmatmul.f32.gmra.mxu0 %v330
      %v355 = vpop.f32.mrf.mxu0
      %v356 = vadd.f32 0.0, %v355
      %357 = vmatmul.f32.gmra.mxu0 %v333
      %v358 = vpop.f32.mrf.mxu0
      %v359 = vadd.f32 0.0, %v358
      %360 = vdwg.mxu0
      %v361 = vadd.f32 %v313, %v353
      %v362 = vadd.f32 %v314, %v356
      %v363 = vadd.f32 %v315, %v359
      %s364 = sadd.s32 %s220, 3
      %s365 = scalar_lea.vmem %s195, %s364
      %v366 = vld [vmem:[%s365] sm:$0xff]
      %v367 = vld [vmem:[%s365 + $0x8] sm:$0xff]
      %v368 = vld [vmem:[%s365 + $0x10] sm:$0x3]
      %s369 = scalar_lea.vmem %s201, 96
      %v370 = vld [vmem:[%s369] sm:$0xff]
      %v371 = vld [vmem:[%s369 + $0x8] sm:$0xff]
      %v372 = vld [vmem:[%s369 + $0x10] sm:$0xff]
      %v373 = vld [vmem:[%s369 + $0x18] sm:$0xff]
      %v375 = vsel %vm229, %v366, 0
      %v378 = vsel %vm229, %v367, 0
      %v381 = vsel %vm229, %v368, 0
      %383 = vmatpush.msra.mxu0 0.0
      %384 = vmatpush.msra.mxu0 0.0
      %385 = vmatpush.msra.mxu0 0.0
      %386 = vmatpush.msra.mxu0 0.0
      %387 = vmatpush.msra.mxu0 0.0
      %388 = vmatpush.msra.mxu0 0.0
      %389 = vmatpush.msra.mxu0 0.0
      %390 = vmatpush.msra.mxu0 0.0
      %391 = vmatpush.msra.mxu0 0.0
      %392 = vmatpush.msra.mxu0 0.0
      %393 = vmatpush.msra.mxu0 0.0
      %394 = vmatpush.msra.mxu0 0.0
      %395 = vmatpush.msra.mxu0 %v373
      %396 = vmatpush.msra.mxu0 %v372
      %397 = vmatpush.msra.mxu0 %v371
      %398 = vmatpush.msra.mxu0 %v370
      %399 = vmatmul.f32.gmra.mxu0 %v375
      %v400 = vpop.f32.mrf.mxu0
      %v401 = vadd.f32 0.0, %v400
      %402 = vmatmul.f32.gmra.mxu0 %v378
      %v403 = vpop.f32.mrf.mxu0
      %v404 = vadd.f32 0.0, %v403
      %405 = vmatmul.f32.gmra.mxu0 %v381
      %v406 = vpop.f32.mrf.mxu0
      %v407 = vadd.f32 0.0, %v406
      %408 = vdwg.mxu0
      %v409 = vadd.f32 %v361, %v401
      %v410 = vadd.f32 %v362, %v404
      %v411 = vadd.f32 %v363, %v407
      %s412 = sadd.s32 %s220, 4
      %s413 = scalar_lea.vmem %s195, %s412
      %v414 = vld [vmem:[%s413] sm:$0xff]
      %v415 = vld [vmem:[%s413 + $0x8] sm:$0xff]
      %v416 = vld [vmem:[%s413 + $0x10] sm:$0x3]
      %s417 = scalar_lea.vmem %s201, 128
      %v418 = vld [vmem:[%s417] sm:$0xff]
      %v419 = vld [vmem:[%s417 + $0x8] sm:$0xff]
      %v420 = vld [vmem:[%s417 + $0x10] sm:$0xff]
      %v421 = vld [vmem:[%s417 + $0x18] sm:$0xff]
      %v423 = vsel %vm229, %v414, 0
      %v426 = vsel %vm229, %v415, 0
      %v429 = vsel %vm229, %v416, 0
      %431 = vmatpush.msra.mxu0 0.0
      %432 = vmatpush.msra.mxu0 0.0
      %433 = vmatpush.msra.mxu0 0.0
      %434 = vmatpush.msra.mxu0 0.0
      %435 = vmatpush.msra.mxu0 0.0
      %436 = vmatpush.msra.mxu0 0.0
      %437 = vmatpush.msra.mxu0 0.0
      %438 = vmatpush.msra.mxu0 0.0
      %439 = vmatpush.msra.mxu0 0.0
      %440 = vmatpush.msra.mxu0 0.0
      %441 = vmatpush.msra.mxu0 0.0
      %442 = vmatpush.msra.mxu0 0.0
      %443 = vmatpush.msra.mxu0 %v421
      %444 = vmatpush.msra.mxu0 %v420
      %445 = vmatpush.msra.mxu0 %v419
      %446 = vmatpush.msra.mxu0 %v418
      %447 = vmatmul.f32.gmra.mxu0 %v423
      %v448 = vpop.f32.mrf.mxu0
      %v449 = vadd.f32 0.0, %v448
      %450 = vmatmul.f32.gmra.mxu0 %v426
      %v451 = vpop.f32.mrf.mxu0
      %v452 = vadd.f32 0.0, %v451
      %453 = vmatmul.f32.gmra.mxu0 %v429
      %v454 = vpop.f32.mrf.mxu0
      %v455 = vadd.f32 0.0, %v454
      %456 = vdwg.mxu0
      %v457 = vadd.f32 %v409, %v449
      %v458 = vadd.f32 %v410, %v452
      %v459 = vadd.f32 %v411, %v455
      %s460 = sadd.s32 %s220, 5
      %s461 = scalar_lea.vmem %s195, %s460
      %v462 = vld [vmem:[%s461] sm:$0xff]
      %v463 = vld [vmem:[%s461 + $0x8] sm:$0xff]
      %v464 = vld [vmem:[%s461 + $0x10] sm:$0x3]
      %s465 = scalar_lea.vmem %s201, 160
      %v466 = vld [vmem:[%s465] sm:$0xff]
      %v467 = vld [vmem:[%s465 + $0x8] sm:$0xff]
      %v468 = vld [vmem:[%s465 + $0x10] sm:$0xff]
      %v469 = vld [vmem:[%s465 + $0x18] sm:$0xff]
      %v471 = vsel %vm229, %v462, 0
      %v474 = vsel %vm229, %v463, 0
      %v477 = vsel %vm229, %v464, 0
      %479 = vmatpush.msra.mxu0 0.0
      %480 = vmatpush.msra.mxu0 0.0
      %481 = vmatpush.msra.mxu0 0.0
      %482 = vmatpush.msra.mxu0 0.0
      %483 = vmatpush.msra.mxu0 0.0
      %484 = vmatpush.msra.mxu0 0.0
      %485 = vmatpush.msra.mxu0 0.0
      %486 = vmatpush.msra.mxu0 0.0
      %487 = vmatpush.msra.mxu0 0.0
      %488 = vmatpush.msra.mxu0 0.0
      %489 = vmatpush.msra.mxu0 0.0
      %490 = vmatpush.msra.mxu0 0.0
      %491 = vmatpush.msra.mxu0 %v469
      %492 = vmatpush.msra.mxu0 %v468
      %493 = vmatpush.msra.mxu0 %v467
      %494 = vmatpush.msra.mxu0 %v466
      %495 = vmatmul.f32.gmra.mxu0 %v471
      %v496 = vpop.f32.mrf.mxu0
      %v497 = vadd.f32 0.0, %v496
      %498 = vmatmul.f32.gmra.mxu0 %v474
      %v499 = vpop.f32.mrf.mxu0
      %v500 = vadd.f32 0.0, %v499
      %501 = vmatmul.f32.gmra.mxu0 %v477
      %v502 = vpop.f32.mrf.mxu0
      %v503 = vadd.f32 0.0, %v502
      %504 = vdwg.mxu0
      %v505 = vadd.f32 %v457, %v497
      %v506 = vadd.f32 %v458, %v500
      %v507 = vadd.f32 %v459, %v503
      %s508 = sadd.s32 %s220, 6
      %s509 = scalar_lea.vmem %s195, %s508
      %v510 = vld [vmem:[%s509] sm:$0xff]
      %v511 = vld [vmem:[%s509 + $0x8] sm:$0xff]
      %v512 = vld [vmem:[%s509 + $0x10] sm:$0x3]
      %s513 = scalar_lea.vmem %s201, 192
      %v514 = vld [vmem:[%s513] sm:$0xff]
      %v515 = vld [vmem:[%s513 + $0x8] sm:$0xff]
      %v516 = vld [vmem:[%s513 + $0x10] sm:$0xff]
      %v517 = vld [vmem:[%s513 + $0x18] sm:$0xff]
      %v519 = vsel %vm229, %v510, 0
      %v522 = vsel %vm229, %v511, 0
      %v525 = vsel %vm229, %v512, 0
      %527 = vmatpush.msra.mxu0 0.0
      %528 = vmatpush.msra.mxu0 0.0
      %529 = vmatpush.msra.mxu0 0.0
      %530 = vmatpush.msra.mxu0 0.0
      %531 = vmatpush.msra.mxu0 0.0
      %532 = vmatpush.msra.mxu0 0.0
      %533 = vmatpush.msra.mxu0 0.0
      %534 = vmatpush.msra.mxu0 0.0
      %535 = vmatpush.msra.mxu0 0.0
      %536 = vmatpush.msra.mxu0 0.0
      %537 = vmatpush.msra.mxu0 0.0
      %538 = vmatpush.msra.mxu0 0.0
      %539 = vmatpush.msra.mxu0 %v517
      %540 = vmatpush.msra.mxu0 %v516
      %541 = vmatpush.msra.mxu0 %v515
      %542 = vmatpush.msra.mxu0 %v514
      %543 = vmatmul.f32.gmra.mxu0 %v519
      %v544 = vpop.f32.mrf.mxu0
      %v545 = vadd.f32 0.0, %v544
      %546 = vmatmul.f32.gmra.mxu0 %v522
      %v547 = vpop.f32.mrf.mxu0
      %v548 = vadd.f32 0.0, %v547
      %549 = vmatmul.f32.gmra.mxu0 %v525
      %v550 = vpop.f32.mrf.mxu0
      %v551 = vadd.f32 0.0, %v550
      %552 = vdwg.mxu0
      %v553 = vadd.f32 %v505, %v545
      %v554 = vadd.f32 %v506, %v548
      %v555 = vadd.f32 %v507, %v551
      %s556 = sadd.s32 %s220, 7
      %s557 = scalar_lea.vmem %s195, %s556
      %v558 = vld [vmem:[%s557] sm:$0xff]
      %v559 = vld [vmem:[%s557 + $0x8] sm:$0xff]
      %v560 = vld [vmem:[%s557 + $0x10] sm:$0x3]
      %s561 = scalar_lea.vmem %s201, 224
      %v562 = vld [vmem:[%s561] sm:$0xff]
      %v563 = vld [vmem:[%s561 + $0x8] sm:$0xff]
      %v564 = vld [vmem:[%s561 + $0x10] sm:$0xff]
      %v565 = vld [vmem:[%s561 + $0x18] sm:$0xff]
      %v567 = vsel %vm229, %v558, 0
      %v570 = vsel %vm229, %v559, 0
      %v573 = vsel %vm229, %v560, 0
      %575 = vmatpush.msra.mxu0 0.0
      %576 = vmatpush.msra.mxu0 0.0
      %577 = vmatpush.msra.mxu0 0.0
      %578 = vmatpush.msra.mxu0 0.0
      %579 = vmatpush.msra.mxu0 0.0
      %580 = vmatpush.msra.mxu0 0.0
      %581 = vmatpush.msra.mxu0 0.0
      %582 = vmatpush.msra.mxu0 0.0
      %583 = vmatpush.msra.mxu0 0.0
      %584 = vmatpush.msra.mxu0 0.0
      %585 = vmatpush.msra.mxu0 0.0
      %586 = vmatpush.msra.mxu0 0.0
      %587 = vmatpush.msra.mxu0 %v565
      %588 = vmatpush.msra.mxu0 %v564
      %589 = vmatpush.msra.mxu0 %v563
      %590 = vmatpush.msra.mxu0 %v562
      %591 = vmatmul.f32.gmra.mxu0 %v567
      %v592 = vpop.f32.mrf.mxu0
      %v593 = vadd.f32 0.0, %v592
      %594 = vmatmul.f32.gmra.mxu0 %v570
      %v595 = vpop.f32.mrf.mxu0
      %v596 = vadd.f32 0.0, %v595
      %597 = vmatmul.f32.gmra.mxu0 %v573
      %v598 = vpop.f32.mrf.mxu0
      %v599 = vadd.f32 0.0, %v598
      %600 = vdwg.mxu0
      %v601 = vadd.f32 %v553, %v593
      %v602 = vadd.f32 %v554, %v596
      %v603 = vadd.f32 %v555, %v599
      %vm604 = vcmask 523264
      %605 = vst.msk [vmem:[#allocation2] sm:$0xff] %vm604, %v601
      %606 = vst.msk [vmem:[#allocation2 + $0x8] sm:$0xff] %vm604, %v602
      %vm607 = vcmask 517120
      %608 = vst.msk [vmem:[#allocation2 + $0x10] sm:$0x3] %vm607, %v603
      // Predicated region
      $region37: #{crnn_forward.9} parent=31 // pred_check
        %p609 = pneg %p208
      $region38: #{crnn_forward.9} parent=31 // pred_check_branch
        %611 = sbr.rel (%p609) target = $region40
      $region39: #{crnn_forward.9} parent=31 // pred_region
        %v612 = vld [vmem:[#allocation2] sm:$0xff]
        %v613 = vld [vmem:[#allocation2 + $0x8] sm:$0xff]
        %v614 = vld [vmem:[#allocation2 + $0x10] sm:$0x3]
        %v615 = vld [vmem:[%s2] sm:$0x1]
        %v617 = vperm.slane %v615, 0
        %v619 = vadd.f32 %v612, %v617
        %v620 = vadd.f32 %v613, %v617
        %v621 = vadd.f32 %v614, %v617
        %v622 = vmax.f32 %v619, 0.0
        %v623 = vmax.f32 %v620, 0.0
        %v624 = vmax.f32 %v621, 0.0
        %625 = vst.msk [vmem:[%s207] sm:$0xff] %vm604, %v622
        %626 = vst.msk [vmem:[%s207 + $0x8] sm:$0xff] %vm604, %v623
        %627 = vst.msk [vmem:[%s207 + $0x10] sm:$0x3] %vm607, %v624
      $region40: #{crnn_forward.9} parent=31 // pred_fallthru
        _
      %p628 = scmp.lt.s32.totalorder %s18, 1
      %s629 = scalar_select %p628, %s18, 1
      %s630 = smul.addr %s629, 3
      %s631 = smul.addr %s630, 8
      %s632 = scalar_lea.vmem %s3, %s631
      // Predicated region
      $region41: #{crnn_forward.9} parent=31 // pred_check
        %p633 = pneg %p117
      $region42: #{crnn_forward.9} parent=31 // pred_check_branch
        %635 = sbr.rel (%p633) target = $region44
      $region43: #{crnn_forward.9} parent=31 // pred_region
        _
      $region44: #{crnn_forward.9} parent=31 // pred_fallthru
        _
    $region32: #{crnn_forward.9} parent=5 // pred_fallthru
      _
    %p636 = scmp.le.s32.totalorder 2, %s9
    // Predicated region
    $region45: #{crnn_forward.9} parent=5 // pred_check
      %p637 = pneg %p636
    $region46: #{crnn_forward.9} parent=5 // pred_check_branch
      %639 = sbr.rel (%p637) target = $region48
    $region47: #{crnn_forward.9} parent=5 // pred_region
      %s640 = ssub.s32 %s9, 2
      // Predicated region
      $region49: #{crnn_forward.9} parent=47 // pred_check
        %p641 = pneg %p123
      $region50: #{crnn_forward.9} parent=47 // pred_check_branch
        %643 = sbr.rel (%p641) target = $region52
      $region51: #{crnn_forward.9} parent=47 // pred_region
        %p644 = scmp.lt.s32.totalorder %s20, 1
        %s645 = scalar_select %p644, %s20, 1
        %s646 = smul.addr %s645, 3
        %s647 = smul.addr %s646, 8
        %s648 = scalar_lea.vmem %s3, %s647
      $region52: #{crnn_forward.9} parent=47 // pred_fallthru
        _
    $region48: #{crnn_forward.9} parent=5 // pred_fallthru
      _
  $region6: #{crnn_forward.9} parent=0 // loop_footer
    %s13 = sadd.s32 1, %s9
  $region7: #{crnn_forward.9} parent=0 // loop_footer_branch
    %8 = sbr.rel target = $region3
  $region8: #{crnn_forward.9} parent=0 // loop_exit
    _

// kernel: crnn_forward.8
$region0: #{crnn_forward.8}
  #allocation0 [shape = 'u32[]', space=smem, size = 0x4, offset = 0x4, fixed_abs, tag = 'smem constant byte address 0x4 - core index']
  #allocation1 [shape = 'u32[72,128]{1,0:T(1,128)}', space=vmem, size = 0x9000, scoped, tag = 'internal scratch']
  #allocation2 [shape = 'f32[25,32]{1,0:T(8,128)}', space=vmem, size = 0x4000, scoped, tag = 'scratch operand']
  %s0 = inlined_call_operand.vmem [shape: f32[2,32,1], index: 0, kind: input, shape index: {}]
  %s1 = inlined_call_operand.vmem [shape: f32[8,1,32], index: 1, kind: input, shape index: {}]
  %s2 = inlined_call_operand.vmem [shape: f32[1,32], index: 2, kind: input, shape index: {}]
  %s3 = inlined_call_operand.vmem [shape: f32[2,25,32], index: 3, kind: output, shape index: {}]
  %s4 = sld [smem:[#allocation0]]
  $region53: #{crnn_forward.8} parent=0
    _
  %s6 = ssub.s32 1, %s4
  %s7 = scalar_select 0, %s6, %s4
  loop: start=0, step=1, limit=4
  $region2: #{crnn_forward.8} parent=0 // loop_pre_header
    _
  $region3: #{crnn_forward.8} parent=0 // loop_header
    %s9 = sphi 0, %s13
    %p10 = scmp.ge.s32.totalorder %s9, 4
    %s16 = sphi 0, %s28
    %s17 = sphi 0, %s24
    %s18 = sphi 0, %s16
    %s19 = sphi 0, %s17
    %s20 = sphi 0, %s18
    %s21 = sphi 0, %s19
    %s31 = sphi 0, %s33
    %s34 = sphi 0, %s31
    %s35 = sphi 0, %s34
    %s51 = sphi 0, %s35
    %s57 = sphi 0, %s59
    %s60 = sphi 0, %s57
    %s61 = sphi 0, %s60
    %s77 = sphi 0, %s61
    %s81 = sphi 0, %s81
    %s83 = sphi 0, %s81
    %s84 = sphi 0, %s83
    %s98 = sphi 0, %s84
    %s104 = sphi 0, %s106
    %s107 = sphi 0, %s104
    %s108 = sphi 0, %s107
    %s124 = sphi 0, %s108
  $region4: #{crnn_forward.8} parent=0 // loop_header_branch
    %12 = sbr.rel (%p10) target = $region8
  $region5: #{crnn_forward.8} parent=0 // loop_body
    %s14 = ssub.s32 %s9, 1
    %s15 = ssub.s32 %s9, 2
    %s22 = sadd.s32 1, %s17
    %p23 = scmp.ge.s32.totalorder %s22, 1
    %s24 = scalar_select %p23, 0, %s22
    %s25 = sadd.s32 1, %s16
    %s26 = scalar_select %p23, %s25, %s16
    %p27 = scmp.ge.s32.totalorder %s26, 2
    %s28 = scalar_select %p27, 0, %s26
    %s29 = ssub.s32 %s16, %s28
    %p30 = scmp.eq.s32.totalorder %s29, 0
    %s32 = sadd.s32 %s31, 1
    %s33 = scalar_select %p30, %s31, %s32
    %p36 = pneg %p30
    %p37 = scmp.eq.s32.totalorder %s9, 1
    %p38 = por %p36, %p37
    %p39 = scmp.ne.s32.totalorder %s31, %s34
    %p40 = scmp.eq.s32.totalorder %s9, 0
    %p41 = por %p39, %p40
    %p42 = scmp.ne.s32.totalorder %s31, %s34
    %p43 = scmp.eq.s32.totalorder %s14, 1
    %p44 = por %p42, %p43
    %p45 = scmp.ne.s32.totalorder %s34, %s35
    %p46 = scmp.eq.s32.totalorder %s14, 0
    %p47 = por %p45, %p46
    %p48 = scmp.ne.s32.totalorder %s34, %s35
    %p49 = scmp.eq.s32.totalorder %s15, 1
    %p50 = por %p48, %p49
    %p52 = scmp.ne.s32.totalorder %s35, %s51
    %p53 = scmp.eq.s32.totalorder %s15, 0
    %p54 = por %p52, %p53
    %s55 = ssub.s32 %s17, %s24
    %p56 = scmp.eq.s32.totalorder %s55, 0
    %s58 = sadd.s32 %s57, 1
    %s59 = scalar_select %p56, %s57, %s58
    %p62 = pneg %p56
    %p63 = scmp.eq.s32.totalorder %s9, 1
    %p64 = por %p62, %p63
    %p65 = scmp.ne.s32.totalorder %s57, %s60
    %p66 = scmp.eq.s32.totalorder %s9, 0
    %p67 = por %p65, %p66
    %p68 = scmp.ne.s32.totalorder %s57, %s60
    %p69 = scmp.eq.s32.totalorder %s14, 1
    %p70 = por %p68, %p69
    %p71 = scmp.ne.s32.totalorder %s60, %s61
    %p72 = scmp.eq.s32.totalorder %s14, 0
    %p73 = por %p71, %p72
    %p74 = scmp.ne.s32.totalorder %s60, %s61
    %p75 = scmp.eq.s32.totalorder %s15, 1
    %p76 = por %p74, %p75
    %p78 = scmp.ne.s32.totalorder %s61, %s77
    %p79 = scmp.eq.s32.totalorder %s15, 0
    %p80 = por %p78, %p79
    %s82 = sadd.s32 %s81, 1
    %p85 = scmp.eq.s32.totalorder %s9, 1
    %p86 = scmp.ne.s32.totalorder %s81, %s83
    %p87 = scmp.eq.s32.totalorder %s9, 0
    %p88 = por %p86, %p87
    %p89 = scmp.ne.s32.totalorder %s81, %s83
    %p90 = scmp.eq.s32.totalorder %s14, 1
    %p91 = por %p89, %p90
    %p92 = scmp.ne.s32.totalorder %s83, %s84
    %p93 = scmp.eq.s32.totalorder %s14, 0
    %p94 = por %p92, %p93
    %p95 = scmp.ne.s32.totalorder %s83, %s84
    %p96 = scmp.eq.s32.totalorder %s15, 1
    %p97 = por %p95, %p96
    %p99 = scmp.ne.s32.totalorder %s84, %s98
    %p100 = scmp.eq.s32.totalorder %s15, 0
    %p101 = por %p99, %p100
    %s102 = ssub.s32 %s16, %s28
    %p103 = scmp.eq.s32.totalorder %s102, 0
    %s105 = sadd.s32 %s104, 1
    %s106 = scalar_select %p103, %s104, %s105
    %p109 = pneg %p103
    %p110 = scmp.eq.s32.totalorder %s9, 1
    %p111 = por %p109, %p110
    %p112 = scmp.ne.s32.totalorder %s104, %s107
    %p113 = scmp.eq.s32.totalorder %s9, 0
    %p114 = por %p112, %p113
    %p115 = scmp.ne.s32.totalorder %s104, %s107
    %p116 = scmp.eq.s32.totalorder %s14, 1
    %p117 = por %p115, %p116
    %p118 = scmp.ne.s32.totalorder %s107, %s108
    %p119 = scmp.eq.s32.totalorder %s14, 0
    %p120 = por %p118, %p119
    %p121 = scmp.ne.s32.totalorder %s107, %s108
    %p122 = scmp.eq.s32.totalorder %s15, 1
    %p123 = por %p121, %p122
    %p125 = scmp.ne.s32.totalorder %s108, %s124
    %p126 = scmp.eq.s32.totalorder %s15, 0
    %p127 = por %p125, %p126
    %p128 = scmp.le.s32.totalorder 1, %s9
    %p129 = scmp.lt.s32.totalorder %s9, 3
    %p130 = pnand %p128, %p129
    %p131 = pneg %p130
    // Predicated region
    $region9: #{crnn_forward.8} parent=5 // pred_check
      _
    $region10: #{crnn_forward.8} parent=5 // pred_check_branch
      %133 = sbr.rel (%p130) target = $region12
    $region11: #{crnn_forward.8} parent=5 // pred_region
      %s134 = ssub.s32 %s9, 1
      // Predicated region
      $region13: #{crnn_forward.8} parent=11 // pred_check
        %p135 = pneg %p73
      $region14: #{crnn_forward.8} parent=11 // pred_check_branch
        %137 = sbr.rel (%p135) target = $region16
      $region15: #{crnn_forward.8} parent=11 // pred_region
        %s138 = smul.u32 8, %s19
        %p139 = scmp.lt.s32.totalorder %s138, 7
        %s140 = scalar_select %p139, %s138, 7
        %s141 = scalar_lea.vmem %s1, %s140
        %s142 = smul.u32 8, %s19
      $region16: #{crnn_forward.8} parent=11 // pred_fallthru
        _
      // Predicated region
      $region17: #{crnn_forward.8} parent=11 // pred_check
        %p143 = pneg %p94
      $region18: #{crnn_forward.8} parent=11 // pred_check_branch
        %145 = sbr.rel (%p143) target = $region20
      $region19: #{crnn_forward.8} parent=11 // pred_region
        _
      $region20: #{crnn_forward.8} parent=11 // pred_fallthru
        _
    $region12: #{crnn_forward.8} parent=5 // pred_fallthru
      _
    %p146 = scmp.lt.s32.totalorder %s9, 2
    // Predicated region
    $region21: #{crnn_forward.8} parent=5 // pred_check
      %p147 = pneg %p146
    $region22: #{crnn_forward.8} parent=5 // pred_check_branch
      %149 = sbr.rel (%p147) target = $region24
    $region23: #{crnn_forward.8} parent=5 // pred_region
      // Predicated region
      $region25: #{crnn_forward.8} parent=23 // pred_check
        %p150 = pneg %p41
      $region26: #{crnn_forward.8} parent=23 // pred_check_branch
        %152 = sbr.rel (%p150) target = $region28
      $region27: #{crnn_forward.8} parent=23 // pred_region
        %p153 = scmp.lt.s32.totalorder %s16, 1
        %s154 = scalar_select %p153, %s16, 1
        %s155 = smul.addr %s154, 4
        %s156 = smul.addr %s155, 8
        %s157 = scalar_lea.vmem %s0, %s156
      $region28: #{crnn_forward.8} parent=23 // pred_fallthru
        _
    $region24: #{crnn_forward.8} parent=5 // pred_fallthru
      _
    %p158 = scmp.le.s32.totalorder 1, %s9
    %p159 = scmp.lt.s32.totalorder %s9, 3
    %p160 = pnand %p158, %p159
    %p161 = pneg %p160
    // Predicated region
    $region29: #{crnn_forward.8} parent=5 // pred_check
      _
    $region30: #{crnn_forward.8} parent=5 // pred_check_branch
      %163 = sbr.rel (%p160) target = $region32
    $region31: #{crnn_forward.8} parent=5 // pred_region
      %s164 = ssub.s32 %s9, 1
      %p165 = scmp.lt.s32.totalorder %s18, 1
      %s166 = scalar_select %p165, %s18, 1
      %s167 = smul.addr %s166, 4
      %s168 = smul.addr %s167, 8
      %s169 = scalar_lea.vmem %s0, %s168
      %p170 = pneg %p47
      %p171 = pneg %p44
      %s172 = smul.u32 8, %s19
      %p173 = scmp.lt.s32.totalorder %s172, 7
      %s174 = scalar_select %p173, %s172, 7
      %s175 = scalar_lea.vmem %s1, %s174
      %p176 = pneg %p73
      %p177 = pneg %p70
      %p178 = pneg %p94
      %p179 = pneg %p91
      %p180 = pneg %p120
      %p181 = pneg %p117
      %p182 = scmp.lt.s32.totalorder %s18, 1
      %s183 = scalar_select %p182, %s18, 1
      %s184 = smul.addr %s183, 4
      %s185 = smul.addr %s184, 8
      %s186 = scalar_lea.vmem %s3, %s185
      %p187 = scmp.lt.s32.totalorder %s18, 1
      %s188 = scalar_select %p187, %s18, 1
      %s189 = smul.addr %s188, 4
      %s190 = smul.addr %s189, 8
      %s191 = scalar_lea.vmem %s0, %s190
      %s192 = smul.u32 8, %s19
      %p193 = scmp.lt.s32.totalorder %s192, 7
      %s194 = scalar_select %p193, %s192, 7
      %s195 = scalar_lea.vmem %s1, %s194
      %s196 = smul.u32 8, %s19
      %p197 = scmp.lt.s32.totalorder %s18, 1
      %s198 = scalar_select %p197, %s18, 1
      %s199 = smul.addr %s198, 4
      %s200 = smul.addr %s199, 8
      %s201 = scalar_lea.vmem %s3, %s200
      %p202 = scmp.eq.s32.totalorder %s19, 0
      // Predicated region
      $region33: #{crnn_forward.8} parent=31 // pred_check
        %p203 = pneg %p202
      $region34: #{crnn_forward.8} parent=31 // pred_check_branch
        %205 = sbr.rel (%p203) target = $region36
      $region35: #{crnn_forward.8} parent=31 // pred_region
        %vm206 = vcmask 261120
        %207 = vst.msk [vmem:[#allocation2] sm:$0xff] %vm206, 0.0
        %208 = vst.msk [vmem:[#allocation2 + $0x8] sm:$0xff] %vm206, 0.0
        %209 = vst.msk [vmem:[#allocation2 + $0x10] sm:$0xff] %vm206, 0.0
        %vm210 = vcmask 253952
        %211 = vst.msk [vmem:[#allocation2 + $0x18] sm:$0x1] %vm210, 0.0
      $region36: #{crnn_forward.8} parent=31 // pred_fallthru
        _
      %v212 = vld [vmem:[#allocation2] sm:$0xff]
      %v213 = vld [vmem:[#allocation2 + $0x8] sm:$0xff]
      %v214 = vld [vmem:[#allocation2 + $0x10] sm:$0xff]
      %v215 = vld [vmem:[#allocation2 + $0x18] sm:$0x1]
      %s216 = smul.u32 %s19, 8
      %s217 = scalar_lea.vmem %s191, %s216
      %v218 = vld [vmem:[%s217] sm:$0xff]
      %v219 = vld [vmem:[%s217 + $0x8] sm:$0xff]
      %v220 = vld [vmem:[%s217 + $0x10] sm:$0xff]
      %v221 = vld [vmem:[%s217 + $0x18] sm:$0x1]
      %v222 = vld [vmem:[%s195] sm:$0x1]
      %224 = vset.pattern.permute.xlu0 0
      %225 = vperm.xlu0 %224, %v218
      %v226 = vpop.permute.xlu0 %225
      %229 = vset.pattern.permute.xlu0 0
      %230 = vperm.xlu0 %229, %v219
      %v231 = vpop.permute.xlu0 %230
      %234 = vset.pattern.permute.xlu0 0
      %235 = vperm.xlu0 %234, %v220
      %v236 = vpop.permute.xlu0 %235
      %239 = vset.pattern.permute.xlu0 0
      %240 = vperm.xlu0 %239, %v221
      %v241 = vpop.permute.xlu0 %240
      %v244 = vperm.slane %v222, 0
      %v246 = vmul.f32 %v226, %v244
      %v247 = vmul.f32 %v231, %v244
      %v248 = vmul.f32 %v236, %v244
      %v249 = vmul.f32 %v241, %v244
      %v250 = vadd.f32 %v212, %v246
      %v251 = vadd.f32 %v213, %v247
      %v252 = vadd.f32 %v214, %v248
      %v253 = vadd.f32 %v215, %v249
      %s254 = sadd.s32 %s216, 1
      %s255 = scalar_lea.vmem %s191, %s254
      %v256 = vld [vmem:[%s255] sm:$0xff]
      %v257 = vld [vmem:[%s255 + $0x8] sm:$0xff]
      %v258 = vld [vmem:[%s255 + $0x10] sm:$0xff]
      %v259 = vld [vmem:[%s255 + $0x18] sm:$0x1]
      %s260 = scalar_lea.vmem %s195, 1
      %v261 = vld [vmem:[%s260] sm:$0x1]
      %263 = vset.pattern.permute.xlu0 0
      %264 = vperm.xlu0 %263, %v256
      %v265 = vpop.permute.xlu0 %264
      %268 = vset.pattern.permute.xlu0 0
      %269 = vperm.xlu0 %268, %v257
      %v270 = vpop.permute.xlu0 %269
      %273 = vset.pattern.permute.xlu0 0
      %274 = vperm.xlu0 %273, %v258
      %v275 = vpop.permute.xlu0 %274
      %278 = vset.pattern.permute.xlu0 0
      %279 = vperm.xlu0 %278, %v259
      %v280 = vpop.permute.xlu0 %279
      %v283 = vperm.slane %v261, 0
      %v285 = vmul.f32 %v265, %v283
      %v286 = vmul.f32 %v270, %v283
      %v287 = vmul.f32 %v275, %v283
      %v288 = vmul.f32 %v280, %v283
      %v289 = vadd.f32 %v250, %v285
      %v290 = vadd.f32 %v251, %v286
      %v291 = vadd.f32 %v252, %v287
      %v292 = vadd.f32 %v253, %v288
      %s293 = sadd.s32 %s216, 2
      %s294 = scalar_lea.vmem %s191, %s293
      %v295 = vld [vmem:[%s294] sm:$0xff]
      %v296 = vld [vmem:[%s294 + $0x8] sm:$0xff]
      %v297 = vld [vmem:[%s294 + $0x10] sm:$0xff]
      %v298 = vld [vmem:[%s294 + $0x18] sm:$0x1]
      %s299 = scalar_lea.vmem %s195, 2
      %v300 = vld [vmem:[%s299] sm:$0x1]
      %302 = vset.pattern.permute.xlu0 0
      %303 = vperm.xlu0 %302, %v295
      %v304 = vpop.permute.xlu0 %303
      %307 = vset.pattern.permute.xlu0 0
      %308 = vperm.xlu0 %307, %v296
      %v309 = vpop.permute.xlu0 %308
      %312 = vset.pattern.permute.xlu0 0
      %313 = vperm.xlu0 %312, %v297
      %v314 = vpop.permute.xlu0 %313
      %317 = vset.pattern.permute.xlu0 0
      %318 = vperm.xlu0 %317, %v298
      %v319 = vpop.permute.xlu0 %318
      %v322 = vperm.slane %v300, 0
      %v324 = vmul.f32 %v304, %v322
      %v325 = vmul.f32 %v309, %v322
      %v326 = vmul.f32 %v314, %v322
      %v327 = vmul.f32 %v319, %v322
      %v328 = vadd.f32 %v289, %v324
      %v329 = vadd.f32 %v290, %v325
      %v330 = vadd.f32 %v291, %v326
      %v331 = vadd.f32 %v292, %v327
      %s332 = sadd.s32 %s216, 3
      %s333 = scalar_lea.vmem %s191, %s332
      %v334 = vld [vmem:[%s333] sm:$0xff]
      %v335 = vld [vmem:[%s333 + $0x8] sm:$0xff]
      %v336 = vld [vmem:[%s333 + $0x10] sm:$0xff]
      %v337 = vld [vmem:[%s333 + $0x18] sm:$0x1]
      %s338 = scalar_lea.vmem %s195, 3
      %v339 = vld [vmem:[%s338] sm:$0x1]
      %341 = vset.pattern.permute.xlu0 0
      %342 = vperm.xlu0 %341, %v334
      %v343 = vpop.permute.xlu0 %342
      %346 = vset.pattern.permute.xlu0 0
      %347 = vperm.xlu0 %346, %v335
      %v348 = vpop.permute.xlu0 %347
      %351 = vset.pattern.permute.xlu0 0
      %352 = vperm.xlu0 %351, %v336
      %v353 = vpop.permute.xlu0 %352
      %356 = vset.pattern.permute.xlu0 0
      %357 = vperm.xlu0 %356, %v337
      %v358 = vpop.permute.xlu0 %357
      %v361 = vperm.slane %v339, 0
      %v363 = vmul.f32 %v343, %v361
      %v364 = vmul.f32 %v348, %v361
      %v365 = vmul.f32 %v353, %v361
      %v366 = vmul.f32 %v358, %v361
      %v367 = vadd.f32 %v328, %v363
      %v368 = vadd.f32 %v329, %v364
      %v369 = vadd.f32 %v330, %v365
      %v370 = vadd.f32 %v331, %v366
      %s371 = sadd.s32 %s216, 4
      %s372 = scalar_lea.vmem %s191, %s371
      %v373 = vld [vmem:[%s372] sm:$0xff]
      %v374 = vld [vmem:[%s372 + $0x8] sm:$0xff]
      %v375 = vld [vmem:[%s372 + $0x10] sm:$0xff]
      %v376 = vld [vmem:[%s372 + $0x18] sm:$0x1]
      %s377 = scalar_lea.vmem %s195, 4
      %v378 = vld [vmem:[%s377] sm:$0x1]
      %380 = vset.pattern.permute.xlu0 0
      %381 = vperm.xlu0 %380, %v373
      %v382 = vpop.permute.xlu0 %381
      %385 = vset.pattern.permute.xlu0 0
      %386 = vperm.xlu0 %385, %v374
      %v387 = vpop.permute.xlu0 %386
      %390 = vset.pattern.permute.xlu0 0
      %391 = vperm.xlu0 %390, %v375
      %v392 = vpop.permute.xlu0 %391
      %395 = vset.pattern.permute.xlu0 0
      %396 = vperm.xlu0 %395, %v376
      %v397 = vpop.permute.xlu0 %396
      %v400 = vperm.slane %v378, 0
      %v402 = vmul.f32 %v382, %v400
      %v403 = vmul.f32 %v387, %v400
      %v404 = vmul.f32 %v392, %v400
      %v405 = vmul.f32 %v397, %v400
      %v406 = vadd.f32 %v367, %v402
      %v407 = vadd.f32 %v368, %v403
      %v408 = vadd.f32 %v369, %v404
      %v409 = vadd.f32 %v370, %v405
      %s410 = sadd.s32 %s216, 5
      %s411 = scalar_lea.vmem %s191, %s410
      %v412 = vld [vmem:[%s411] sm:$0xff]
      %v413 = vld [vmem:[%s411 + $0x8] sm:$0xff]
      %v414 = vld [vmem:[%s411 + $0x10] sm:$0xff]
      %v415 = vld [vmem:[%s411 + $0x18] sm:$0x1]
      %s416 = scalar_lea.vmem %s195, 5
      %v417 = vld [vmem:[%s416] sm:$0x1]
      %419 = vset.pattern.permute.xlu0 0
      %420 = vperm.xlu0 %419, %v412
      %v421 = vpop.permute.xlu0 %420
      %424 = vset.pattern.permute.xlu0 0
      %425 = vperm.xlu0 %424, %v413
      %v426 = vpop.permute.xlu0 %425
      %429 = vset.pattern.permute.xlu0 0
      %430 = vperm.xlu0 %429, %v414
      %v431 = vpop.permute.xlu0 %430
      %434 = vset.pattern.permute.xlu0 0
      %435 = vperm.xlu0 %434, %v415
      %v436 = vpop.permute.xlu0 %435
      %v439 = vperm.slane %v417, 0
      %v441 = vmul.f32 %v421, %v439
      %v442 = vmul.f32 %v426, %v439
      %v443 = vmul.f32 %v431, %v439
      %v444 = vmul.f32 %v436, %v439
      %v445 = vadd.f32 %v406, %v441
      %v446 = vadd.f32 %v407, %v442
      %v447 = vadd.f32 %v408, %v443
      %v448 = vadd.f32 %v409, %v444
      %s449 = sadd.s32 %s216, 6
      %s450 = scalar_lea.vmem %s191, %s449
      %v451 = vld [vmem:[%s450] sm:$0xff]
      %v452 = vld [vmem:[%s450 + $0x8] sm:$0xff]
      %v453 = vld [vmem:[%s450 + $0x10] sm:$0xff]
      %v454 = vld [vmem:[%s450 + $0x18] sm:$0x1]
      %s455 = scalar_lea.vmem %s195, 6
      %v456 = vld [vmem:[%s455] sm:$0x1]
      %458 = vset.pattern.permute.xlu0 0
      %459 = vperm.xlu0 %458, %v451
      %v460 = vpop.permute.xlu0 %459
      %463 = vset.pattern.permute.xlu0 0
      %464 = vperm.xlu0 %463, %v452
      %v465 = vpop.permute.xlu0 %464
      %468 = vset.pattern.permute.xlu0 0
      %469 = vperm.xlu0 %468, %v453
      %v470 = vpop.permute.xlu0 %469
      %473 = vset.pattern.permute.xlu0 0
      %474 = vperm.xlu0 %473, %v454
      %v475 = vpop.permute.xlu0 %474
      %v478 = vperm.slane %v456, 0
      %v480 = vmul.f32 %v460, %v478
      %v481 = vmul.f32 %v465, %v478
      %v482 = vmul.f32 %v470, %v478
      %v483 = vmul.f32 %v475, %v478
      %v484 = vadd.f32 %v445, %v480
      %v485 = vadd.f32 %v446, %v481
      %v486 = vadd.f32 %v447, %v482
      %v487 = vadd.f32 %v448, %v483
      %s488 = sadd.s32 %s216, 7
      %s489 = scalar_lea.vmem %s191, %s488
      %v490 = vld [vmem:[%s489] sm:$0xff]
      %v491 = vld [vmem:[%s489 + $0x8] sm:$0xff]
      %v492 = vld [vmem:[%s489 + $0x10] sm:$0xff]
      %v493 = vld [vmem:[%s489 + $0x18] sm:$0x1]
      %s494 = scalar_lea.vmem %s195, 7
      %v495 = vld [vmem:[%s494] sm:$0x1]
      %497 = vset.pattern.permute.xlu0 0
      %498 = vperm.xlu0 %497, %v490
      %v499 = vpop.permute.xlu0 %498
      %502 = vset.pattern.permute.xlu0 0
      %503 = vperm.xlu0 %502, %v491
      %v504 = vpop.permute.xlu0 %503
      %507 = vset.pattern.permute.xlu0 0
      %508 = vperm.xlu0 %507, %v492
      %v509 = vpop.permute.xlu0 %508
      %512 = vset.pattern.permute.xlu0 0
      %513 = vperm.xlu0 %512, %v493
      %v514 = vpop.permute.xlu0 %513
      %v517 = vperm.slane %v495, 0
      %v519 = vmul.f32 %v499, %v517
      %v520 = vmul.f32 %v504, %v517
      %v521 = vmul.f32 %v509, %v517
      %v522 = vmul.f32 %v514, %v517
      %v523 = vadd.f32 %v484, %v519
      %v524 = vadd.f32 %v485, %v520
      %v525 = vadd.f32 %v486, %v521
      %v526 = vadd.f32 %v487, %v522
      %vm527 = vcmask 261120
      %528 = vst.msk [vmem:[#allocation2] sm:$0xff] %vm527, %v523
      %529 = vst.msk [vmem:[#allocation2 + $0x8] sm:$0xff] %vm527, %v524
      %530 = vst.msk [vmem:[#allocation2 + $0x10] sm:$0xff] %vm527, %v525
      %vm531 = vcmask 253952
      %532 = vst.msk [vmem:[#allocation2 + $0x18] sm:$0x1] %vm531, %v526
      // Predicated region
      $region37: #{crnn_forward.8} parent=31 // pred_check
        %p533 = pneg %p202
      $region38: #{crnn_forward.8} parent=31 // pred_check_branch
        %535 = sbr.rel (%p533) target = $region40
      $region39: #{crnn_forward.8} parent=31 // pred_region
        %v536 = vld [vmem:[#allocation2] sm:$0xff]
        %v537 = vld [vmem:[#allocation2 + $0x8] sm:$0xff]
        %v538 = vld [vmem:[#allocation2 + $0x10] sm:$0xff]
        %v539 = vld [vmem:[#allocation2 + $0x18] sm:$0x1]
        %v540 = vld [vmem:[%s2] sm:$0x1]
        %v542 = vperm.slane %v540, 0
        %v544 = vadd.f32 %v536, %v542
        %v545 = vadd.f32 %v537, %v542
        %v546 = vadd.f32 %v538, %v542
        %v547 = vadd.f32 %v539, %v542
        %v548 = vmax.f32 %v544, 0.0
        %v549 = vmax.f32 %v545, 0.0
        %v550 = vmax.f32 %v546, 0.0
        %v551 = vmax.f32 %v547, 0.0
        %552 = vst.msk [vmem:[%s201] sm:$0xff] %vm527, %v548
        %553 = vst.msk [vmem:[%s201 + $0x8] sm:$0xff] %vm527, %v549
        %554 = vst.msk [vmem:[%s201 + $0x10] sm:$0xff] %vm527, %v550
        %555 = vst.msk [vmem:[%s201 + $0x18] sm:$0x1] %vm531, %v551
      $region40: #{crnn_forward.8} parent=31 // pred_fallthru
        _
      %p556 = scmp.lt.s32.totalorder %s18, 1
      %s557 = scalar_select %p556, %s18, 1
      %s558 = smul.addr %s557, 4
      %s559 = smul.addr %s558, 8
      %s560 = scalar_lea.vmem %s3, %s559
      // Predicated region
      $region41: #{crnn_forward.8} parent=31 // pred_check
        %p561 = pneg %p117
      $region42: #{crnn_forward.8} parent=31 // pred_check_branch
        %563 = sbr.rel (%p561) target = $region44
      $region43: #{crnn_forward.8} parent=31 // pred_region
        _
      $region44: #{crnn_forward.8} parent=31 // pred_fallthru
        _
    $region32: #{crnn_forward.8} parent=5 // pred_fallthru
      _
    %p564 = scmp.le.s32.totalorder 2, %s9
    // Predicated region
    $region45: #{crnn_forward.8} parent=5 // pred_check
      %p565 = pneg %p564
    $region46: #{crnn_forward.8} parent=5 // pred_check_branch
      %567 = sbr.rel (%p565) target = $region48
    $region47: #{crnn_forward.8} parent=5 // pred_region
      %s568 = ssub.s32 %s9, 2
      // Predicated region
      $region49: #{crnn_forward.8} parent=47 // pred_check
        %p569 = pneg %p123
      $region50: #{crnn_forward.8} parent=47 // pred_check_branch
        %571 = sbr.rel (%p569) target = $region52
      $region51: #{crnn_forward.8} parent=47 // pred_region
        %p572 = scmp.lt.s32.totalorder %s20, 1
        %s573 = scalar_select %p572, %s20, 1
        %s574 = smul.addr %s573, 4
        %s575 = smul.addr %s574, 8
        %s576 = scalar_lea.vmem %s3, %s575
      $region52: #{crnn_forward.8} parent=47 // pred_fallthru
        _
    $region48: #{crnn_forward.8} parent=5 // pred_fallthru
      _
  $region6: #{crnn_forward.8} parent=0 // loop_footer
    %s13 = sadd.s32 1, %s9
  $region7: #{crnn_forward.8} parent=0 // loop_footer_branch
    %8 = sbr.rel target = $region3
  $region8: #{crnn_forward.8} parent=0 // loop_exit
    _

// kernel: crnn_forward.10
$region0: #{crnn_forward.10}
  #allocation0 [shape = 'u32[]', space=smem, size = 0x4, offset = 0x4, fixed_abs, tag = 'smem constant byte address 0x4 - core index']
  #allocation1 [shape = 'u32[72,128]{1,0:T(1,128)}', space=vmem, size = 0x9000, scoped, tag = 'internal scratch']
  #allocation2 [shape = 'f32[36,512]{1,0:T(8,128)}', space=vmem, size = 0x14000, scoped, tag = 'scratch operand']
  %s0 = inlined_call_operand.vmem [shape: f32[36,64], index: 0, kind: input, shape index: {}]
  %s1 = inlined_call_operand.hbm [shape: f32[64,512], index: 1, kind: input, shape index: {}]
  %s2 = inlined_call_operand.vmem [shape: f32[1,512], index: 2, kind: input, shape index: {}]
  %s3 = inlined_call_operand.vmem [shape: f32[36,512], index: 3, kind: output, shape index: {}]
  %s4 = sld [smem:[#allocation0]]
  $region34: #{crnn_forward.10} parent=0
    _
  %s6 = ssub.s32 1, %s4
  %s7 = scalar_select 0, %s6, %s4
  $region1: #{crnn_forward.10} parent=0
    #allocation3 [shape = 'u8[131072]{0}', space=vmem, size = 0x20000, scoped, tag = 'input window, operand 1, single buffered']
    #allocation4 [shape = 's32[1]{0}', space=sflag, size = 0x4, scoped, tag = 'scoped memory for crnn_forward.10']
    %8 = vsyncpa [#allocation4], 0
    // Predicated region
    $region2: #{crnn_forward.10} parent=1 // pred_check
      _
    $region3: #{crnn_forward.10} parent=1 // pred_check_branch
      %10 = sbr.rel (0) target = $region5
    $region4: #{crnn_forward.10} parent=1 // pred_region
      _
    $region5: #{crnn_forward.10} parent=1 // pred_fallthru
      _
    // Predicated region
    $region6: #{crnn_forward.10} parent=1 // pred_check
      _
    $region7: #{crnn_forward.10} parent=1 // pred_check_branch
      %12 = sbr.rel (0) target = $region9
    $region8: #{crnn_forward.10} parent=1 // pred_region
      %14 = vsyncadd [#allocation4], 0
      %s15 = sshll.u32 %s1, 4
      %s16 = int_to_ptr.hbm [resolvable:$true] %s15
      %s17 = sshll.u32 [#allocation3], 4
      %s18 = int_to_ptr.vmem [resolvable:$true] %s17
      %23 = dma.hbm_to_vmem [thread:$0]  %s16, 4096, %s18, [#allocation4], 512, 512, 32
    $region9: #{crnn_forward.10} parent=1 // pred_fallthru
      _
    // Predicated region
    $region10: #{crnn_forward.10} parent=1 // pred_check
      _
    $region11: #{crnn_forward.10} parent=1 // pred_check_branch
      %25 = sbr.rel (0) target = $region13
    $region12: #{crnn_forward.10} parent=1 // pred_region
      _
    $region13: #{crnn_forward.10} parent=1 // pred_fallthru
      _
    // Predicated region
    $region14: #{crnn_forward.10} parent=1 // pred_check
      _
    $region15: #{crnn_forward.10} parent=1 // pred_check_branch
      %27 = sbr.rel (0) target = $region17
    $region16: #{crnn_forward.10} parent=1 // pred_region
      %29 = dma.done [#allocation4], 4096
    $region17: #{crnn_forward.10} parent=1 // pred_fallthru
      _
    %p30 = scmp.eq.s32.totalorder 0, 0
    // Predicated region
    $region18: #{crnn_forward.10} parent=1 // pred_check
      %p31 = pneg %p30
    $region19: #{crnn_forward.10} parent=1 // pred_check_branch
      %33 = sbr.rel (%p31) target = $region21
    $region20: #{crnn_forward.10} parent=1 // pred_region
      %34 = vst [vmem:[#allocation2] sm:$0xff] 0.0
      %35 = vst [vmem:[#allocation2 + $0x8] sm:$0xff] 0.0
      %36 = vst [vmem:[#allocation2 + $0x10] sm:$0xff] 0.0
      %37 = vst [vmem:[#allocation2 + $0x18] sm:$0xff] 0.0
      %38 = vst [vmem:[#allocation2 + $0x20] sm:$0xff] 0.0
      %39 = vst [vmem:[#allocation2 + $0x28] sm:$0xff] 0.0
      %40 = vst [vmem:[#allocation2 + $0x30] sm:$0xff] 0.0
      %41 = vst [vmem:[#allocation2 + $0x38] sm:$0xff] 0.0
      %42 = vst [vmem:[#allocation2 + $0x40] sm:$0xff] 0.0
      %43 = vst [vmem:[#allocation2 + $0x48] sm:$0xff] 0.0
      %44 = vst [vmem:[#allocation2 + $0x50] sm:$0xff] 0.0
      %45 = vst [vmem:[#allocation2 + $0x58] sm:$0xff] 0.0
      %46 = vst [vmem:[#allocation2 + $0x60] sm:$0xff] 0.0
      %47 = vst [vmem:[#allocation2 + $0x68] sm:$0xff] 0.0
      %48 = vst [vmem:[#allocation2 + $0x70] sm:$0xff] 0.0
      %49 = vst [vmem:[#allocation2 + $0x78] sm:$0xff] 0.0
      %50 = vst [vmem:[#allocation2 + $0x80] sm:$0xf] 0.0
      %51 = vst [vmem:[#allocation2 + $0x88] sm:$0xf] 0.0
      %52 = vst [vmem:[#allocation2 + $0x90] sm:$0xf] 0.0
      %53 = vst [vmem:[#allocation2 + $0x98] sm:$0xf] 0.0
    $region21: #{crnn_forward.10} parent=1 // pred_fallthru
      _
    %v54 = vld [vmem:[#allocation2] sm:$0xff]
    %v55 = vld [vmem:[#allocation2 + $0x8] sm:$0xff]
    %v56 = vld [vmem:[#allocation2 + $0x10] sm:$0xff]
    %v57 = vld [vmem:[#allocation2 + $0x18] sm:$0xff]
    %v58 = vld [vmem:[#allocation2 + $0x20] sm:$0xff]
    %v59 = vld [vmem:[#allocation2 + $0x28] sm:$0xff]
    %v60 = vld [vmem:[#allocation2 + $0x30] sm:$0xff]
    %v61 = vld [vmem:[#allocation2 + $0x38] sm:$0xff]
    %v62 = vld [vmem:[#allocation2 + $0x40] sm:$0xff]
    %v63 = vld [vmem:[#allocation2 + $0x48] sm:$0xff]
    %v64 = vld [vmem:[#allocation2 + $0x50] sm:$0xff]
    %v65 = vld [vmem:[#allocation2 + $0x58] sm:$0xff]
    %v66 = vld [vmem:[#allocation2 + $0x60] sm:$0xff]
    %v67 = vld [vmem:[#allocation2 + $0x68] sm:$0xff]
    %v68 = vld [vmem:[#allocation2 + $0x70] sm:$0xff]
    %v69 = vld [vmem:[#allocation2 + $0x78] sm:$0xff]
    %v70 = vld [vmem:[#allocation2 + $0x80] sm:$0xf]
    %v71 = vld [vmem:[#allocation2 + $0x88] sm:$0xf]
    %v72 = vld [vmem:[#allocation2 + $0x90] sm:$0xf]
    %v73 = vld [vmem:[#allocation2 + $0x98] sm:$0xf]
    %v74 = vld [vmem:[%s0] sm:$0xff]
    %v75 = vld [vmem:[%s0 + $0x8] sm:$0xff]
    %v76 = vld [vmem:[%s0 + $0x10] sm:$0xff]
    %v77 = vld [vmem:[%s0 + $0x18] sm:$0xff]
    %v78 = vld [vmem:[%s0 + $0x20] sm:$0xf]
    %v79 = vld [vmem:[#allocation3] sm:$0xff]
    %v80 = vld [vmem:[#allocation3 + $0x8] sm:$0xff]
    %v81 = vld [vmem:[#allocation3 + $0x10] sm:$0xff]
    %v82 = vld [vmem:[#allocation3 + $0x18] sm:$0xff]
    %v83 = vld [vmem:[#allocation3 + $0x20] sm:$0xff]
    %v84 = vld [vmem:[#allocation3 + $0x28] sm:$0xff]
    %v85 = vld [vmem:[#allocation3 + $0x30] sm:$0xff]
    %v86 = vld [vmem:[#allocation3 + $0x38] sm:$0xff]
    %v87 = vld [vmem:[#allocation3 + $0x40] sm:$0xff]
    %v88 = vld [vmem:[#allocation3 + $0x48] sm:$0xff]
    %v89 = vld [vmem:[#allocation3 + $0x50] sm:$0xff]
    %v90 = vld [vmem:[#allocation3 + $0x58] sm:$0xff]
    %v91 = vld [vmem:[#allocation3 + $0x60] sm:$0xff]
    %v92 = vld [vmem:[#allocation3 + $0x68] sm:$0xff]
    %v93 = vld [vmem:[#allocation3 + $0x70] sm:$0xff]
    %v94 = vld [vmem:[#allocation3 + $0x78] sm:$0xff]
    %v95 = vld [vmem:[#allocation3 + $0x80] sm:$0xff]
    %v96 = vld [vmem:[#allocation3 + $0x88] sm:$0xff]
    %v97 = vld [vmem:[#allocation3 + $0x90] sm:$0xff]
    %v98 = vld [vmem:[#allocation3 + $0x98] sm:$0xff]
    %v99 = vld [vmem:[#allocation3 + $0xa0] sm:$0xff]
    %v100 = vld [vmem:[#allocation3 + $0xa8] sm:$0xff]
    %v101 = vld [vmem:[#allocation3 + $0xb0] sm:$0xff]
    %v102 = vld [vmem:[#allocation3 + $0xb8] sm:$0xff]
    %v103 = vld [vmem:[#allocation3 + $0xc0] sm:$0xff]
    %v104 = vld [vmem:[#allocation3 + $0xc8] sm:$0xff]
    %v105 = vld [vmem:[#allocation3 + $0xd0] sm:$0xff]
    %v106 = vld [vmem:[#allocation3 + $0xd8] sm:$0xff]
    %v107 = vld [vmem:[#allocation3 + $0xe0] sm:$0xff]
    %v108 = vld [vmem:[#allocation3 + $0xe8] sm:$0xff]
    %v109 = vld [vmem:[#allocation3 + $0xf0] sm:$0xff]
    %v110 = vld [vmem:[#allocation3 + $0xf8] sm:$0xff]
    %vm111 = vcmask 523264
    %v113 = vsel %vm111, %v74, 0
    %v116 = vsel %vm111, %v75, 0
    %v119 = vsel %vm111, %v76, 0
    %v122 = vsel %vm111, %v77, 0
    %v125 = vsel %vm111, %v78, 0
    %127 = vmatpush.msra.mxu0 0.0
    %128 = vmatpush.msra.mxu0 0.0
    %129 = vmatpush.msra.mxu0 0.0
    %130 = vmatpush.msra.mxu0 0.0
    %131 = vmatpush.msra.mxu0 0.0
    %132 = vmatpush.msra.mxu0 0.0
    %133 = vmatpush.msra.mxu0 0.0
    %134 = vmatpush.msra.mxu0 0.0
    %135 = vmatpush.msra.mxu0 %v107
    %136 = vmatpush.msra.mxu0 %v103
    %137 = vmatpush.msra.mxu0 %v99
    %138 = vmatpush.msra.mxu0 %v95
    %139 = vmatpush.msra.mxu0 %v91
    %140 = vmatpush.msra.mxu0 %v87
    %141 = vmatpush.msra.mxu0 %v83
    %142 = vmatpush.msra.mxu0 %v79
    %143 = vmatmul.f32.gmra.mxu0 %v113
    %v144 = vpop.f32.mrf.mxu0
    %v145 = vadd.f32 0.0, %v144
    %146 = vmatmul.f32.gmra.mxu0 %v116
    %v147 = vpop.f32.mrf.mxu0
    %v148 = vadd.f32 0.0, %v147
    %149 = vmatmul.f32.gmra.mxu0 %v119
    %v150 = vpop.f32.mrf.mxu0
    %v151 = vadd.f32 0.0, %v150
    %152 = vmatmul.f32.gmra.mxu0 %v122
    %v153 = vpop.f32.mrf.mxu0
    %v154 = vadd.f32 0.0, %v153
    %155 = vmatmul.f32.gmra.mxu0 %v125
    %v156 = vpop.f32.mrf.mxu0
    %v157 = vadd.f32 0.0, %v156
    %158 = vdwg.mxu0
    %159 = vmatpush.msra.mxu0 0.0
    %160 = vmatpush.msra.mxu0 0.0
    %161 = vmatpush.msra.mxu0 0.0
    %162 = vmatpush.msra.mxu0 0.0
    %163 = vmatpush.msra.mxu0 0.0
    %164 = vmatpush.msra.mxu0 0.0
    %165 = vmatpush.msra.mxu0 0.0
    %166 = vmatpush.msra.mxu0 0.0
    %167 = vmatpush.msra.mxu0 %v108
    %168 = vmatpush.msra.mxu0 %v104
    %169 = vmatpush.msra.mxu0 %v100
    %170 = vmatpush.msra.mxu0 %v96
    %171 = vmatpush.msra.mxu0 %v92
    %172 = vmatpush.msra.mxu0 %v88
    %173 = vmatpush.msra.mxu0 %v84
    %174 = vmatpush.msra.mxu0 %v80
    %175 = vmatmul.f32.gmra.mxu0 %v113
    %v176 = vpop.f32.mrf.mxu0
    %v177 = vadd.f32 0.0, %v176
    %178 = vmatmul.f32.gmra.mxu0 %v116
    %v179 = vpop.f32.mrf.mxu0
    %v180 = vadd.f32 0.0, %v179
    %181 = vmatmul.f32.gmra.mxu0 %v119
    %v182 = vpop.f32.mrf.mxu0
    %v183 = vadd.f32 0.0, %v182
    %184 = vmatmul.f32.gmra.mxu0 %v122
    %v185 = vpop.f32.mrf.mxu0
    %v186 = vadd.f32 0.0, %v185
    %187 = vmatmul.f32.gmra.mxu0 %v125
    %v188 = vpop.f32.mrf.mxu0
    %v189 = vadd.f32 0.0, %v188
    %190 = vdwg.mxu0
    %191 = vmatpush.msra.mxu0 0.0
    %192 = vmatpush.msra.mxu0 0.0
    %193 = vmatpush.msra.mxu0 0.0
    %194 = vmatpush.msra.mxu0 0.0
    %195 = vmatpush.msra.mxu0 0.0
    %196 = vmatpush.msra.mxu0 0.0
    %197 = vmatpush.msra.mxu0 0.0
    %198 = vmatpush.msra.mxu0 0.0
    %199 = vmatpush.msra.mxu0 %v109
    %200 = vmatpush.msra.mxu0 %v105
    %201 = vmatpush.msra.mxu0 %v101
    %202 = vmatpush.msra.mxu0 %v97
    %203 = vmatpush.msra.mxu0 %v93
    %204 = vmatpush.msra.mxu0 %v89
    %205 = vmatpush.msra.mxu0 %v85
    %206 = vmatpush.msra.mxu0 %v81
    %207 = vmatmul.f32.gmra.mxu0 %v113
    %v208 = vpop.f32.mrf.mxu0
    %v209 = vadd.f32 0.0, %v208
    %210 = vmatmul.f32.gmra.mxu0 %v116
    %v211 = vpop.f32.mrf.mxu0
    %v212 = vadd.f32 0.0, %v211
    %213 = vmatmul.f32.gmra.mxu0 %v119
    %v214 = vpop.f32.mrf.mxu0
    %v215 = vadd.f32 0.0, %v214
    %216 = vmatmul.f32.gmra.mxu0 %v122
    %v217 = vpop.f32.mrf.mxu0
    %v218 = vadd.f32 0.0, %v217
    %219 = vmatmul.f32.gmra.mxu0 %v125
    %v220 = vpop.f32.mrf.mxu0
    %v221 = vadd.f32 0.0, %v220
    %222 = vdwg.mxu0
    %223 = vmatpush.msra.mxu0 0.0
    %224 = vmatpush.msra.mxu0 0.0
    %225 = vmatpush.msra.mxu0 0.0
    %226 = vmatpush.msra.mxu0 0.0
    %227 = vmatpush.msra.mxu0 0.0
    %228 = vmatpush.msra.mxu0 0.0
    %229 = vmatpush.msra.mxu0 0.0
    %230 = vmatpush.msra.mxu0 0.0
    %231 = vmatpush.msra.mxu0 %v110
    %232 = vmatpush.msra.mxu0 %v106
    %233 = vmatpush.msra.mxu0 %v102
    %234 = vmatpush.msra.mxu0 %v98
    %235 = vmatpush.msra.mxu0 %v94
    %236 = vmatpush.msra.mxu0 %v90
    %237 = vmatpush.msra.mxu0 %v86
    %238 = vmatpush.msra.mxu0 %v82
    %239 = vmatmul.f32.gmra.mxu0 %v113
    %v240 = vpop.f32.mrf.mxu0
    %v241 = vadd.f32 0.0, %v240
    %242 = vmatmul.f32.gmra.mxu0 %v116
    %v243 = vpop.f32.mrf.mxu0
    %v244 = vadd.f32 0.0, %v243
    %245 = vmatmul.f32.gmra.mxu0 %v119
    %v246 = vpop.f32.mrf.mxu0
    %v247 = vadd.f32 0.0, %v246
    %248 = vmatmul.f32.gmra.mxu0 %v122
    %v249 = vpop.f32.mrf.mxu0
    %v250 = vadd.f32 0.0, %v249
    %251 = vmatmul.f32.gmra.mxu0 %v125
    %v252 = vpop.f32.mrf.mxu0
    %v253 = vadd.f32 0.0, %v252
    %254 = vdwg.mxu0
    %v255 = vadd.f32 %v54, %v145
    %v256 = vadd.f32 %v55, %v177
    %v257 = vadd.f32 %v56, %v209
    %v258 = vadd.f32 %v57, %v241
    %v259 = vadd.f32 %v58, %v148
    %v260 = vadd.f32 %v59, %v180
    %v261 = vadd.f32 %v60, %v212
    %v262 = vadd.f32 %v61, %v244
    %v263 = vadd.f32 %v62, %v151
    %v264 = vadd.f32 %v63, %v183
    %v265 = vadd.f32 %v64, %v215
    %v266 = vadd.f32 %v65, %v247
    %v267 = vadd.f32 %v66, %v154
    %v268 = vadd.f32 %v67, %v186
    %v269 = vadd.f32 %v68, %v218
    %v270 = vadd.f32 %v69, %v250
    %v271 = vadd.f32 %v70, %v157
    %v272 = vadd.f32 %v71, %v189
    %v273 = vadd.f32 %v72, %v221
    %v274 = vadd.f32 %v73, %v253
    %275 = vst [vmem:[#allocation2] sm:$0xff] %v255
    %276 = vst [vmem:[#allocation2 + $0x8] sm:$0xff] %v256
    %277 = vst [vmem:[#allocation2 + $0x10] sm:$0xff] %v257
    %278 = vst [vmem:[#allocation2 + $0x18] sm:$0xff] %v258
    %279 = vst [vmem:[#allocation2 + $0x20] sm:$0xff] %v259
    %280 = vst [vmem:[#allocation2 + $0x28] sm:$0xff] %v260
    %281 = vst [vmem:[#allocation2 + $0x30] sm:$0xff] %v261
    %282 = vst [vmem:[#allocation2 + $0x38] sm:$0xff] %v262
    %283 = vst [vmem:[#allocation2 + $0x40] sm:$0xff] %v263
    %284 = vst [vmem:[#allocation2 + $0x48] sm:$0xff] %v264
    %285 = vst [vmem:[#allocation2 + $0x50] sm:$0xff] %v265
    %286 = vst [vmem:[#allocation2 + $0x58] sm:$0xff] %v266
    %287 = vst [vmem:[#allocation2 + $0x60] sm:$0xff] %v267
    %288 = vst [vmem:[#allocation2 + $0x68] sm:$0xff] %v268
    %289 = vst [vmem:[#allocation2 + $0x70] sm:$0xff] %v269
    %290 = vst [vmem:[#allocation2 + $0x78] sm:$0xff] %v270
    %291 = vst [vmem:[#allocation2 + $0x80] sm:$0xf] %v271
    %292 = vst [vmem:[#allocation2 + $0x88] sm:$0xf] %v272
    %293 = vst [vmem:[#allocation2 + $0x90] sm:$0xf] %v273
    %294 = vst [vmem:[#allocation2 + $0x98] sm:$0xf] %v274
    // Predicated region
    $region22: #{crnn_forward.10} parent=1 // pred_check
      %p295 = pneg %p30
    $region23: #{crnn_forward.10} parent=1 // pred_check_branch
      %297 = sbr.rel (%p295) target = $region25
    $region24: #{crnn_forward.10} parent=1 // pred_region
      %v298 = vld [vmem:[#allocation2] sm:$0xff]
      %v299 = vld [vmem:[#allocation2 + $0x8] sm:$0xff]
      %v300 = vld [vmem:[#allocation2 + $0x10] sm:$0xff]
      %v301 = vld [vmem:[#allocation2 + $0x18] sm:$0xff]
      %v302 = vld [vmem:[#allocation2 + $0x20] sm:$0xff]
      %v303 = vld [vmem:[#allocation2 + $0x28] sm:$0xff]
      %v304 = vld [vmem:[#allocation2 + $0x30] sm:$0xff]
      %v305 = vld [vmem:[#allocation2 + $0x38] sm:$0xff]
      %v306 = vld [vmem:[#allocation2 + $0x40] sm:$0xff]
      %v307 = vld [vmem:[#allocation2 + $0x48] sm:$0xff]
      %v308 = vld [vmem:[#allocation2 + $0x50] sm:$0xff]
      %v309 = vld [vmem:[#allocation2 + $0x58] sm:$0xff]
      %v310 = vld [vmem:[#allocation2 + $0x60] sm:$0xff]
      %v311 = vld [vmem:[#allocation2 + $0x68] sm:$0xff]
      %v312 = vld [vmem:[#allocation2 + $0x70] sm:$0xff]
      %v313 = vld [vmem:[#allocation2 + $0x78] sm:$0xff]
      %v314 = vld [vmem:[#allocation2 + $0x80] sm:$0xf]
      %v315 = vld [vmem:[#allocation2 + $0x88] sm:$0xf]
      %v316 = vld [vmem:[#allocation2 + $0x90] sm:$0xf]
      %v317 = vld [vmem:[#allocation2 + $0x98] sm:$0xf]
      %v318 = vld [vmem:[%s2] sm:$0xf]
      %v320 = vperm.slane %v318, 0
      %v321 = vperm.slane %v318, 1
      %v322 = vperm.slane %v318, 2
      %v323 = vperm.slane %v318, 3
      %v328 = vadd.f32 %v298, %v320
      %v329 = vadd.f32 %v299, %v321
      %v330 = vadd.f32 %v300, %v322
      %v331 = vadd.f32 %v301, %v323
      %v332 = vadd.f32 %v302, %v320
      %v333 = vadd.f32 %v303, %v321
      %v334 = vadd.f32 %v304, %v322
      %v335 = vadd.f32 %v305, %v323
      %v336 = vadd.f32 %v306, %v320
      %v337 = vadd.f32 %v307, %v321
      %v338 = vadd.f32 %v308, %v322
      %v339 = vadd.f32 %v309, %v323
      %v340 = vadd.f32 %v310, %v320
      %v341 = vadd.f32 %v311, %v321
      %v342 = vadd.f32 %v312, %v322
      %v343 = vadd.f32 %v313, %v323
      %v344 = vadd.f32 %v314, %v320
      %v345 = vadd.f32 %v315, %v321
      %v346 = vadd.f32 %v316, %v322
      %v347 = vadd.f32 %v317, %v323
      %348 = vst [vmem:[%s3] sm:$0xff] %v328
      %349 = vst [vmem:[%s3 + $0x8] sm:$0xff] %v329
      %350 = vst [vmem:[%s3 + $0x10] sm:$0xff] %v330
      %351 = vst [vmem:[%s3 + $0x18] sm:$0xff] %v331
      %352 = vst [vmem:[%s3 + $0x20] sm:$0xff] %v332
      %353 = vst [vmem:[%s3 + $0x28] sm:$0xff] %v333
      %354 = vst [vmem:[%s3 + $0x30] sm:$0xff] %v334
      %355 = vst [vmem:[%s3 + $0x38] sm:$0xff] %v335
      %356 = vst [vmem:[%s3 + $0x40] sm:$0xff] %v336
      %357 = vst [vmem:[%s3 + $0x48] sm:$0xff] %v337
      %358 = vst [vmem:[%s3 + $0x50] sm:$0xff] %v338
      %359 = vst [vmem:[%s3 + $0x58] sm:$0xff] %v339
      %360 = vst [vmem:[%s3 + $0x60] sm:$0xff] %v340
      %361 = vst [vmem:[%s3 + $0x68] sm:$0xff] %v341
      %362 = vst [vmem:[%s3 + $0x70] sm:$0xff] %v342
      %363 = vst [vmem:[%s3 + $0x78] sm:$0xff] %v343
      %364 = vst [vmem:[%s3 + $0x80] sm:$0xf] %v344
      %365 = vst [vmem:[%s3 + $0x88] sm:$0xf] %v345
      %366 = vst [vmem:[%s3 + $0x90] sm:$0xf] %v346
      %367 = vst [vmem:[%s3 + $0x98] sm:$0xf] %v347
    $region25: #{crnn_forward.10} parent=1 // pred_fallthru
      _
    // Predicated region
    $region26: #{crnn_forward.10} parent=1 // pred_check
      _
    $region27: #{crnn_forward.10} parent=1 // pred_check_branch
      %369 = sbr.rel (0) target = $region29
    $region28: #{crnn_forward.10} parent=1 // pred_region
      _
    $region29: #{crnn_forward.10} parent=1 // pred_fallthru
      _
    // Predicated region
    $region30: #{crnn_forward.10} parent=1 // pred_check
      _
    $region31: #{crnn_forward.10} parent=1 // pred_check_branch
      %371 = sbr.rel (0) target = $region33
    $region32: #{crnn_forward.10} parent=1 // pred_region
      _
    $region33: #{crnn_forward.10} parent=1 // pred_fallthru
      _
    %372 = vsyncpa [#allocation4], 1

// kernel: crnn_forward.11
$region0: #{crnn_forward.11}
  #allocation0 [shape = 'u32[]', space=smem, size = 0x4, offset = 0x4, fixed_abs, tag = 'smem constant byte address 0x4 - core index']
  #allocation1 [shape = 'u32[72,128]{1,0:T(1,128)}', space=vmem, size = 0x9000, scoped, tag = 'internal scratch']
  #allocation2 [shape = 'f32[2,128]{1,0:T(2,128)}', space=vmem, size = 0x400, scoped, tag = 'scratch operand']
  #allocation3 [shape = 'f32[2,128]{1,0:T(2,128)}', space=vmem, size = 0x400, scoped, tag = 'scratch operand']
  #allocation4 [shape = 'f32[18,2,128]{2,1,0:T(2,128)}', space=vmem, size = 0x4800, scoped, tag = 'scratch operand']
  %s0 = inlined_call_operand.vmem [shape: f32[18,2,512], index: 0, kind: input, shape index: {}]
  %s1 = inlined_call_operand.vmem [shape: f32[128,512], index: 1, kind: input, shape index: {}]
  %s2 = inlined_call_operand.vmem [shape: f32[18,2,128], index: 2, kind: output, shape index: {}]
  %s3 = sld [smem:[#allocation0]]
  $region32: #{crnn_forward.11} parent=0
    _
  %s5 = ssub.s32 1, %s3
  %s6 = scalar_select 0, %s5, %s3
  // Predicated region
  $region2: #{crnn_forward.11} parent=0 // pred_check
    _
  $region3: #{crnn_forward.11} parent=0 // pred_check_branch
    %8 = sbr.rel (0) target = $region5
  $region4: #{crnn_forward.11} parent=0 // pred_region
    _
  $region5: #{crnn_forward.11} parent=0 // pred_fallthru
    _
  // Predicated region
  $region6: #{crnn_forward.11} parent=0 // pred_check
    _
  $region7: #{crnn_forward.11} parent=0 // pred_check_branch
    %10 = sbr.rel (0) target = $region9
  $region8: #{crnn_forward.11} parent=0 // pred_region
    _
  $region9: #{crnn_forward.11} parent=0 // pred_fallthru
    _
  %11 = vst [vmem:[#allocation2] sm:$0x3] 0.0
  %12 = vst [vmem:[#allocation3] sm:$0x3] 0.0
  %v13 = vld [vmem:[%s1] sm:$0xff]
  %v14 = vld [vmem:[%s1 + $0x8] sm:$0xff]
  %v15 = vld [vmem:[%s1 + $0x10] sm:$0xff]
  %v16 = vld [vmem:[%s1 + $0x18] sm:$0xff]
  %v17 = vld [vmem:[%s1 + $0x20] sm:$0xff]
  %v18 = vld [vmem:[%s1 + $0x28] sm:$0xff]
  %v19 = vld [vmem:[%s1 + $0x30] sm:$0xff]
  %v20 = vld [vmem:[%s1 + $0x38] sm:$0xff]
  %v21 = vld [vmem:[%s1 + $0x40] sm:$0xff]
  %v22 = vld [vmem:[%s1 + $0x48] sm:$0xff]
  %v23 = vld [vmem:[%s1 + $0x50] sm:$0xff]
  %v24 = vld [vmem:[%s1 + $0x58] sm:$0xff]
  %v25 = vld [vmem:[%s1 + $0x60] sm:$0xff]
  %v26 = vld [vmem:[%s1 + $0x68] sm:$0xff]
  %v27 = vld [vmem:[%s1 + $0x70] sm:$0xff]
  %v28 = vld [vmem:[%s1 + $0x78] sm:$0xff]
  %v29 = vld [vmem:[%s1 + $0x80] sm:$0xff]
  %v30 = vld [vmem:[%s1 + $0x88] sm:$0xff]
  %v31 = vld [vmem:[%s1 + $0x90] sm:$0xff]
  %v32 = vld [vmem:[%s1 + $0x98] sm:$0xff]
  %v33 = vld [vmem:[%s1 + $0xa0] sm:$0xff]
  %v34 = vld [vmem:[%s1 + $0xa8] sm:$0xff]
  %v35 = vld [vmem:[%s1 + $0xb0] sm:$0xff]
  %v36 = vld [vmem:[%s1 + $0xb8] sm:$0xff]
  %v37 = vld [vmem:[%s1 + $0xc0] sm:$0xff]
  %v38 = vld [vmem:[%s1 + $0xc8] sm:$0xff]
  %v39 = vld [vmem:[%s1 + $0xd0] sm:$0xff]
  %v40 = vld [vmem:[%s1 + $0xd8] sm:$0xff]
  %v41 = vld [vmem:[%s1 + $0xe0] sm:$0xff]
  %v42 = vld [vmem:[%s1 + $0xe8] sm:$0xff]
  %v43 = vld [vmem:[%s1 + $0xf0] sm:$0xff]
  %v44 = vld [vmem:[%s1 + $0xf8] sm:$0xff]
  %v45 = vld [vmem:[%s1 + $0x100] sm:$0xff]
  %v46 = vld [vmem:[%s1 + $0x108] sm:$0xff]
  %v47 = vld [vmem:[%s1 + $0x110] sm:$0xff]
  %v48 = vld [vmem:[%s1 + $0x118] sm:$0xff]
  %v49 = vld [vmem:[%s1 + $0x120] sm:$0xff]
  %v50 = vld [vmem:[%s1 + $0x128] sm:$0xff]
  %v51 = vld [vmem:[%s1 + $0x130] sm:$0xff]
  %v52 = vld [vmem:[%s1 + $0x138] sm:$0xff]
  %v53 = vld [vmem:[%s1 + $0x140] sm:$0xff]
  %v54 = vld [vmem:[%s1 + $0x148] sm:$0xff]
  %v55 = vld [vmem:[%s1 + $0x150] sm:$0xff]
  %v56 = vld [vmem:[%s1 + $0x158] sm:$0xff]
  %v57 = vld [vmem:[%s1 + $0x160] sm:$0xff]
  %v58 = vld [vmem:[%s1 + $0x168] sm:$0xff]
  %v59 = vld [vmem:[%s1 + $0x170] sm:$0xff]
  %v60 = vld [vmem:[%s1 + $0x178] sm:$0xff]
  %v61 = vld [vmem:[%s1 + $0x180] sm:$0xff]
  %v62 = vld [vmem:[%s1 + $0x188] sm:$0xff]
  %v63 = vld [vmem:[%s1 + $0x190] sm:$0xff]
  %v64 = vld [vmem:[%s1 + $0x198] sm:$0xff]
  %v65 = vld [vmem:[%s1 + $0x1a0] sm:$0xff]
  %v66 = vld [vmem:[%s1 + $0x1a8] sm:$0xff]
  %v67 = vld [vmem:[%s1 + $0x1b0] sm:$0xff]
  %v68 = vld [vmem:[%s1 + $0x1b8] sm:$0xff]
  %v69 = vld [vmem:[%s1 + $0x1c0] sm:$0xff]
  %v70 = vld [vmem:[%s1 + $0x1c8] sm:$0xff]
  %v71 = vld [vmem:[%s1 + $0x1d0] sm:$0xff]
  %v72 = vld [vmem:[%s1 + $0x1d8] sm:$0xff]
  %v73 = vld [vmem:[%s1 + $0x1e0] sm:$0xff]
  %v74 = vld [vmem:[%s1 + $0x1e8] sm:$0xff]
  %v75 = vld [vmem:[%s1 + $0x1f0] sm:$0xff]
  %v76 = vld [vmem:[%s1 + $0x1f8] sm:$0xff]
  %v77 = vlaneseq
  %v78 = vand.u32 %v77, 127
  %v79 = vadd.s32 %v78, 128
  %v80 = vadd.s32 %v78, 256
  %v81 = vadd.s32 %v78, 384
  %vm82 = vcmp.lt.s32.totalorder %v78, 0
  %v83 = vsub.s32 0, %v78
  %v84 = vsel %vm82, %v83, %v78
  %v85 = vshrl.u32 %v84, 7
  %v86 = vand.u32 %v84, 127
  %v87 = vsub.s32 0, %v86
  %v88 = vsel %vm82, %v87, %v86
  %vm89 = vcmp.lt.s32.totalorder %v79, 0
  %v90 = vsub.s32 0, %v79
  %v91 = vsel %vm89, %v90, %v79
  %v92 = vshrl.u32 %v91, 7
  %v93 = vand.u32 %v91, 127
  %v94 = vsub.s32 0, %v93
  %v95 = vsel %vm89, %v94, %v93
  %vm96 = vcmp.lt.s32.totalorder %v80, 0
  %v97 = vsub.s32 0, %v80
  %v98 = vsel %vm96, %v97, %v80
  %v99 = vshrl.u32 %v98, 7
  %v100 = vand.u32 %v98, 127
  %v101 = vsub.s32 0, %v100
  %v102 = vsel %vm96, %v101, %v100
  %vm103 = vcmp.lt.s32.totalorder %v81, 0
  %v104 = vsub.s32 0, %v81
  %v105 = vsel %vm103, %v104, %v81
  %v106 = vshrl.u32 %v105, 7
  %v107 = vand.u32 %v105, 127
  %v108 = vsub.s32 0, %v107
  %v109 = vsel %vm103, %v108, %v107
  %vm110 = vcmp.ne.s32.totalorder %v88, 0
  %vm111 = vcmp.ne.s32.totalorder %v95, 0
  %vm112 = vcmp.ne.s32.totalorder %v102, 0
  %vm113 = vcmp.ne.s32.totalorder %v109, 0
  %vm114 = vcmp.lt.s32.totalorder %v88, 0
  %vm115 = vcmp.lt.s32.totalorder %v95, 0
  %vm116 = vcmp.lt.s32.totalorder %v102, 0
  %vm117 = vcmp.lt.s32.totalorder %v109, 0
  %vm118 = vmand %vm114, %vm110
  %vm119 = vmand %vm115, %vm111
  %vm120 = vmand %vm116, %vm112
  %vm121 = vmand %vm117, %vm113
  %v122 = vadd.s32 %v88, 128
  %v123 = vadd.s32 %v95, 128
  %v124 = vadd.s32 %v102, 128
  %v125 = vadd.s32 %v109, 128
  %v126 = vsel %vm118, %v122, %v88
  %v127 = vsel %vm119, %v123, %v95
  %v128 = vsel %vm120, %v124, %v102
  %v129 = vsel %vm121, %v125, %v109
  %vm130 = vcmp.lt.s32.totalorder %v126, 64
  %vm131 = vcmp.lt.s32.totalorder %v127, 64
  %vm132 = vcmp.lt.s32.totalorder %v128, 64
  %vm133 = vcmp.lt.s32.totalorder %v129, 64
  loop: start=0, step=1, limit=18
  $region10: #{crnn_forward.11} parent=0 // loop_pre_header
    _
  $region11: #{crnn_forward.11} parent=0 // loop_header
    %s135 = sphi 0, %s139
    %p136 = scmp.ge.s32.totalorder %s135, 18
  $region12: #{crnn_forward.11} parent=0 // loop_header_branch
    %138 = sbr.rel (%p136) target = $region16
  $region13: #{crnn_forward.11} parent=0 // loop_body
    %s140 = ssub.s32 17, %s135
    %s141 = smul.u32 %s135, 4
    %s142 = smul.addr %s141, 2
    %s143 = scalar_lea.vmem %s0, %s142
    %v144 = vld [vmem:[%s143] sm:$0xff]
    %s145 = smul.u32 %s140, 4
    %s146 = smul.addr %s145, 2
    %s147 = scalar_lea.vmem %s0, %s146
    %v148 = vld [vmem:[%s147] sm:$0xff]
    %150 = vst [vmem:[#allocation1] ss:$4 sm:$0xff] %v144
    %v151 = vld.sshfl [vmem:[#allocation1] sm:$0xff pattern:$0x73625140]
    %v152 = vld.sshfl [vmem:[#allocation1 + $0x8] sm:$0xff pattern:$0x73625140]
    %v153 = vld.sshfl [vmem:[#allocation1 + $0x10] sm:$0xff pattern:$0x73625140]
    %v154 = vld.sshfl [vmem:[#allocation1 + $0x18] sm:$0xff pattern:$0x73625140]
    %160 = vst [vmem:[#allocation1] ss:$4 sm:$0xff] %v148
    %v161 = vld.sshfl [vmem:[#allocation1] sm:$0xff pattern:$0x73625140]
    %v162 = vld.sshfl [vmem:[#allocation1 + $0x8] sm:$0xff pattern:$0x73625140]
    %v163 = vld.sshfl [vmem:[#allocation1 + $0x10] sm:$0xff pattern:$0x73625140]
    %v164 = vld.sshfl [vmem:[#allocation1 + $0x18] sm:$0xff pattern:$0x73625140]
    %v169 = vsel %vm130, %v151, %v161
    %v170 = vsel %vm131, %v152, %v162
    %v171 = vsel %vm132, %v153, %v163
    %v172 = vsel %vm133, %v154, %v164
    %v173 = vld [vmem:[#allocation2] sm:$0x3]
    %174 = vmatpush.msra.mxu0 %v73
    %175 = vmatpush.msra.mxu0 %v69
    %176 = vmatpush.msra.mxu0 %v65
    %177 = vmatpush.msra.mxu0 %v61
    %178 = vmatpush.msra.mxu0 %v57
    %179 = vmatpush.msra.mxu0 %v53
    %180 = vmatpush.msra.mxu0 %v49
    %181 = vmatpush.msra.mxu0 %v45
    %182 = vmatpush.msra.mxu0 %v41
    %183 = vmatpush.msra.mxu0 %v37
    %184 = vmatpush.msra.mxu0 %v33
    %185 = vmatpush.msra.mxu0 %v29
    %186 = vmatpush.msra.mxu0 %v25
    %187 = vmatpush.msra.mxu0 %v21
    %188 = vmatpush.msra.mxu0 %v17
    %189 = vmatpush.msra.mxu0 %v13
    %190 = vmatmul.f32.gmra.mxu0 %v173
    %v191 = vpop.f32.mrf.mxu0
    %v192 = vadd.f32 0.0, %v191
    %193 = vdwg.mxu0
    %194 = vmatpush.msra.mxu0 %v74
    %195 = vmatpush.msra.mxu0 %v70
    %196 = vmatpush.msra.mxu0 %v66
    %197 = vmatpush.msra.mxu0 %v62
    %198 = vmatpush.msra.mxu0 %v58
    %199 = vmatpush.msra.mxu0 %v54
    %200 = vmatpush.msra.mxu0 %v50
    %201 = vmatpush.msra.mxu0 %v46
    %202 = vmatpush.msra.mxu0 %v42
    %203 = vmatpush.msra.mxu0 %v38
    %204 = vmatpush.msra.mxu0 %v34
    %205 = vmatpush.msra.mxu0 %v30
    %206 = vmatpush.msra.mxu0 %v26
    %207 = vmatpush.msra.mxu0 %v22
    %208 = vmatpush.msra.mxu0 %v18
    %209 = vmatpush.msra.mxu0 %v14
    %210 = vmatmul.f32.gmra.mxu0 %v173
    %v211 = vpop.f32.mrf.mxu0
    %v212 = vadd.f32 0.0, %v211
    %213 = vdwg.mxu0
    %214 = vmatpush.msra.mxu0 %v75
    %215 = vmatpush.msra.mxu0 %v71
    %216 = vmatpush.msra.mxu0 %v67
    %217 = vmatpush.msra.mxu0 %v63
    %218 = vmatpush.msra.mxu0 %v59
    %219 = vmatpush.msra.mxu0 %v55
    %220 = vmatpush.msra.mxu0 %v51
    %221 = vmatpush.msra.mxu0 %v47
    %222 = vmatpush.msra.mxu0 %v43
    %223 = vmatpush.msra.mxu0 %v39
    %224 = vmatpush.msra.mxu0 %v35
    %225 = vmatpush.msra.mxu0 %v31
    %226 = vmatpush.msra.mxu0 %v27
    %227 = vmatpush.msra.mxu0 %v23
    %228 = vmatpush.msra.mxu0 %v19
    %229 = vmatpush.msra.mxu0 %v15
    %230 = vmatmul.f32.gmra.mxu0 %v173
    %v231 = vpop.f32.mrf.mxu0
    %v232 = vadd.f32 0.0, %v231
    %233 = vdwg.mxu0
    %234 = vmatpush.msra.mxu0 %v76
    %235 = vmatpush.msra.mxu0 %v72
    %236 = vmatpush.msra.mxu0 %v68
    %237 = vmatpush.msra.mxu0 %v64
    %238 = vmatpush.msra.mxu0 %v60
    %239 = vmatpush.msra.mxu0 %v56
    %240 = vmatpush.msra.mxu0 %v52
    %241 = vmatpush.msra.mxu0 %v48
    %242 = vmatpush.msra.mxu0 %v44
    %243 = vmatpush.msra.mxu0 %v40
    %244 = vmatpush.msra.mxu0 %v36
    %245 = vmatpush.msra.mxu0 %v32
    %246 = vmatpush.msra.mxu0 %v28
    %247 = vmatpush.msra.mxu0 %v24
    %248 = vmatpush.msra.mxu0 %v20
    %249 = vmatpush.msra.mxu0 %v16
    %250 = vmatmul.f32.gmra.mxu0 %v173
    %v251 = vpop.f32.mrf.mxu0
    %v252 = vadd.f32 0.0, %v251
    %253 = vdwg.mxu0
    %v254 = vadd.f32 %v169, %v192
    %v255 = vadd.f32 %v170, %v212
    %v256 = vadd.f32 %v171, %v232
    %v257 = vadd.f32 %v172, %v252
    %v258 = vsub.f32 0.0, %v254
    %v259 = vmul.f32 %v258, 1.442695
    %v260 = vpow.pop %v259
    %v261 = vadd.f32 %v260, 1.0
    %v262 = vrcp.pop %v261
    %v263 = vmul.f32 %v261, %v262
    %v264 = vsub.f32 1.0, %v263
    %v265 = vmul.f32 %v262, %v264
    %v266 = vadd.f32 %v262, %v265
    %vm267 = vweird.f32 %v261
    %vm268 = vweird.f32 %v262
    %vm269 = vmor %vm267, %vm268
    %v270 = vsel %vm269, %v262, %v266
    %v271 = vand.u32 2147483647, %v261
    %vm272 = vcmp.eq.f32.partialorder %v271, 8.507059e+37
    %v273 = vand.u32 %v261, 2147483648
    %v274 = vor.u32 1.1754944e-38, %v273
    %v275 = vsel %vm272, %v274, %v270
    %v276 = vmul.f32 1.0, %v275
    %v277 = vsub.f32 0.0, %v255
    %v278 = vmul.f32 %v277, 1.442695
    %v279 = vpow.pop %v278
    %v280 = vadd.f32 %v279, 1.0
    %v281 = vrcp.pop %v280
    %v282 = vmul.f32 %v280, %v281
    %v283 = vsub.f32 1.0, %v282
    %v284 = vmul.f32 %v281, %v283
    %v285 = vadd.f32 %v281, %v284
    %vm286 = vweird.f32 %v280
    %vm287 = vweird.f32 %v281
    %vm288 = vmor %vm286, %vm287
    %v289 = vsel %vm288, %v281, %v285
    %v290 = vand.u32 2147483647, %v280
    %vm291 = vcmp.eq.f32.partialorder %v290, 8.507059e+37
    %v292 = vand.u32 %v280, 2147483648
    %v293 = vor.u32 1.1754944e-38, %v292
    %v294 = vsel %vm291, %v293, %v289
    %v295 = vmul.f32 1.0, %v294
    %v296 = vtanh.pop %v256
    %v297 = vsub.f32 0.0, %v257
    %v298 = vmul.f32 %v297, 1.442695
    %v299 = vpow.pop %v298
    %v300 = vadd.f32 %v299, 1.0
    %v301 = vrcp.pop %v300
    %v302 = vmul.f32 %v300, %v301
    %v303 = vsub.f32 1.0, %v302
    %v304 = vmul.f32 %v301, %v303
    %v305 = vadd.f32 %v301, %v304
    %vm306 = vweird.f32 %v300
    %vm307 = vweird.f32 %v301
    %vm308 = vmor %vm306, %vm307
    %v309 = vsel %vm308, %v301, %v305
    %v310 = vand.u32 2147483647, %v300
    %vm311 = vcmp.eq.f32.partialorder %v310, 8.507059e+37
    %v312 = vand.u32 %v300, 2147483648
    %v313 = vor.u32 1.1754944e-38, %v312
    %v314 = vsel %vm311, %v313, %v309
    %v315 = vmul.f32 1.0, %v314
    %v316 = vld [vmem:[#allocation3] sm:$0x3]
    %v317 = vmul.f32 %v295, %v316
    %v318 = vmul.f32 %v276, %v296
    %v319 = vadd.f32 %v317, %v318
    %v320 = vtanh.pop %v319
    %v321 = vmul.f32 %v315, %v320
    %322 = vst [vmem:[#allocation3] sm:$0x3] %v319
    %323 = vst [vmem:[#allocation2] sm:$0x3] %v321
    %s324 = smul.u32 %s135, 2
    %s325 = scalar_lea.vmem [#allocation4], %s324
    %326 = vst [vmem:[%s325] sm:$0x3] %v321
  $region14: #{crnn_forward.11} parent=0 // loop_footer
    %s139 = sadd.s32 1, %s135
  $region15: #{crnn_forward.11} parent=0 // loop_footer_branch
    %134 = sbr.rel target = $region11
  $region16: #{crnn_forward.11} parent=0 // loop_exit
    _
  loop: start=0, step=1, limit=18
  $region17: #{crnn_forward.11} parent=0 // loop_pre_header
    _
  $region18: #{crnn_forward.11} parent=0 // loop_header
    %s328 = sphi 0, %s332
    %p329 = scmp.ge.s32.totalorder %s328, 18
  $region19: #{crnn_forward.11} parent=0 // loop_header_branch
    %331 = sbr.rel (%p329) target = $region23
  $region20: #{crnn_forward.11} parent=0 // loop_body
    %s333 = ssub.s32 17, %s328
    %s334 = smul.u32 %s328, 2
    %s335 = scalar_lea.vmem [#allocation4], %s334
    %v336 = vld [vmem:[%s335] sm:$0x3]
    %s337 = smul.u32 %s333, 2
    %s338 = scalar_lea.vmem [#allocation4], %s337
    %v339 = vld [vmem:[%s338] sm:$0x3]
    %v340 = vsel %vm130, %v336, %v339
    %s341 = scalar_lea.vmem %s2, %s334
    %342 = vst [vmem:[%s341] sm:$0x3] %v340
  $region21: #{crnn_forward.11} parent=0 // loop_footer
    %s332 = sadd.s32 1, %s328
  $region22: #{crnn_forward.11} parent=0 // loop_footer_branch
    %327 = sbr.rel target = $region18
  $region23: #{crnn_forward.11} parent=0 // loop_exit
    _
  // Predicated region
  $region24: #{crnn_forward.11} parent=0 // pred_check
    _
  $region25: #{crnn_forward.11} parent=0 // pred_check_branch
    %344 = sbr.rel (0) target = $region27
  $region26: #{crnn_forward.11} parent=0 // pred_region
    _
  $region27: #{crnn_forward.11} parent=0 // pred_fallthru
    _
  // Predicated region
  $region28: #{crnn_forward.11} parent=0 // pred_check
    _
  $region29: #{crnn_forward.11} parent=0 // pred_check_branch
    %346 = sbr.rel (0) target = $region31
  $region30: #{crnn_forward.11} parent=0 // pred_region
    _
  $region31: #{crnn_forward.11} parent=0 // pred_fallthru
    _

// kernel: crnn_forward.12
$region0: #{crnn_forward.12}
  #allocation0 [shape = 'u32[]', space=smem, size = 0x4, offset = 0x4, fixed_abs, tag = 'smem constant byte address 0x4 - core index']
  #allocation1 [shape = 'u32[72,128]{1,0:T(1,128)}', space=vmem, size = 0x9000, scoped, tag = 'internal scratch']
  #allocation2 [shape = 'f32[36,512]{1,0:T(8,128)}', space=vmem, size = 0x14000, scoped, tag = 'scratch operand']
  %s0 = inlined_call_operand.vmem [shape: f32[36,128], index: 0, kind: input, shape index: {}]
  %s1 = inlined_call_operand.vmem [shape: f32[128,512], index: 1, kind: input, shape index: {}]
  %s2 = inlined_call_operand.vmem [shape: f32[1,512], index: 2, kind: input, shape index: {}]
  %s3 = inlined_call_operand.vmem [shape: f32[36,512], index: 3, kind: output, shape index: {}]
  %s4 = sld [smem:[#allocation0]]
  $region30: #{crnn_forward.12} parent=0
    _
  %s6 = ssub.s32 1, %s4
  %s7 = scalar_select 0, %s6, %s4
  // Predicated region
  $region2: #{crnn_forward.12} parent=0 // pred_check
    _
  $region3: #{crnn_forward.12} parent=0 // pred_check_branch
    %9 = sbr.rel (0) target = $region5
  $region4: #{crnn_forward.12} parent=0 // pred_region
    _
  $region5: #{crnn_forward.12} parent=0 // pred_fallthru
    _
  // Predicated region
  $region6: #{crnn_forward.12} parent=0 // pred_check
    _
  $region7: #{crnn_forward.12} parent=0 // pred_check_branch
    %11 = sbr.rel (0) target = $region9
  $region8: #{crnn_forward.12} parent=0 // pred_region
    _
  $region9: #{crnn_forward.12} parent=0 // pred_fallthru
    _
  // Predicated region
  $region10: #{crnn_forward.12} parent=0 // pred_check
    _
  $region11: #{crnn_forward.12} parent=0 // pred_check_branch
    %13 = sbr.rel (0) target = $region13
  $region12: #{crnn_forward.12} parent=0 // pred_region
    _
  $region13: #{crnn_forward.12} parent=0 // pred_fallthru
    _
  %p14 = scmp.eq.s32.totalorder 0, 0
  // Predicated region
  $region14: #{crnn_forward.12} parent=0 // pred_check
    %p15 = pneg %p14
  $region15: #{crnn_forward.12} parent=0 // pred_check_branch
    %17 = sbr.rel (%p15) target = $region17
  $region16: #{crnn_forward.12} parent=0 // pred_region
    %18 = vst [vmem:[#allocation2] sm:$0xff] 0.0
    %19 = vst [vmem:[#allocation2 + $0x8] sm:$0xff] 0.0
    %20 = vst [vmem:[#allocation2 + $0x10] sm:$0xff] 0.0
    %21 = vst [vmem:[#allocation2 + $0x18] sm:$0xff] 0.0
    %22 = vst [vmem:[#allocation2 + $0x20] sm:$0xff] 0.0
    %23 = vst [vmem:[#allocation2 + $0x28] sm:$0xff] 0.0
    %24 = vst [vmem:[#allocation2 + $0x30] sm:$0xff] 0.0
    %25 = vst [vmem:[#allocation2 + $0x38] sm:$0xff] 0.0
    %26 = vst [vmem:[#allocation2 + $0x40] sm:$0xff] 0.0
    %27 = vst [vmem:[#allocation2 + $0x48] sm:$0xff] 0.0
    %28 = vst [vmem:[#allocation2 + $0x50] sm:$0xff] 0.0
    %29 = vst [vmem:[#allocation2 + $0x58] sm:$0xff] 0.0
    %30 = vst [vmem:[#allocation2 + $0x60] sm:$0xff] 0.0
    %31 = vst [vmem:[#allocation2 + $0x68] sm:$0xff] 0.0
    %32 = vst [vmem:[#allocation2 + $0x70] sm:$0xff] 0.0
    %33 = vst [vmem:[#allocation2 + $0x78] sm:$0xff] 0.0
    %34 = vst [vmem:[#allocation2 + $0x80] sm:$0xf] 0.0
    %35 = vst [vmem:[#allocation2 + $0x88] sm:$0xf] 0.0
    %36 = vst [vmem:[#allocation2 + $0x90] sm:$0xf] 0.0
    %37 = vst [vmem:[#allocation2 + $0x98] sm:$0xf] 0.0
  $region17: #{crnn_forward.12} parent=0 // pred_fallthru
    _
  %v38 = vld [vmem:[#allocation2] sm:$0xff]
  %v39 = vld [vmem:[#allocation2 + $0x8] sm:$0xff]
  %v40 = vld [vmem:[#allocation2 + $0x10] sm:$0xff]
  %v41 = vld [vmem:[#allocation2 + $0x18] sm:$0xff]
  %v42 = vld [vmem:[#allocation2 + $0x20] sm:$0xff]
  %v43 = vld [vmem:[#allocation2 + $0x28] sm:$0xff]
  %v44 = vld [vmem:[#allocation2 + $0x30] sm:$0xff]
  %v45 = vld [vmem:[#allocation2 + $0x38] sm:$0xff]
  %v46 = vld [vmem:[#allocation2 + $0x40] sm:$0xff]
  %v47 = vld [vmem:[#allocation2 + $0x48] sm:$0xff]
  %v48 = vld [vmem:[#allocation2 + $0x50] sm:$0xff]
  %v49 = vld [vmem:[#allocation2 + $0x58] sm:$0xff]
  %v50 = vld [vmem:[#allocation2 + $0x60] sm:$0xff]
  %v51 = vld [vmem:[#allocation2 + $0x68] sm:$0xff]
  %v52 = vld [vmem:[#allocation2 + $0x70] sm:$0xff]
  %v53 = vld [vmem:[#allocation2 + $0x78] sm:$0xff]
  %v54 = vld [vmem:[#allocation2 + $0x80] sm:$0xf]
  %v55 = vld [vmem:[#allocation2 + $0x88] sm:$0xf]
  %v56 = vld [vmem:[#allocation2 + $0x90] sm:$0xf]
  %v57 = vld [vmem:[#allocation2 + $0x98] sm:$0xf]
  %v58 = vld [vmem:[%s0] sm:$0xff]
  %v59 = vld [vmem:[%s0 + $0x8] sm:$0xff]
  %v60 = vld [vmem:[%s0 + $0x10] sm:$0xff]
  %v61 = vld [vmem:[%s0 + $0x18] sm:$0xff]
  %v62 = vld [vmem:[%s0 + $0x20] sm:$0xf]
  %v63 = vld [vmem:[%s1] sm:$0xff]
  %v64 = vld [vmem:[%s1 + $0x8] sm:$0xff]
  %v65 = vld [vmem:[%s1 + $0x10] sm:$0xff]
  %v66 = vld [vmem:[%s1 + $0x18] sm:$0xff]
  %v67 = vld [vmem:[%s1 + $0x20] sm:$0xff]
  %v68 = vld [vmem:[%s1 + $0x28] sm:$0xff]
  %v69 = vld [vmem:[%s1 + $0x30] sm:$0xff]
  %v70 = vld [vmem:[%s1 + $0x38] sm:$0xff]
  %v71 = vld [vmem:[%s1 + $0x40] sm:$0xff]
  %v72 = vld [vmem:[%s1 + $0x48] sm:$0xff]
  %v73 = vld [vmem:[%s1 + $0x50] sm:$0xff]
  %v74 = vld [vmem:[%s1 + $0x58] sm:$0xff]
  %v75 = vld [vmem:[%s1 + $0x60] sm:$0xff]
  %v76 = vld [vmem:[%s1 + $0x68] sm:$0xff]
  %v77 = vld [vmem:[%s1 + $0x70] sm:$0xff]
  %v78 = vld [vmem:[%s1 + $0x78] sm:$0xff]
  %v79 = vld [vmem:[%s1 + $0x80] sm:$0xff]
  %v80 = vld [vmem:[%s1 + $0x88] sm:$0xff]
  %v81 = vld [vmem:[%s1 + $0x90] sm:$0xff]
  %v82 = vld [vmem:[%s1 + $0x98] sm:$0xff]
  %v83 = vld [vmem:[%s1 + $0xa0] sm:$0xff]
  %v84 = vld [vmem:[%s1 + $0xa8] sm:$0xff]
  %v85 = vld [vmem:[%s1 + $0xb0] sm:$0xff]
  %v86 = vld [vmem:[%s1 + $0xb8] sm:$0xff]
  %v87 = vld [vmem:[%s1 + $0xc0] sm:$0xff]
  %v88 = vld [vmem:[%s1 + $0xc8] sm:$0xff]
  %v89 = vld [vmem:[%s1 + $0xd0] sm:$0xff]
  %v90 = vld [vmem:[%s1 + $0xd8] sm:$0xff]
  %v91 = vld [vmem:[%s1 + $0xe0] sm:$0xff]
  %v92 = vld [vmem:[%s1 + $0xe8] sm:$0xff]
  %v93 = vld [vmem:[%s1 + $0xf0] sm:$0xff]
  %v94 = vld [vmem:[%s1 + $0xf8] sm:$0xff]
  %v95 = vld [vmem:[%s1 + $0x100] sm:$0xff]
  %v96 = vld [vmem:[%s1 + $0x108] sm:$0xff]
  %v97 = vld [vmem:[%s1 + $0x110] sm:$0xff]
  %v98 = vld [vmem:[%s1 + $0x118] sm:$0xff]
  %v99 = vld [vmem:[%s1 + $0x120] sm:$0xff]
  %v100 = vld [vmem:[%s1 + $0x128] sm:$0xff]
  %v101 = vld [vmem:[%s1 + $0x130] sm:$0xff]
  %v102 = vld [vmem:[%s1 + $0x138] sm:$0xff]
  %v103 = vld [vmem:[%s1 + $0x140] sm:$0xff]
  %v104 = vld [vmem:[%s1 + $0x148] sm:$0xff]
  %v105 = vld [vmem:[%s1 + $0x150] sm:$0xff]
  %v106 = vld [vmem:[%s1 + $0x158] sm:$0xff]
  %v107 = vld [vmem:[%s1 + $0x160] sm:$0xff]
  %v108 = vld [vmem:[%s1 + $0x168] sm:$0xff]
  %v109 = vld [vmem:[%s1 + $0x170] sm:$0xff]
  %v110 = vld [vmem:[%s1 + $0x178] sm:$0xff]
  %v111 = vld [vmem:[%s1 + $0x180] sm:$0xff]
  %v112 = vld [vmem:[%s1 + $0x188] sm:$0xff]
  %v113 = vld [vmem:[%s1 + $0x190] sm:$0xff]
  %v114 = vld [vmem:[%s1 + $0x198] sm:$0xff]
  %v115 = vld [vmem:[%s1 + $0x1a0] sm:$0xff]
  %v116 = vld [vmem:[%s1 + $0x1a8] sm:$0xff]
  %v117 = vld [vmem:[%s1 + $0x1b0] sm:$0xff]
  %v118 = vld [vmem:[%s1 + $0x1b8] sm:$0xff]
  %v119 = vld [vmem:[%s1 + $0x1c0] sm:$0xff]
  %v120 = vld [vmem:[%s1 + $0x1c8] sm:$0xff]
  %v121 = vld [vmem:[%s1 + $0x1d0] sm:$0xff]
  %v122 = vld [vmem:[%s1 + $0x1d8] sm:$0xff]
  %v123 = vld [vmem:[%s1 + $0x1e0] sm:$0xff]
  %v124 = vld [vmem:[%s1 + $0x1e8] sm:$0xff]
  %v125 = vld [vmem:[%s1 + $0x1f0] sm:$0xff]
  %v126 = vld [vmem:[%s1 + $0x1f8] sm:$0xff]
  %127 = vmatpush.msra.mxu0 %v123
  %128 = vmatpush.msra.mxu0 %v119
  %129 = vmatpush.msra.mxu0 %v115
  %130 = vmatpush.msra.mxu0 %v111
  %131 = vmatpush.msra.mxu0 %v107
  %132 = vmatpush.msra.mxu0 %v103
  %133 = vmatpush.msra.mxu0 %v99
  %134 = vmatpush.msra.mxu0 %v95
  %135 = vmatpush.msra.mxu0 %v91
  %136 = vmatpush.msra.mxu0 %v87
  %137 = vmatpush.msra.mxu0 %v83
  %138 = vmatpush.msra.mxu0 %v79
  %139 = vmatpush.msra.mxu0 %v75
  %140 = vmatpush.msra.mxu0 %v71
  %141 = vmatpush.msra.mxu0 %v67
  %142 = vmatpush.msra.mxu0 %v63
  %143 = vmatmul.f32.gmra.mxu0 %v58
  %v144 = vpop.f32.mrf.mxu0
  %v145 = vadd.f32 0.0, %v144
  %146 = vmatmul.f32.gmra.mxu0 %v59
  %v147 = vpop.f32.mrf.mxu0
  %v148 = vadd.f32 0.0, %v147
  %149 = vmatmul.f32.gmra.mxu0 %v60
  %v150 = vpop.f32.mrf.mxu0
  %v151 = vadd.f32 0.0, %v150
  %152 = vmatmul.f32.gmra.mxu0 %v61
  %v153 = vpop.f32.mrf.mxu0
  %v154 = vadd.f32 0.0, %v153
  %155 = vmatmul.f32.gmra.mxu0 %v62
  %v156 = vpop.f32.mrf.mxu0
  %v157 = vadd.f32 0.0, %v156
  %158 = vdwg.mxu0
  %159 = vmatpush.msra.mxu0 %v124
  %160 = vmatpush.msra.mxu0 %v120
  %161 = vmatpush.msra.mxu0 %v116
  %162 = vmatpush.msra.mxu0 %v112
  %163 = vmatpush.msra.mxu0 %v108
  %164 = vmatpush.msra.mxu0 %v104
  %165 = vmatpush.msra.mxu0 %v100
  %166 = vmatpush.msra.mxu0 %v96
  %167 = vmatpush.msra.mxu0 %v92
  %168 = vmatpush.msra.mxu0 %v88
  %169 = vmatpush.msra.mxu0 %v84
  %170 = vmatpush.msra.mxu0 %v80
  %171 = vmatpush.msra.mxu0 %v76
  %172 = vmatpush.msra.mxu0 %v72
  %173 = vmatpush.msra.mxu0 %v68
  %174 = vmatpush.msra.mxu0 %v64
  %175 = vmatmul.f32.gmra.mxu0 %v58
  %v176 = vpop.f32.mrf.mxu0
  %v177 = vadd.f32 0.0, %v176
  %178 = vmatmul.f32.gmra.mxu0 %v59
  %v179 = vpop.f32.mrf.mxu0
  %v180 = vadd.f32 0.0, %v179
  %181 = vmatmul.f32.gmra.mxu0 %v60
  %v182 = vpop.f32.mrf.mxu0
  %v183 = vadd.f32 0.0, %v182
  %184 = vmatmul.f32.gmra.mxu0 %v61
  %v185 = vpop.f32.mrf.mxu0
  %v186 = vadd.f32 0.0, %v185
  %187 = vmatmul.f32.gmra.mxu0 %v62
  %v188 = vpop.f32.mrf.mxu0
  %v189 = vadd.f32 0.0, %v188
  %190 = vdwg.mxu0
  %191 = vmatpush.msra.mxu0 %v125
  %192 = vmatpush.msra.mxu0 %v121
  %193 = vmatpush.msra.mxu0 %v117
  %194 = vmatpush.msra.mxu0 %v113
  %195 = vmatpush.msra.mxu0 %v109
  %196 = vmatpush.msra.mxu0 %v105
  %197 = vmatpush.msra.mxu0 %v101
  %198 = vmatpush.msra.mxu0 %v97
  %199 = vmatpush.msra.mxu0 %v93
  %200 = vmatpush.msra.mxu0 %v89
  %201 = vmatpush.msra.mxu0 %v85
  %202 = vmatpush.msra.mxu0 %v81
  %203 = vmatpush.msra.mxu0 %v77
  %204 = vmatpush.msra.mxu0 %v73
  %205 = vmatpush.msra.mxu0 %v69
  %206 = vmatpush.msra.mxu0 %v65
  %207 = vmatmul.f32.gmra.mxu0 %v58
  %v208 = vpop.f32.mrf.mxu0
  %v209 = vadd.f32 0.0, %v208
  %210 = vmatmul.f32.gmra.mxu0 %v59
  %v211 = vpop.f32.mrf.mxu0
  %v212 = vadd.f32 0.0, %v211
  %213 = vmatmul.f32.gmra.mxu0 %v60
  %v214 = vpop.f32.mrf.mxu0
  %v215 = vadd.f32 0.0, %v214
  %216 = vmatmul.f32.gmra.mxu0 %v61
  %v217 = vpop.f32.mrf.mxu0
  %v218 = vadd.f32 0.0, %v217
  %219 = vmatmul.f32.gmra.mxu0 %v62
  %v220 = vpop.f32.mrf.mxu0
  %v221 = vadd.f32 0.0, %v220
  %222 = vdwg.mxu0
  %223 = vmatpush.msra.mxu0 %v126
  %224 = vmatpush.msra.mxu0 %v122
  %225 = vmatpush.msra.mxu0 %v118
  %226 = vmatpush.msra.mxu0 %v114
  %227 = vmatpush.msra.mxu0 %v110
  %228 = vmatpush.msra.mxu0 %v106
  %229 = vmatpush.msra.mxu0 %v102
  %230 = vmatpush.msra.mxu0 %v98
  %231 = vmatpush.msra.mxu0 %v94
  %232 = vmatpush.msra.mxu0 %v90
  %233 = vmatpush.msra.mxu0 %v86
  %234 = vmatpush.msra.mxu0 %v82
  %235 = vmatpush.msra.mxu0 %v78
  %236 = vmatpush.msra.mxu0 %v74
  %237 = vmatpush.msra.mxu0 %v70
  %238 = vmatpush.msra.mxu0 %v66
  %239 = vmatmul.f32.gmra.mxu0 %v58
  %v240 = vpop.f32.mrf.mxu0
  %v241 = vadd.f32 0.0, %v240
  %242 = vmatmul.f32.gmra.mxu0 %v59
  %v243 = vpop.f32.mrf.mxu0
  %v244 = vadd.f32 0.0, %v243
  %245 = vmatmul.f32.gmra.mxu0 %v60
  %v246 = vpop.f32.mrf.mxu0
  %v247 = vadd.f32 0.0, %v246
  %248 = vmatmul.f32.gmra.mxu0 %v61
  %v249 = vpop.f32.mrf.mxu0
  %v250 = vadd.f32 0.0, %v249
  %251 = vmatmul.f32.gmra.mxu0 %v62
  %v252 = vpop.f32.mrf.mxu0
  %v253 = vadd.f32 0.0, %v252
  %254 = vdwg.mxu0
  %v255 = vadd.f32 %v38, %v145
  %v256 = vadd.f32 %v39, %v177
  %v257 = vadd.f32 %v40, %v209
  %v258 = vadd.f32 %v41, %v241
  %v259 = vadd.f32 %v42, %v148
  %v260 = vadd.f32 %v43, %v180
  %v261 = vadd.f32 %v44, %v212
  %v262 = vadd.f32 %v45, %v244
  %v263 = vadd.f32 %v46, %v151
  %v264 = vadd.f32 %v47, %v183
  %v265 = vadd.f32 %v48, %v215
  %v266 = vadd.f32 %v49, %v247
  %v267 = vadd.f32 %v50, %v154
  %v268 = vadd.f32 %v51, %v186
  %v269 = vadd.f32 %v52, %v218
  %v270 = vadd.f32 %v53, %v250
  %v271 = vadd.f32 %v54, %v157
  %v272 = vadd.f32 %v55, %v189
  %v273 = vadd.f32 %v56, %v221
  %v274 = vadd.f32 %v57, %v253
  %275 = vst [vmem:[#allocation2] sm:$0xff] %v255
  %276 = vst [vmem:[#allocation2 + $0x8] sm:$0xff] %v256
  %277 = vst [vmem:[#allocation2 + $0x10] sm:$0xff] %v257
  %278 = vst [vmem:[#allocation2 + $0x18] sm:$0xff] %v258
  %279 = vst [vmem:[#allocation2 + $0x20] sm:$0xff] %v259
  %280 = vst [vmem:[#allocation2 + $0x28] sm:$0xff] %v260
  %281 = vst [vmem:[#allocation2 + $0x30] sm:$0xff] %v261
  %282 = vst [vmem:[#allocation2 + $0x38] sm:$0xff] %v262
  %283 = vst [vmem:[#allocation2 + $0x40] sm:$0xff] %v263
  %284 = vst [vmem:[#allocation2 + $0x48] sm:$0xff] %v264
  %285 = vst [vmem:[#allocation2 + $0x50] sm:$0xff] %v265
  %286 = vst [vmem:[#allocation2 + $0x58] sm:$0xff] %v266
  %287 = vst [vmem:[#allocation2 + $0x60] sm:$0xff] %v267
  %288 = vst [vmem:[#allocation2 + $0x68] sm:$0xff] %v268
  %289 = vst [vmem:[#allocation2 + $0x70] sm:$0xff] %v269
  %290 = vst [vmem:[#allocation2 + $0x78] sm:$0xff] %v270
  %291 = vst [vmem:[#allocation2 + $0x80] sm:$0xf] %v271
  %292 = vst [vmem:[#allocation2 + $0x88] sm:$0xf] %v272
  %293 = vst [vmem:[#allocation2 + $0x90] sm:$0xf] %v273
  %294 = vst [vmem:[#allocation2 + $0x98] sm:$0xf] %v274
  // Predicated region
  $region18: #{crnn_forward.12} parent=0 // pred_check
    %p295 = pneg %p14
  $region19: #{crnn_forward.12} parent=0 // pred_check_branch
    %297 = sbr.rel (%p295) target = $region21
  $region20: #{crnn_forward.12} parent=0 // pred_region
    %v298 = vld [vmem:[#allocation2] sm:$0xff]
    %v299 = vld [vmem:[#allocation2 + $0x8] sm:$0xff]
    %v300 = vld [vmem:[#allocation2 + $0x10] sm:$0xff]
    %v301 = vld [vmem:[#allocation2 + $0x18] sm:$0xff]
    %v302 = vld [vmem:[#allocation2 + $0x20] sm:$0xff]
    %v303 = vld [vmem:[#allocation2 + $0x28] sm:$0xff]
    %v304 = vld [vmem:[#allocation2 + $0x30] sm:$0xff]
    %v305 = vld [vmem:[#allocation2 + $0x38] sm:$0xff]
    %v306 = vld [vmem:[#allocation2 + $0x40] sm:$0xff]
    %v307 = vld [vmem:[#allocation2 + $0x48] sm:$0xff]
    %v308 = vld [vmem:[#allocation2 + $0x50] sm:$0xff]
    %v309 = vld [vmem:[#allocation2 + $0x58] sm:$0xff]
    %v310 = vld [vmem:[#allocation2 + $0x60] sm:$0xff]
    %v311 = vld [vmem:[#allocation2 + $0x68] sm:$0xff]
    %v312 = vld [vmem:[#allocation2 + $0x70] sm:$0xff]
    %v313 = vld [vmem:[#allocation2 + $0x78] sm:$0xff]
    %v314 = vld [vmem:[#allocation2 + $0x80] sm:$0xf]
    %v315 = vld [vmem:[#allocation2 + $0x88] sm:$0xf]
    %v316 = vld [vmem:[#allocation2 + $0x90] sm:$0xf]
    %v317 = vld [vmem:[#allocation2 + $0x98] sm:$0xf]
    %v318 = vld [vmem:[%s2] sm:$0xf]
    %v320 = vperm.slane %v318, 0
    %v321 = vperm.slane %v318, 1
    %v322 = vperm.slane %v318, 2
    %v323 = vperm.slane %v318, 3
    %v328 = vadd.f32 %v298, %v320
    %v329 = vadd.f32 %v299, %v321
    %v330 = vadd.f32 %v300, %v322
    %v331 = vadd.f32 %v301, %v323
    %v332 = vadd.f32 %v302, %v320
    %v333 = vadd.f32 %v303, %v321
    %v334 = vadd.f32 %v304, %v322
    %v335 = vadd.f32 %v305, %v323
    %v336 = vadd.f32 %v306, %v320
    %v337 = vadd.f32 %v307, %v321
    %v338 = vadd.f32 %v308, %v322
    %v339 = vadd.f32 %v309, %v323
    %v340 = vadd.f32 %v310, %v320
    %v341 = vadd.f32 %v311, %v321
    %v342 = vadd.f32 %v312, %v322
    %v343 = vadd.f32 %v313, %v323
    %v344 = vadd.f32 %v314, %v320
    %v345 = vadd.f32 %v315, %v321
    %v346 = vadd.f32 %v316, %v322
    %v347 = vadd.f32 %v317, %v323
    %348 = vst [vmem:[%s3] sm:$0xff] %v328
    %349 = vst [vmem:[%s3 + $0x8] sm:$0xff] %v329
    %350 = vst [vmem:[%s3 + $0x10] sm:$0xff] %v330
    %351 = vst [vmem:[%s3 + $0x18] sm:$0xff] %v331
    %352 = vst [vmem:[%s3 + $0x20] sm:$0xff] %v332
    %353 = vst [vmem:[%s3 + $0x28] sm:$0xff] %v333
    %354 = vst [vmem:[%s3 + $0x30] sm:$0xff] %v334
    %355 = vst [vmem:[%s3 + $0x38] sm:$0xff] %v335
    %356 = vst [vmem:[%s3 + $0x40] sm:$0xff] %v336
    %357 = vst [vmem:[%s3 + $0x48] sm:$0xff] %v337
    %358 = vst [vmem:[%s3 + $0x50] sm:$0xff] %v338
    %359 = vst [vmem:[%s3 + $0x58] sm:$0xff] %v339
    %360 = vst [vmem:[%s3 + $0x60] sm:$0xff] %v340
    %361 = vst [vmem:[%s3 + $0x68] sm:$0xff] %v341
    %362 = vst [vmem:[%s3 + $0x70] sm:$0xff] %v342
    %363 = vst [vmem:[%s3 + $0x78] sm:$0xff] %v343
    %364 = vst [vmem:[%s3 + $0x80] sm:$0xf] %v344
    %365 = vst [vmem:[%s3 + $0x88] sm:$0xf] %v345
    %366 = vst [vmem:[%s3 + $0x90] sm:$0xf] %v346
    %367 = vst [vmem:[%s3 + $0x98] sm:$0xf] %v347
  $region21: #{crnn_forward.12} parent=0 // pred_fallthru
    _
  // Predicated region
  $region22: #{crnn_forward.12} parent=0 // pred_check
    _
  $region23: #{crnn_forward.12} parent=0 // pred_check_branch
    %369 = sbr.rel (0) target = $region25
  $region24: #{crnn_forward.12} parent=0 // pred_region
    _
  $region25: #{crnn_forward.12} parent=0 // pred_fallthru
    _
  // Predicated region
  $region26: #{crnn_forward.12} parent=0 // pred_check
    _
  $region27: #{crnn_forward.12} parent=0 // pred_check_branch
    %371 = sbr.rel (0) target = $region29
  $region28: #{crnn_forward.12} parent=0 // pred_region
    _
  $region29: #{crnn_forward.12} parent=0 // pred_fallthru
    _

// kernel: crnn_forward.13
$region0: #{crnn_forward.13}
  #allocation0 [shape = 'u32[]', space=smem, size = 0x4, offset = 0x4, fixed_abs, tag = 'smem constant byte address 0x4 - core index']
  #allocation1 [shape = 'u32[72,128]{1,0:T(1,128)}', space=vmem, size = 0x9000, scoped, tag = 'internal scratch']
  #allocation2 [shape = 'f32[2,128]{1,0:T(2,128)}', space=vmem, size = 0x400, scoped, tag = 'scratch operand']
  #allocation3 [shape = 'f32[2,128]{1,0:T(2,128)}', space=vmem, size = 0x400, scoped, tag = 'scratch operand']
  #allocation4 [shape = 'f32[18,2,128]{2,1,0:T(2,128)}', space=vmem, size = 0x4800, scoped, tag = 'scratch operand']
  %s0 = inlined_call_operand.vmem [shape: f32[18,2,512], index: 0, kind: input, shape index: {}]
  %s1 = inlined_call_operand.hbm [shape: f32[128,512], index: 1, kind: input, shape index: {}]
  %s2 = inlined_call_operand.vmem [shape: f32[18,2,128], index: 2, kind: output, shape index: {}]
  %s3 = sld [smem:[#allocation0]]
  $region36: #{crnn_forward.13} parent=0
    _
  %s5 = ssub.s32 1, %s3
  %s6 = scalar_select 0, %s5, %s3
  $region1: #{crnn_forward.13} parent=0
    #allocation5 [shape = 'u8[262144]{0}', space=vmem, size = 0x40000, scoped, tag = 'input window, operand 1, single buffered']
    #allocation6 [shape = 's32[1]{0}', space=sflag, size = 0x4, scoped, tag = 'scoped memory for crnn_forward.13']
    %7 = vsyncpa [#allocation6], 0
    // Predicated region
    $region2: #{crnn_forward.13} parent=1 // pred_check
      _
    $region3: #{crnn_forward.13} parent=1 // pred_check_branch
      %9 = sbr.rel (0) target = $region5
    $region4: #{crnn_forward.13} parent=1 // pred_region
      _
    $region5: #{crnn_forward.13} parent=1 // pred_fallthru
      _
    // Predicated region
    $region6: #{crnn_forward.13} parent=1 // pred_check
      _
    $region7: #{crnn_forward.13} parent=1 // pred_check_branch
      %11 = sbr.rel (0) target = $region9
    $region8: #{crnn_forward.13} parent=1 // pred_region
      %13 = vsyncadd [#allocation6], 0
      %s14 = sshll.u32 %s1, 4
      %s15 = int_to_ptr.hbm [resolvable:$true] %s14
      %s16 = sshll.u32 [#allocation5], 4
      %s17 = int_to_ptr.vmem [resolvable:$true] %s16
      %22 = dma.hbm_to_vmem [thread:$0]  %s15, 8192, %s17, [#allocation6], 512, 512, 32
    $region9: #{crnn_forward.13} parent=1 // pred_fallthru
      _
    // Predicated region
    $region10: #{crnn_forward.13} parent=1 // pred_check
      _
    $region11: #{crnn_forward.13} parent=1 // pred_check_branch
      %24 = sbr.rel (0) target = $region13
    $region12: #{crnn_forward.13} parent=1 // pred_region
      %26 = dma.done [#allocation6], 8192
    $region13: #{crnn_forward.13} parent=1 // pred_fallthru
      _
    %27 = vst [vmem:[#allocation2] sm:$0x3] 0.0
    %28 = vst [vmem:[#allocation3] sm:$0x3] 0.0
    %v29 = vld [vmem:[#allocation5] sm:$0xff]
    %v30 = vld [vmem:[#allocation5 + $0x8] sm:$0xff]
    %v31 = vld [vmem:[#allocation5 + $0x10] sm:$0xff]
    %v32 = vld [vmem:[#allocation5 + $0x18] sm:$0xff]
    %v33 = vld [vmem:[#allocation5 + $0x20] sm:$0xff]
    %v34 = vld [vmem:[#allocation5 + $0x28] sm:$0xff]
    %v35 = vld [vmem:[#allocation5 + $0x30] sm:$0xff]
    %v36 = vld [vmem:[#allocation5 + $0x38] sm:$0xff]
    %v37 = vld [vmem:[#allocation5 + $0x40] sm:$0xff]
    %v38 = vld [vmem:[#allocation5 + $0x48] sm:$0xff]
    %v39 = vld [vmem:[#allocation5 + $0x50] sm:$0xff]
    %v40 = vld [vmem:[#allocation5 + $0x58] sm:$0xff]
    %v41 = vld [vmem:[#allocation5 + $0x60] sm:$0xff]
    %v42 = vld [vmem:[#allocation5 + $0x68] sm:$0xff]
    %v43 = vld [vmem:[#allocation5 + $0x70] sm:$0xff]
    %v44 = vld [vmem:[#allocation5 + $0x78] sm:$0xff]
    %v45 = vld [vmem:[#allocation5 + $0x80] sm:$0xff]
    %v46 = vld [vmem:[#allocation5 + $0x88] sm:$0xff]
    %v47 = vld [vmem:[#allocation5 + $0x90] sm:$0xff]
    %v48 = vld [vmem:[#allocation5 + $0x98] sm:$0xff]
    %v49 = vld [vmem:[#allocation5 + $0xa0] sm:$0xff]
    %v50 = vld [vmem:[#allocation5 + $0xa8] sm:$0xff]
    %v51 = vld [vmem:[#allocation5 + $0xb0] sm:$0xff]
    %v52 = vld [vmem:[#allocation5 + $0xb8] sm:$0xff]
    %v53 = vld [vmem:[#allocation5 + $0xc0] sm:$0xff]
    %v54 = vld [vmem:[#allocation5 + $0xc8] sm:$0xff]
    %v55 = vld [vmem:[#allocation5 + $0xd0] sm:$0xff]
    %v56 = vld [vmem:[#allocation5 + $0xd8] sm:$0xff]
    %v57 = vld [vmem:[#allocation5 + $0xe0] sm:$0xff]
    %v58 = vld [vmem:[#allocation5 + $0xe8] sm:$0xff]
    %v59 = vld [vmem:[#allocation5 + $0xf0] sm:$0xff]
    %v60 = vld [vmem:[#allocation5 + $0xf8] sm:$0xff]
    %v61 = vld [vmem:[#allocation5 + $0x100] sm:$0xff]
    %v62 = vld [vmem:[#allocation5 + $0x108] sm:$0xff]
    %v63 = vld [vmem:[#allocation5 + $0x110] sm:$0xff]
    %v64 = vld [vmem:[#allocation5 + $0x118] sm:$0xff]
    %v65 = vld [vmem:[#allocation5 + $0x120] sm:$0xff]
    %v66 = vld [vmem:[#allocation5 + $0x128] sm:$0xff]
    %v67 = vld [vmem:[#allocation5 + $0x130] sm:$0xff]
    %v68 = vld [vmem:[#allocation5 + $0x138] sm:$0xff]
    %v69 = vld [vmem:[#allocation5 + $0x140] sm:$0xff]
    %v70 = vld [vmem:[#allocation5 + $0x148] sm:$0xff]
    %v71 = vld [vmem:[#allocation5 + $0x150] sm:$0xff]
    %v72 = vld [vmem:[#allocation5 + $0x158] sm:$0xff]
    %v73 = vld [vmem:[#allocation5 + $0x160] sm:$0xff]
    %v74 = vld [vmem:[#allocation5 + $0x168] sm:$0xff]
    %v75 = vld [vmem:[#allocation5 + $0x170] sm:$0xff]
    %v76 = vld [vmem:[#allocation5 + $0x178] sm:$0xff]
    %v77 = vld [vmem:[#allocation5 + $0x180] sm:$0xff]
    %v78 = vld [vmem:[#allocation5 + $0x188] sm:$0xff]
    %v79 = vld [vmem:[#allocation5 + $0x190] sm:$0xff]
    %v80 = vld [vmem:[#allocation5 + $0x198] sm:$0xff]
    %v81 = vld [vmem:[#allocation5 + $0x1a0] sm:$0xff]
    %v82 = vld [vmem:[#allocation5 + $0x1a8] sm:$0xff]
    %v83 = vld [vmem:[#allocation5 + $0x1b0] sm:$0xff]
    %v84 = vld [vmem:[#allocation5 + $0x1b8] sm:$0xff]
    %v85 = vld [vmem:[#allocation5 + $0x1c0] sm:$0xff]
    %v86 = vld [vmem:[#allocation5 + $0x1c8] sm:$0xff]
    %v87 = vld [vmem:[#allocation5 + $0x1d0] sm:$0xff]
    %v88 = vld [vmem:[#allocation5 + $0x1d8] sm:$0xff]
    %v89 = vld [vmem:[#allocation5 + $0x1e0] sm:$0xff]
    %v90 = vld [vmem:[#allocation5 + $0x1e8] sm:$0xff]
    %v91 = vld [vmem:[#allocation5 + $0x1f0] sm:$0xff]
    %v92 = vld [vmem:[#allocation5 + $0x1f8] sm:$0xff]
    %v93 = vlaneseq
    %v94 = vand.u32 %v93, 127
    %v95 = vadd.s32 %v94, 128
    %v96 = vadd.s32 %v94, 256
    %v97 = vadd.s32 %v94, 384
    %vm98 = vcmp.lt.s32.totalorder %v94, 0
    %v99 = vsub.s32 0, %v94
    %v100 = vsel %vm98, %v99, %v94
    %v101 = vshrl.u32 %v100, 7
    %v102 = vand.u32 %v100, 127
    %v103 = vsub.s32 0, %v102
    %v104 = vsel %vm98, %v103, %v102
    %vm105 = vcmp.lt.s32.totalorder %v95, 0
    %v106 = vsub.s32 0, %v95
    %v107 = vsel %vm105, %v106, %v95
    %v108 = vshrl.u32 %v107, 7
    %v109 = vand.u32 %v107, 127
    %v110 = vsub.s32 0, %v109
    %v111 = vsel %vm105, %v110, %v109
    %vm112 = vcmp.lt.s32.totalorder %v96, 0
    %v113 = vsub.s32 0, %v96
    %v114 = vsel %vm112, %v113, %v96
    %v115 = vshrl.u32 %v114, 7
    %v116 = vand.u32 %v114, 127
    %v117 = vsub.s32 0, %v116
    %v118 = vsel %vm112, %v117, %v116
    %vm119 = vcmp.lt.s32.totalorder %v97, 0
    %v120 = vsub.s32 0, %v97
    %v121 = vsel %vm119, %v120, %v97
    %v122 = vshrl.u32 %v121, 7
    %v123 = vand.u32 %v121, 127
    %v124 = vsub.s32 0, %v123
    %v125 = vsel %vm119, %v124, %v123
    %vm126 = vcmp.ne.s32.totalorder %v104, 0
    %vm127 = vcmp.ne.s32.totalorder %v111, 0
    %vm128 = vcmp.ne.s32.totalorder %v118, 0
    %vm129 = vcmp.ne.s32.totalorder %v125, 0
    %vm130 = vcmp.lt.s32.totalorder %v104, 0
    %vm131 = vcmp.lt.s32.totalorder %v111, 0
    %vm132 = vcmp.lt.s32.totalorder %v118, 0
    %vm133 = vcmp.lt.s32.totalorder %v125, 0
    %vm134 = vmand %vm130, %vm126
    %vm135 = vmand %vm131, %vm127
    %vm136 = vmand %vm132, %vm128
    %vm137 = vmand %vm133, %vm129
    %v138 = vadd.s32 %v104, 128
    %v139 = vadd.s32 %v111, 128
    %v140 = vadd.s32 %v118, 128
    %v141 = vadd.s32 %v125, 128
    %v142 = vsel %vm134, %v138, %v104
    %v143 = vsel %vm135, %v139, %v111
    %v144 = vsel %vm136, %v140, %v118
    %v145 = vsel %vm137, %v141, %v125
    %vm146 = vcmp.lt.s32.totalorder %v142, 64
    %vm147 = vcmp.lt.s32.totalorder %v143, 64
    %vm148 = vcmp.lt.s32.totalorder %v144, 64
    %vm149 = vcmp.lt.s32.totalorder %v145, 64
    loop: start=0, step=1, limit=18
    $region14: #{crnn_forward.13} parent=1 // loop_pre_header
      _
    $region15: #{crnn_forward.13} parent=1 // loop_header
      %s151 = sphi 0, %s155
      %p152 = scmp.ge.s32.totalorder %s151, 18
    $region16: #{crnn_forward.13} parent=1 // loop_header_branch
      %154 = sbr.rel (%p152) target = $region20
    $region17: #{crnn_forward.13} parent=1 // loop_body
      %s156 = ssub.s32 17, %s151
      %s157 = smul.u32 %s151, 4
      %s158 = smul.addr %s157, 2
      %s159 = scalar_lea.vmem %s0, %s158
      %v160 = vld [vmem:[%s159] sm:$0xff]
      %s161 = smul.u32 %s156, 4
      %s162 = smul.addr %s161, 2
      %s163 = scalar_lea.vmem %s0, %s162
      %v164 = vld [vmem:[%s163] sm:$0xff]
      %166 = vst [vmem:[#allocation1] ss:$4 sm:$0xff] %v160
      %v167 = vld.sshfl [vmem:[#allocation1] sm:$0xff pattern:$0x73625140]
      %v168 = vld.sshfl [vmem:[#allocation1 + $0x8] sm:$0xff pattern:$0x73625140]
      %v169 = vld.sshfl [vmem:[#allocation1 + $0x10] sm:$0xff pattern:$0x73625140]
      %v170 = vld.sshfl [vmem:[#allocation1 + $0x18] sm:$0xff pattern:$0x73625140]
      %176 = vst [vmem:[#allocation1] ss:$4 sm:$0xff] %v164
      %v177 = vld.sshfl [vmem:[#allocation1] sm:$0xff pattern:$0x73625140]
      %v178 = vld.sshfl [vmem:[#allocation1 + $0x8] sm:$0xff pattern:$0x73625140]
      %v179 = vld.sshfl [vmem:[#allocation1 + $0x10] sm:$0xff pattern:$0x73625140]
      %v180 = vld.sshfl [vmem:[#allocation1 + $0x18] sm:$0xff pattern:$0x73625140]
      %v185 = vsel %vm146, %v167, %v177
      %v186 = vsel %vm147, %v168, %v178
      %v187 = vsel %vm148, %v169, %v179
      %v188 = vsel %vm149, %v170, %v180
      %v189 = vld [vmem:[#allocation2] sm:$0x3]
      %190 = vmatpush.msra.mxu0 %v89
      %191 = vmatpush.msra.mxu0 %v85
      %192 = vmatpush.msra.mxu0 %v81
      %193 = vmatpush.msra.mxu0 %v77
      %194 = vmatpush.msra.mxu0 %v73
      %195 = vmatpush.msra.mxu0 %v69
      %196 = vmatpush.msra.mxu0 %v65
      %197 = vmatpush.msra.mxu0 %v61
      %198 = vmatpush.msra.mxu0 %v57
      %199 = vmatpush.msra.mxu0 %v53
      %200 = vmatpush.msra.mxu0 %v49
      %201 = vmatpush.msra.mxu0 %v45
      %202 = vmatpush.msra.mxu0 %v41
      %203 = vmatpush.msra.mxu0 %v37
      %204 = vmatpush.msra.mxu0 %v33
      %205 = vmatpush.msra.mxu0 %v29
      %206 = vmatmul.f32.gmra.mxu0 %v189
      %v207 = vpop.f32.mrf.mxu0
      %v208 = vadd.f32 0.0, %v207
      %209 = vdwg.mxu0
      %210 = vmatpush.msra.mxu0 %v90
      %211 = vmatpush.msra.mxu0 %v86
      %212 = vmatpush.msra.mxu0 %v82
      %213 = vmatpush.msra.mxu0 %v78
      %214 = vmatpush.msra.mxu0 %v74
      %215 = vmatpush.msra.mxu0 %v70
      %216 = vmatpush.msra.mxu0 %v66
      %217 = vmatpush.msra.mxu0 %v62
      %218 = vmatpush.msra.mxu0 %v58
      %219 = vmatpush.msra.mxu0 %v54
      %220 = vmatpush.msra.mxu0 %v50
      %221 = vmatpush.msra.mxu0 %v46
      %222 = vmatpush.msra.mxu0 %v42
      %223 = vmatpush.msra.mxu0 %v38
      %224 = vmatpush.msra.mxu0 %v34
      %225 = vmatpush.msra.mxu0 %v30
      %226 = vmatmul.f32.gmra.mxu0 %v189
      %v227 = vpop.f32.mrf.mxu0
      %v228 = vadd.f32 0.0, %v227
      %229 = vdwg.mxu0
      %230 = vmatpush.msra.mxu0 %v91
      %231 = vmatpush.msra.mxu0 %v87
      %232 = vmatpush.msra.mxu0 %v83
      %233 = vmatpush.msra.mxu0 %v79
      %234 = vmatpush.msra.mxu0 %v75
      %235 = vmatpush.msra.mxu0 %v71
      %236 = vmatpush.msra.mxu0 %v67
      %237 = vmatpush.msra.mxu0 %v63
      %238 = vmatpush.msra.mxu0 %v59
      %239 = vmatpush.msra.mxu0 %v55
      %240 = vmatpush.msra.mxu0 %v51
      %241 = vmatpush.msra.mxu0 %v47
      %242 = vmatpush.msra.mxu0 %v43
      %243 = vmatpush.msra.mxu0 %v39
      %244 = vmatpush.msra.mxu0 %v35
      %245 = vmatpush.msra.mxu0 %v31
      %246 = vmatmul.f32.gmra.mxu0 %v189
      %v247 = vpop.f32.mrf.mxu0
      %v248 = vadd.f32 0.0, %v247
      %249 = vdwg.mxu0
      %250 = vmatpush.msra.mxu0 %v92
      %251 = vmatpush.msra.mxu0 %v88
      %252 = vmatpush.msra.mxu0 %v84
      %253 = vmatpush.msra.mxu0 %v80
      %254 = vmatpush.msra.mxu0 %v76
      %255 = vmatpush.msra.mxu0 %v72
      %256 = vmatpush.msra.mxu0 %v68
      %257 = vmatpush.msra.mxu0 %v64
      %258 = vmatpush.msra.mxu0 %v60
      %259 = vmatpush.msra.mxu0 %v56
      %260 = vmatpush.msra.mxu0 %v52
      %261 = vmatpush.msra.mxu0 %v48
      %262 = vmatpush.msra.mxu0 %v44
      %263 = vmatpush.msra.mxu0 %v40
      %264 = vmatpush.msra.mxu0 %v36
      %265 = vmatpush.msra.mxu0 %v32
      %266 = vmatmul.f32.gmra.mxu0 %v189
      %v267 = vpop.f32.mrf.mxu0
      %v268 = vadd.f32 0.0, %v267
      %269 = vdwg.mxu0
      %v270 = vadd.f32 %v185, %v208
      %v271 = vadd.f32 %v186, %v228
      %v272 = vadd.f32 %v187, %v248
      %v273 = vadd.f32 %v188, %v268
      %v274 = vsub.f32 0.0, %v270
      %v275 = vmul.f32 %v274, 1.442695
      %v276 = vpow.pop %v275
      %v277 = vadd.f32 %v276, 1.0
      %v278 = vrcp.pop %v277
      %v279 = vmul.f32 %v277, %v278
      %v280 = vsub.f32 1.0, %v279
      %v281 = vmul.f32 %v278, %v280
      %v282 = vadd.f32 %v278, %v281
      %vm283 = vweird.f32 %v277
      %vm284 = vweird.f32 %v278
      %vm285 = vmor %vm283, %vm284
      %v286 = vsel %vm285, %v278, %v282
      %v287 = vand.u32 2147483647, %v277
      %vm288 = vcmp.eq.f32.partialorder %v287, 8.507059e+37
      %v289 = vand.u32 %v277, 2147483648
      %v290 = vor.u32 1.1754944e-38, %v289
      %v291 = vsel %vm288, %v290, %v286
      %v292 = vmul.f32 1.0, %v291
      %v293 = vsub.f32 0.0, %v271
      %v294 = vmul.f32 %v293, 1.442695
      %v295 = vpow.pop %v294
      %v296 = vadd.f32 %v295, 1.0
      %v297 = vrcp.pop %v296
      %v298 = vmul.f32 %v296, %v297
      %v299 = vsub.f32 1.0, %v298
      %v300 = vmul.f32 %v297, %v299
      %v301 = vadd.f32 %v297, %v300
      %vm302 = vweird.f32 %v296
      %vm303 = vweird.f32 %v297
      %vm304 = vmor %vm302, %vm303
      %v305 = vsel %vm304, %v297, %v301
      %v306 = vand.u32 2147483647, %v296
      %vm307 = vcmp.eq.f32.partialorder %v306, 8.507059e+37
      %v308 = vand.u32 %v296, 2147483648
      %v309 = vor.u32 1.1754944e-38, %v308
      %v310 = vsel %vm307, %v309, %v305
      %v311 = vmul.f32 1.0, %v310
      %v312 = vtanh.pop %v272
      %v313 = vsub.f32 0.0, %v273
      %v314 = vmul.f32 %v313, 1.442695
      %v315 = vpow.pop %v314
      %v316 = vadd.f32 %v315, 1.0
      %v317 = vrcp.pop %v316
      %v318 = vmul.f32 %v316, %v317
      %v319 = vsub.f32 1.0, %v318
      %v320 = vmul.f32 %v317, %v319
      %v321 = vadd.f32 %v317, %v320
      %vm322 = vweird.f32 %v316
      %vm323 = vweird.f32 %v317
      %vm324 = vmor %vm322, %vm323
      %v325 = vsel %vm324, %v317, %v321
      %v326 = vand.u32 2147483647, %v316
      %vm327 = vcmp.eq.f32.partialorder %v326, 8.507059e+37
      %v328 = vand.u32 %v316, 2147483648
      %v329 = vor.u32 1.1754944e-38, %v328
      %v330 = vsel %vm327, %v329, %v325
      %v331 = vmul.f32 1.0, %v330
      %v332 = vld [vmem:[#allocation3] sm:$0x3]
      %v333 = vmul.f32 %v311, %v332
      %v334 = vmul.f32 %v292, %v312
      %v335 = vadd.f32 %v333, %v334
      %v336 = vtanh.pop %v335
      %v337 = vmul.f32 %v331, %v336
      %338 = vst [vmem:[#allocation3] sm:$0x3] %v335
      %339 = vst [vmem:[#allocation2] sm:$0x3] %v337
      %s340 = smul.u32 %s151, 2
      %s341 = scalar_lea.vmem [#allocation4], %s340
      %342 = vst [vmem:[%s341] sm:$0x3] %v337
    $region18: #{crnn_forward.13} parent=1 // loop_footer
      %s155 = sadd.s32 1, %s151
    $region19: #{crnn_forward.13} parent=1 // loop_footer_branch
      %150 = sbr.rel target = $region15
    $region20: #{crnn_forward.13} parent=1 // loop_exit
      _
    loop: start=0, step=1, limit=18
    $region21: #{crnn_forward.13} parent=1 // loop_pre_header
      _
    $region22: #{crnn_forward.13} parent=1 // loop_header
      %s344 = sphi 0, %s348
      %p345 = scmp.ge.s32.totalorder %s344, 18
    $region23: #{crnn_forward.13} parent=1 // loop_header_branch
      %347 = sbr.rel (%p345) target = $region27
    $region24: #{crnn_forward.13} parent=1 // loop_body
      %s349 = ssub.s32 17, %s344
      %s350 = smul.u32 %s344, 2
      %s351 = scalar_lea.vmem [#allocation4], %s350
      %v352 = vld [vmem:[%s351] sm:$0x3]
      %s353 = smul.u32 %s349, 2
      %s354 = scalar_lea.vmem [#allocation4], %s353
      %v355 = vld [vmem:[%s354] sm:$0x3]
      %v356 = vsel %vm146, %v352, %v355
      %s357 = scalar_lea.vmem %s2, %s350
      %358 = vst [vmem:[%s357] sm:$0x3] %v356
    $region25: #{crnn_forward.13} parent=1 // loop_footer
      %s348 = sadd.s32 1, %s344
    $region26: #{crnn_forward.13} parent=1 // loop_footer_branch
      %343 = sbr.rel target = $region22
    $region27: #{crnn_forward.13} parent=1 // loop_exit
      _
    // Predicated region
    $region28: #{crnn_forward.13} parent=1 // pred_check
      _
    $region29: #{crnn_forward.13} parent=1 // pred_check_branch
      %360 = sbr.rel (0) target = $region31
    $region30: #{crnn_forward.13} parent=1 // pred_region
      _
    $region31: #{crnn_forward.13} parent=1 // pred_fallthru
      _
    // Predicated region
    $region32: #{crnn_forward.13} parent=1 // pred_check
      _
    $region33: #{crnn_forward.13} parent=1 // pred_check_branch
      %362 = sbr.rel (0) target = $region35
    $region34: #{crnn_forward.13} parent=1 // pred_region
      _
    $region35: #{crnn_forward.13} parent=1 // pred_fallthru
      _
    %363 = vsyncpa [#allocation6], 1

// kernel: crnn_forward.14
$region0: #{crnn_forward.14}
  #allocation0 [shape = 'u32[]', space=smem, size = 0x4, offset = 0x4, fixed_abs, tag = 'smem constant byte address 0x4 - core index']
  #allocation1 [shape = 'u32[72,128]{1,0:T(1,128)}', space=vmem, size = 0x9000, scoped, tag = 'internal scratch']
  #allocation2 [shape = 'f32[36,512]{1,0:T(8,128)}', space=vmem, size = 0x14000, scoped, tag = 'scratch operand']
  %s0 = inlined_call_operand.vmem [shape: f32[36,128], index: 0, kind: input, shape index: {}]
  %s1 = inlined_call_operand.hbm [shape: f32[128,512], index: 1, kind: input, shape index: {}]
  %s2 = inlined_call_operand.vmem [shape: f32[1,512], index: 2, kind: input, shape index: {}]
  %s3 = inlined_call_operand.vmem [shape: f32[36,512], index: 3, kind: output, shape index: {}]
  %s4 = sld [smem:[#allocation0]]
  $region34: #{crnn_forward.14} parent=0
    _
  %s6 = ssub.s32 1, %s4
  %s7 = scalar_select 0, %s6, %s4
  $region1: #{crnn_forward.14} parent=0
    #allocation3 [shape = 'u8[262144]{0}', space=vmem, size = 0x40000, scoped, tag = 'input window, operand 1, single buffered']
    #allocation4 [shape = 's32[1]{0}', space=sflag, size = 0x4, scoped, tag = 'scoped memory for crnn_forward.14']
    %8 = vsyncpa [#allocation4], 0
    // Predicated region
    $region2: #{crnn_forward.14} parent=1 // pred_check
      _
    $region3: #{crnn_forward.14} parent=1 // pred_check_branch
      %10 = sbr.rel (0) target = $region5
    $region4: #{crnn_forward.14} parent=1 // pred_region
      _
    $region5: #{crnn_forward.14} parent=1 // pred_fallthru
      _
    // Predicated region
    $region6: #{crnn_forward.14} parent=1 // pred_check
      _
    $region7: #{crnn_forward.14} parent=1 // pred_check_branch
      %12 = sbr.rel (0) target = $region9
    $region8: #{crnn_forward.14} parent=1 // pred_region
      %14 = vsyncadd [#allocation4], 0
      %s15 = sshll.u32 %s1, 4
      %s16 = int_to_ptr.hbm [resolvable:$true] %s15
      %s17 = sshll.u32 [#allocation3], 4
      %s18 = int_to_ptr.vmem [resolvable:$true] %s17
      %23 = dma.hbm_to_vmem [thread:$0]  %s16, 8192, %s18, [#allocation4], 512, 512, 32
    $region9: #{crnn_forward.14} parent=1 // pred_fallthru
      _
    // Predicated region
    $region10: #{crnn_forward.14} parent=1 // pred_check
      _
    $region11: #{crnn_forward.14} parent=1 // pred_check_branch
      %25 = sbr.rel (0) target = $region13
    $region12: #{crnn_forward.14} parent=1 // pred_region
      _
    $region13: #{crnn_forward.14} parent=1 // pred_fallthru
      _
    // Predicated region
    $region14: #{crnn_forward.14} parent=1 // pred_check
      _
    $region15: #{crnn_forward.14} parent=1 // pred_check_branch
      %27 = sbr.rel (0) target = $region17
    $region16: #{crnn_forward.14} parent=1 // pred_region
      %29 = dma.done [#allocation4], 8192
    $region17: #{crnn_forward.14} parent=1 // pred_fallthru
      _
    %p30 = scmp.eq.s32.totalorder 0, 0
    // Predicated region
    $region18: #{crnn_forward.14} parent=1 // pred_check
      %p31 = pneg %p30
    $region19: #{crnn_forward.14} parent=1 // pred_check_branch
      %33 = sbr.rel (%p31) target = $region21
    $region20: #{crnn_forward.14} parent=1 // pred_region
      %34 = vst [vmem:[#allocation2] sm:$0xff] 0.0
      %35 = vst [vmem:[#allocation2 + $0x8] sm:$0xff] 0.0
      %36 = vst [vmem:[#allocation2 + $0x10] sm:$0xff] 0.0
      %37 = vst [vmem:[#allocation2 + $0x18] sm:$0xff] 0.0
      %38 = vst [vmem:[#allocation2 + $0x20] sm:$0xff] 0.0
      %39 = vst [vmem:[#allocation2 + $0x28] sm:$0xff] 0.0
      %40 = vst [vmem:[#allocation2 + $0x30] sm:$0xff] 0.0
      %41 = vst [vmem:[#allocation2 + $0x38] sm:$0xff] 0.0
      %42 = vst [vmem:[#allocation2 + $0x40] sm:$0xff] 0.0
      %43 = vst [vmem:[#allocation2 + $0x48] sm:$0xff] 0.0
      %44 = vst [vmem:[#allocation2 + $0x50] sm:$0xff] 0.0
      %45 = vst [vmem:[#allocation2 + $0x58] sm:$0xff] 0.0
      %46 = vst [vmem:[#allocation2 + $0x60] sm:$0xff] 0.0
      %47 = vst [vmem:[#allocation2 + $0x68] sm:$0xff] 0.0
      %48 = vst [vmem:[#allocation2 + $0x70] sm:$0xff] 0.0
      %49 = vst [vmem:[#allocation2 + $0x78] sm:$0xff] 0.0
      %50 = vst [vmem:[#allocation2 + $0x80] sm:$0xf] 0.0
      %51 = vst [vmem:[#allocation2 + $0x88] sm:$0xf] 0.0
      %52 = vst [vmem:[#allocation2 + $0x90] sm:$0xf] 0.0
      %53 = vst [vmem:[#allocation2 + $0x98] sm:$0xf] 0.0
    $region21: #{crnn_forward.14} parent=1 // pred_fallthru
      _
    %v54 = vld [vmem:[#allocation2] sm:$0xff]
    %v55 = vld [vmem:[#allocation2 + $0x8] sm:$0xff]
    %v56 = vld [vmem:[#allocation2 + $0x10] sm:$0xff]
    %v57 = vld [vmem:[#allocation2 + $0x18] sm:$0xff]
    %v58 = vld [vmem:[#allocation2 + $0x20] sm:$0xff]
    %v59 = vld [vmem:[#allocation2 + $0x28] sm:$0xff]
    %v60 = vld [vmem:[#allocation2 + $0x30] sm:$0xff]
    %v61 = vld [vmem:[#allocation2 + $0x38] sm:$0xff]
    %v62 = vld [vmem:[#allocation2 + $0x40] sm:$0xff]
    %v63 = vld [vmem:[#allocation2 + $0x48] sm:$0xff]
    %v64 = vld [vmem:[#allocation2 + $0x50] sm:$0xff]
    %v65 = vld [vmem:[#allocation2 + $0x58] sm:$0xff]
    %v66 = vld [vmem:[#allocation2 + $0x60] sm:$0xff]
    %v67 = vld [vmem:[#allocation2 + $0x68] sm:$0xff]
    %v68 = vld [vmem:[#allocation2 + $0x70] sm:$0xff]
    %v69 = vld [vmem:[#allocation2 + $0x78] sm:$0xff]
    %v70 = vld [vmem:[#allocation2 + $0x80] sm:$0xf]
    %v71 = vld [vmem:[#allocation2 + $0x88] sm:$0xf]
    %v72 = vld [vmem:[#allocation2 + $0x90] sm:$0xf]
    %v73 = vld [vmem:[#allocation2 + $0x98] sm:$0xf]
    %v74 = vld [vmem:[%s0] sm:$0xff]
    %v75 = vld [vmem:[%s0 + $0x8] sm:$0xff]
    %v76 = vld [vmem:[%s0 + $0x10] sm:$0xff]
    %v77 = vld [vmem:[%s0 + $0x18] sm:$0xff]
    %v78 = vld [vmem:[%s0 + $0x20] sm:$0xf]
    %v79 = vld [vmem:[#allocation3] sm:$0xff]
    %v80 = vld [vmem:[#allocation3 + $0x8] sm:$0xff]
    %v81 = vld [vmem:[#allocation3 + $0x10] sm:$0xff]
    %v82 = vld [vmem:[#allocation3 + $0x18] sm:$0xff]
    %v83 = vld [vmem:[#allocation3 + $0x20] sm:$0xff]
    %v84 = vld [vmem:[#allocation3 + $0x28] sm:$0xff]
    %v85 = vld [vmem:[#allocation3 + $0x30] sm:$0xff]
    %v86 = vld [vmem:[#allocation3 + $0x38] sm:$0xff]
    %v87 = vld [vmem:[#allocation3 + $0x40] sm:$0xff]
    %v88 = vld [vmem:[#allocation3 + $0x48] sm:$0xff]
    %v89 = vld [vmem:[#allocation3 + $0x50] sm:$0xff]
    %v90 = vld [vmem:[#allocation3 + $0x58] sm:$0xff]
    %v91 = vld [vmem:[#allocation3 + $0x60] sm:$0xff]
    %v92 = vld [vmem:[#allocation3 + $0x68] sm:$0xff]
    %v93 = vld [vmem:[#allocation3 + $0x70] sm:$0xff]
    %v94 = vld [vmem:[#allocation3 + $0x78] sm:$0xff]
    %v95 = vld [vmem:[#allocation3 + $0x80] sm:$0xff]
    %v96 = vld [vmem:[#allocation3 + $0x88] sm:$0xff]
    %v97 = vld [vmem:[#allocation3 + $0x90] sm:$0xff]
    %v98 = vld [vmem:[#allocation3 + $0x98] sm:$0xff]
    %v99 = vld [vmem:[#allocation3 + $0xa0] sm:$0xff]
    %v100 = vld [vmem:[#allocation3 + $0xa8] sm:$0xff]
    %v101 = vld [vmem:[#allocation3 + $0xb0] sm:$0xff]
    %v102 = vld [vmem:[#allocation3 + $0xb8] sm:$0xff]
    %v103 = vld [vmem:[#allocation3 + $0xc0] sm:$0xff]
    %v104 = vld [vmem:[#allocation3 + $0xc8] sm:$0xff]
    %v105 = vld [vmem:[#allocation3 + $0xd0] sm:$0xff]
    %v106 = vld [vmem:[#allocation3 + $0xd8] sm:$0xff]
    %v107 = vld [vmem:[#allocation3 + $0xe0] sm:$0xff]
    %v108 = vld [vmem:[#allocation3 + $0xe8] sm:$0xff]
    %v109 = vld [vmem:[#allocation3 + $0xf0] sm:$0xff]
    %v110 = vld [vmem:[#allocation3 + $0xf8] sm:$0xff]
    %v111 = vld [vmem:[#allocation3 + $0x100] sm:$0xff]
    %v112 = vld [vmem:[#allocation3 + $0x108] sm:$0xff]
    %v113 = vld [vmem:[#allocation3 + $0x110] sm:$0xff]
    %v114 = vld [vmem:[#allocation3 + $0x118] sm:$0xff]
    %v115 = vld [vmem:[#allocation3 + $0x120] sm:$0xff]
    %v116 = vld [vmem:[#allocation3 + $0x128] sm:$0xff]
    %v117 = vld [vmem:[#allocation3 + $0x130] sm:$0xff]
    %v118 = vld [vmem:[#allocation3 + $0x138] sm:$0xff]
    %v119 = vld [vmem:[#allocation3 + $0x140] sm:$0xff]
    %v120 = vld [vmem:[#allocation3 + $0x148] sm:$0xff]
    %v121 = vld [vmem:[#allocation3 + $0x150] sm:$0xff]
    %v122 = vld [vmem:[#allocation3 + $0x158] sm:$0xff]
    %v123 = vld [vmem:[#allocation3 + $0x160] sm:$0xff]
    %v124 = vld [vmem:[#allocation3 + $0x168] sm:$0xff]
    %v125 = vld [vmem:[#allocation3 + $0x170] sm:$0xff]
    %v126 = vld [vmem:[#allocation3 + $0x178] sm:$0xff]
    %v127 = vld [vmem:[#allocation3 + $0x180] sm:$0xff]
    %v128 = vld [vmem:[#allocation3 + $0x188] sm:$0xff]
    %v129 = vld [vmem:[#allocation3 + $0x190] sm:$0xff]
    %v130 = vld [vmem:[#allocation3 + $0x198] sm:$0xff]
    %v131 = vld [vmem:[#allocation3 + $0x1a0] sm:$0xff]
    %v132 = vld [vmem:[#allocation3 + $0x1a8] sm:$0xff]
    %v133 = vld [vmem:[#allocation3 + $0x1b0] sm:$0xff]
    %v134 = vld [vmem:[#allocation3 + $0x1b8] sm:$0xff]
    %v135 = vld [vmem:[#allocation3 + $0x1c0] sm:$0xff]
    %v136 = vld [vmem:[#allocation3 + $0x1c8] sm:$0xff]
    %v137 = vld [vmem:[#allocation3 + $0x1d0] sm:$0xff]
    %v138 = vld [vmem:[#allocation3 + $0x1d8] sm:$0xff]
    %v139 = vld [vmem:[#allocation3 + $0x1e0] sm:$0xff]
    %v140 = vld [vmem:[#allocation3 + $0x1e8] sm:$0xff]
    %v141 = vld [vmem:[#allocation3 + $0x1f0] sm:$0xff]
    %v142 = vld [vmem:[#allocation3 + $0x1f8] sm:$0xff]
    %143 = vmatpush.msra.mxu0 %v139
    %144 = vmatpush.msra.mxu0 %v135
    %145 = vmatpush.msra.mxu0 %v131
    %146 = vmatpush.msra.mxu0 %v127
    %147 = vmatpush.msra.mxu0 %v123
    %148 = vmatpush.msra.mxu0 %v119
    %149 = vmatpush.msra.mxu0 %v115
    %150 = vmatpush.msra.mxu0 %v111
    %151 = vmatpush.msra.mxu0 %v107
    %152 = vmatpush.msra.mxu0 %v103
    %153 = vmatpush.msra.mxu0 %v99
    %154 = vmatpush.msra.mxu0 %v95
    %155 = vmatpush.msra.mxu0 %v91
    %156 = vmatpush.msra.mxu0 %v87
    %157 = vmatpush.msra.mxu0 %v83
    %158 = vmatpush.msra.mxu0 %v79
    %159 = vmatmul.f32.gmra.mxu0 %v74
    %v160 = vpop.f32.mrf.mxu0
    %v161 = vadd.f32 0.0, %v160
    %162 = vmatmul.f32.gmra.mxu0 %v75
    %v163 = vpop.f32.mrf.mxu0
    %v164 = vadd.f32 0.0, %v163
    %165 = vmatmul.f32.gmra.mxu0 %v76
    %v166 = vpop.f32.mrf.mxu0
    %v167 = vadd.f32 0.0, %v166
    %168 = vmatmul.f32.gmra.mxu0 %v77
    %v169 = vpop.f32.mrf.mxu0
    %v170 = vadd.f32 0.0, %v169
    %171 = vmatmul.f32.gmra.mxu0 %v78
    %v172 = vpop.f32.mrf.mxu0
    %v173 = vadd.f32 0.0, %v172
    %174 = vdwg.mxu0
    %175 = vmatpush.msra.mxu0 %v140
    %176 = vmatpush.msra.mxu0 %v136
    %177 = vmatpush.msra.mxu0 %v132
    %178 = vmatpush.msra.mxu0 %v128
    %179 = vmatpush.msra.mxu0 %v124
    %180 = vmatpush.msra.mxu0 %v120
    %181 = vmatpush.msra.mxu0 %v116
    %182 = vmatpush.msra.mxu0 %v112
    %183 = vmatpush.msra.mxu0 %v108
    %184 = vmatpush.msra.mxu0 %v104
    %185 = vmatpush.msra.mxu0 %v100
    %186 = vmatpush.msra.mxu0 %v96
    %187 = vmatpush.msra.mxu0 %v92
    %188 = vmatpush.msra.mxu0 %v88
    %189 = vmatpush.msra.mxu0 %v84
    %190 = vmatpush.msra.mxu0 %v80
    %191 = vmatmul.f32.gmra.mxu0 %v74
    %v192 = vpop.f32.mrf.mxu0
    %v193 = vadd.f32 0.0, %v192
    %194 = vmatmul.f32.gmra.mxu0 %v75
    %v195 = vpop.f32.mrf.mxu0
    %v196 = vadd.f32 0.0, %v195
    %197 = vmatmul.f32.gmra.mxu0 %v76
    %v198 = vpop.f32.mrf.mxu0
    %v199 = vadd.f32 0.0, %v198
    %200 = vmatmul.f32.gmra.mxu0 %v77
    %v201 = vpop.f32.mrf.mxu0
    %v202 = vadd.f32 0.0, %v201
    %203 = vmatmul.f32.gmra.mxu0 %v78
    %v204 = vpop.f32.mrf.mxu0
    %v205 = vadd.f32 0.0, %v204
    %206 = vdwg.mxu0
    %207 = vmatpush.msra.mxu0 %v141
    %208 = vmatpush.msra.mxu0 %v137
    %209 = vmatpush.msra.mxu0 %v133
    %210 = vmatpush.msra.mxu0 %v129
    %211 = vmatpush.msra.mxu0 %v125
    %212 = vmatpush.msra.mxu0 %v121
    %213 = vmatpush.msra.mxu0 %v117
    %214 = vmatpush.msra.mxu0 %v113
    %215 = vmatpush.msra.mxu0 %v109
    %216 = vmatpush.msra.mxu0 %v105
    %217 = vmatpush.msra.mxu0 %v101
    %218 = vmatpush.msra.mxu0 %v97
    %219 = vmatpush.msra.mxu0 %v93
    %220 = vmatpush.msra.mxu0 %v89
    %221 = vmatpush.msra.mxu0 %v85
    %222 = vmatpush.msra.mxu0 %v81
    %223 = vmatmul.f32.gmra.mxu0 %v74
    %v224 = vpop.f32.mrf.mxu0
    %v225 = vadd.f32 0.0, %v224
    %226 = vmatmul.f32.gmra.mxu0 %v75
    %v227 = vpop.f32.mrf.mxu0
    %v228 = vadd.f32 0.0, %v227
    %229 = vmatmul.f32.gmra.mxu0 %v76
    %v230 = vpop.f32.mrf.mxu0
    %v231 = vadd.f32 0.0, %v230
    %232 = vmatmul.f32.gmra.mxu0 %v77
    %v233 = vpop.f32.mrf.mxu0
    %v234 = vadd.f32 0.0, %v233
    %235 = vmatmul.f32.gmra.mxu0 %v78
    %v236 = vpop.f32.mrf.mxu0
    %v237 = vadd.f32 0.0, %v236
    %238 = vdwg.mxu0
    %239 = vmatpush.msra.mxu0 %v142
    %240 = vmatpush.msra.mxu0 %v138
    %241 = vmatpush.msra.mxu0 %v134
    %242 = vmatpush.msra.mxu0 %v130
    %243 = vmatpush.msra.mxu0 %v126
    %244 = vmatpush.msra.mxu0 %v122
    %245 = vmatpush.msra.mxu0 %v118
    %246 = vmatpush.msra.mxu0 %v114
    %247 = vmatpush.msra.mxu0 %v110
    %248 = vmatpush.msra.mxu0 %v106
    %249 = vmatpush.msra.mxu0 %v102
    %250 = vmatpush.msra.mxu0 %v98
    %251 = vmatpush.msra.mxu0 %v94
    %252 = vmatpush.msra.mxu0 %v90
    %253 = vmatpush.msra.mxu0 %v86
    %254 = vmatpush.msra.mxu0 %v82
    %255 = vmatmul.f32.gmra.mxu0 %v74
    %v256 = vpop.f32.mrf.mxu0
    %v257 = vadd.f32 0.0, %v256
    %258 = vmatmul.f32.gmra.mxu0 %v75
    %v259 = vpop.f32.mrf.mxu0
    %v260 = vadd.f32 0.0, %v259
    %261 = vmatmul.f32.gmra.mxu0 %v76
    %v262 = vpop.f32.mrf.mxu0
    %v263 = vadd.f32 0.0, %v262
    %264 = vmatmul.f32.gmra.mxu0 %v77
    %v265 = vpop.f32.mrf.mxu0
    %v266 = vadd.f32 0.0, %v265
    %267 = vmatmul.f32.gmra.mxu0 %v78
    %v268 = vpop.f32.mrf.mxu0
    %v269 = vadd.f32 0.0, %v268
    %270 = vdwg.mxu0
    %v271 = vadd.f32 %v54, %v161
    %v272 = vadd.f32 %v55, %v193
    %v273 = vadd.f32 %v56, %v225
    %v274 = vadd.f32 %v57, %v257
    %v275 = vadd.f32 %v58, %v164
    %v276 = vadd.f32 %v59, %v196
    %v277 = vadd.f32 %v60, %v228
    %v278 = vadd.f32 %v61, %v260
    %v279 = vadd.f32 %v62, %v167
    %v280 = vadd.f32 %v63, %v199
    %v281 = vadd.f32 %v64, %v231
    %v282 = vadd.f32 %v65, %v263
    %v283 = vadd.f32 %v66, %v170
    %v284 = vadd.f32 %v67, %v202
    %v285 = vadd.f32 %v68, %v234
    %v286 = vadd.f32 %v69, %v266
    %v287 = vadd.f32 %v70, %v173
    %v288 = vadd.f32 %v71, %v205
    %v289 = vadd.f32 %v72, %v237
    %v290 = vadd.f32 %v73, %v269
    %291 = vst [vmem:[#allocation2] sm:$0xff] %v271
    %292 = vst [vmem:[#allocation2 + $0x8] sm:$0xff] %v272
    %293 = vst [vmem:[#allocation2 + $0x10] sm:$0xff] %v273
    %294 = vst [vmem:[#allocation2 + $0x18] sm:$0xff] %v274
    %295 = vst [vmem:[#allocation2 + $0x20] sm:$0xff] %v275
    %296 = vst [vmem:[#allocation2 + $0x28] sm:$0xff] %v276
    %297 = vst [vmem:[#allocation2 + $0x30] sm:$0xff] %v277
    %298 = vst [vmem:[#allocation2 + $0x38] sm:$0xff] %v278
    %299 = vst [vmem:[#allocation2 + $0x40] sm:$0xff] %v279
    %300 = vst [vmem:[#allocation2 + $0x48] sm:$0xff] %v280
    %301 = vst [vmem:[#allocation2 + $0x50] sm:$0xff] %v281
    %302 = vst [vmem:[#allocation2 + $0x58] sm:$0xff] %v282
    %303 = vst [vmem:[#allocation2 + $0x60] sm:$0xff] %v283
    %304 = vst [vmem:[#allocation2 + $0x68] sm:$0xff] %v284
    %305 = vst [vmem:[#allocation2 + $0x70] sm:$0xff] %v285
    %306 = vst [vmem:[#allocation2 + $0x78] sm:$0xff] %v286
    %307 = vst [vmem:[#allocation2 + $0x80] sm:$0xf] %v287
    %308 = vst [vmem:[#allocation2 + $0x88] sm:$0xf] %v288
    %309 = vst [vmem:[#allocation2 + $0x90] sm:$0xf] %v289
    %310 = vst [vmem:[#allocation2 + $0x98] sm:$0xf] %v290
    // Predicated region
    $region22: #{crnn_forward.14} parent=1 // pred_check
      %p311 = pneg %p30
    $region23: #{crnn_forward.14} parent=1 // pred_check_branch
      %313 = sbr.rel (%p311) target = $region25
    $region24: #{crnn_forward.14} parent=1 // pred_region
      %v314 = vld [vmem:[#allocation2] sm:$0xff]
      %v315 = vld [vmem:[#allocation2 + $0x8] sm:$0xff]
      %v316 = vld [vmem:[#allocation2 + $0x10] sm:$0xff]
      %v317 = vld [vmem:[#allocation2 + $0x18] sm:$0xff]
      %v318 = vld [vmem:[#allocation2 + $0x20] sm:$0xff]
      %v319 = vld [vmem:[#allocation2 + $0x28] sm:$0xff]
      %v320 = vld [vmem:[#allocation2 + $0x30] sm:$0xff]
      %v321 = vld [vmem:[#allocation2 + $0x38] sm:$0xff]
      %v322 = vld [vmem:[#allocation2 + $0x40] sm:$0xff]
      %v323 = vld [vmem:[#allocation2 + $0x48] sm:$0xff]
      %v324 = vld [vmem:[#allocation2 + $0x50] sm:$0xff]
      %v325 = vld [vmem:[#allocation2 + $0x58] sm:$0xff]
      %v326 = vld [vmem:[#allocation2 + $0x60] sm:$0xff]
      %v327 = vld [vmem:[#allocation2 + $0x68] sm:$0xff]
      %v328 = vld [vmem:[#allocation2 + $0x70] sm:$0xff]
      %v329 = vld [vmem:[#allocation2 + $0x78] sm:$0xff]
      %v330 = vld [vmem:[#allocation2 + $0x80] sm:$0xf]
      %v331 = vld [vmem:[#allocation2 + $0x88] sm:$0xf]
      %v332 = vld [vmem:[#allocation2 + $0x90] sm:$0xf]
      %v333 = vld [vmem:[#allocation2 + $0x98] sm:$0xf]
      %v334 = vld [vmem:[%s2] sm:$0xf]
      %v336 = vperm.slane %v334, 0
      %v337 = vperm.slane %v334, 1
      %v338 = vperm.slane %v334, 2
      %v339 = vperm.slane %v334, 3
      %v344 = vadd.f32 %v314, %v336
      %v345 = vadd.f32 %v315, %v337
      %v346 = vadd.f32 %v316, %v338
      %v347 = vadd.f32 %v317, %v339
      %v348 = vadd.f32 %v318, %v336
      %v349 = vadd.f32 %v319, %v337
      %v350 = vadd.f32 %v320, %v338
      %v351 = vadd.f32 %v321, %v339
      %v352 = vadd.f32 %v322, %v336
      %v353 = vadd.f32 %v323, %v337
      %v354 = vadd.f32 %v324, %v338
      %v355 = vadd.f32 %v325, %v339
      %v356 = vadd.f32 %v326, %v336
      %v357 = vadd.f32 %v327, %v337
      %v358 = vadd.f32 %v328, %v338
      %v359 = vadd.f32 %v329, %v339
      %v360 = vadd.f32 %v330, %v336
      %v361 = vadd.f32 %v331, %v337
      %v362 = vadd.f32 %v332, %v338
      %v363 = vadd.f32 %v333, %v339
      %364 = vst [vmem:[%s3] sm:$0xff] %v344
      %365 = vst [vmem:[%s3 + $0x8] sm:$0xff] %v345
      %366 = vst [vmem:[%s3 + $0x10] sm:$0xff] %v346
      %367 = vst [vmem:[%s3 + $0x18] sm:$0xff] %v347
      %368 = vst [vmem:[%s3 + $0x20] sm:$0xff] %v348
      %369 = vst [vmem:[%s3 + $0x28] sm:$0xff] %v349
      %370 = vst [vmem:[%s3 + $0x30] sm:$0xff] %v350
      %371 = vst [vmem:[%s3 + $0x38] sm:$0xff] %v351
      %372 = vst [vmem:[%s3 + $0x40] sm:$0xff] %v352
      %373 = vst [vmem:[%s3 + $0x48] sm:$0xff] %v353
      %374 = vst [vmem:[%s3 + $0x50] sm:$0xff] %v354
      %375 = vst [vmem:[%s3 + $0x58] sm:$0xff] %v355
      %376 = vst [vmem:[%s3 + $0x60] sm:$0xff] %v356
      %377 = vst [vmem:[%s3 + $0x68] sm:$0xff] %v357
      %378 = vst [vmem:[%s3 + $0x70] sm:$0xff] %v358
      %379 = vst [vmem:[%s3 + $0x78] sm:$0xff] %v359
      %380 = vst [vmem:[%s3 + $0x80] sm:$0xf] %v360
      %381 = vst [vmem:[%s3 + $0x88] sm:$0xf] %v361
      %382 = vst [vmem:[%s3 + $0x90] sm:$0xf] %v362
      %383 = vst [vmem:[%s3 + $0x98] sm:$0xf] %v363
    $region25: #{crnn_forward.14} parent=1 // pred_fallthru
      _
    // Predicated region
    $region26: #{crnn_forward.14} parent=1 // pred_check
      _
    $region27: #{crnn_forward.14} parent=1 // pred_check_branch
      %385 = sbr.rel (0) target = $region29
    $region28: #{crnn_forward.14} parent=1 // pred_region
      _
    $region29: #{crnn_forward.14} parent=1 // pred_fallthru
      _
    // Predicated region
    $region30: #{crnn_forward.14} parent=1 // pred_check
      _
    $region31: #{crnn_forward.14} parent=1 // pred_check_branch
      %387 = sbr.rel (0) target = $region33
    $region32: #{crnn_forward.14} parent=1 // pred_region
      _
    $region33: #{crnn_forward.14} parent=1 // pred_fallthru
      _
    %388 = vsyncpa [#allocation4], 1

// kernel: crnn_forward.15
$region0: #{crnn_forward.15}
  #allocation0 [shape = 'u32[]', space=smem, size = 0x4, offset = 0x4, fixed_abs, tag = 'smem constant byte address 0x4 - core index']
  #allocation1 [shape = 'u32[72,128]{1,0:T(1,128)}', space=vmem, size = 0x9000, scoped, tag = 'internal scratch']
  #allocation2 [shape = 'f32[2,128]{1,0:T(2,128)}', space=vmem, size = 0x400, scoped, tag = 'scratch operand']
  #allocation3 [shape = 'f32[2,128]{1,0:T(2,128)}', space=vmem, size = 0x400, scoped, tag = 'scratch operand']
  #allocation4 [shape = 'f32[18,2,128]{2,1,0:T(2,128)}', space=vmem, size = 0x4800, scoped, tag = 'scratch operand']
  #allocation5 [shape = 'f32[1,1]{1,0:T(1,128)S(1)}', space=vmem, size = 0x200, scoped, tag = 'scoped memory for crnn_forward.15']
  %s0 = inlined_call_operand.vmem [shape: f32[18,2,512], index: 0, kind: input, shape index: {}]
  %s1 = inlined_call_operand.vmem [shape: f32[128,512], index: 1, kind: input, shape index: {}]
  %s2 = inlined_call_operand.vmem [shape: f32[128,1], index: 2, kind: input, shape index: {}]
  %s3 = inlined_call_operand.<no memory space> [shape: f32[1,1], index: 3, kind: input, shape index: {}]
  %s4 = inlined_call_operand.vmem [shape: f32[2,1], index: 4, kind: output, shape index: {}]
  %s5 = sld [smem:[#allocation0]]
  $region33: #{crnn_forward.15} parent=0
    _
  %s7 = ssub.s32 1, %s5
  %s8 = scalar_select 0, %s7, %s5
  %v9 = vstv %s3
  %10 = vst [vmem:[#allocation5] sm:$0x1] %v9
  // Predicated region
  $region2: #{crnn_forward.15} parent=0 // pred_check
    _
  $region3: #{crnn_forward.15} parent=0 // pred_check_branch
    %12 = sbr.rel (0) target = $region5
  $region4: #{crnn_forward.15} parent=0 // pred_region
    _
  $region5: #{crnn_forward.15} parent=0 // pred_fallthru
    _
  // Predicated region
  $region6: #{crnn_forward.15} parent=0 // pred_check
    _
  $region7: #{crnn_forward.15} parent=0 // pred_check_branch
    %14 = sbr.rel (0) target = $region9
  $region8: #{crnn_forward.15} parent=0 // pred_region
    _
  $region9: #{crnn_forward.15} parent=0 // pred_fallthru
    _
  // Predicated region
  $region10: #{crnn_forward.15} parent=0 // pred_check
    _
  $region11: #{crnn_forward.15} parent=0 // pred_check_branch
    %16 = sbr.rel (0) target = $region13
  $region12: #{crnn_forward.15} parent=0 // pred_region
    _
  $region13: #{crnn_forward.15} parent=0 // pred_fallthru
    _
  // Predicated region
  $region14: #{crnn_forward.15} parent=0 // pred_check
    _
  $region15: #{crnn_forward.15} parent=0 // pred_check_branch
    %18 = sbr.rel (0) target = $region17
  $region16: #{crnn_forward.15} parent=0 // pred_region
    _
  $region17: #{crnn_forward.15} parent=0 // pred_fallthru
    _
  %19 = vst [vmem:[#allocation2] sm:$0x3] 0.0
  %20 = vst [vmem:[#allocation3] sm:$0x3] 0.0
  %v21 = vld [vmem:[%s1] sm:$0xff]
  %v22 = vld [vmem:[%s1 + $0x8] sm:$0xff]
  %v23 = vld [vmem:[%s1 + $0x10] sm:$0xff]
  %v24 = vld [vmem:[%s1 + $0x18] sm:$0xff]
  %v25 = vld [vmem:[%s1 + $0x20] sm:$0xff]
  %v26 = vld [vmem:[%s1 + $0x28] sm:$0xff]
  %v27 = vld [vmem:[%s1 + $0x30] sm:$0xff]
  %v28 = vld [vmem:[%s1 + $0x38] sm:$0xff]
  %v29 = vld [vmem:[%s1 + $0x40] sm:$0xff]
  %v30 = vld [vmem:[%s1 + $0x48] sm:$0xff]
  %v31 = vld [vmem:[%s1 + $0x50] sm:$0xff]
  %v32 = vld [vmem:[%s1 + $0x58] sm:$0xff]
  %v33 = vld [vmem:[%s1 + $0x60] sm:$0xff]
  %v34 = vld [vmem:[%s1 + $0x68] sm:$0xff]
  %v35 = vld [vmem:[%s1 + $0x70] sm:$0xff]
  %v36 = vld [vmem:[%s1 + $0x78] sm:$0xff]
  %v37 = vld [vmem:[%s1 + $0x80] sm:$0xff]
  %v38 = vld [vmem:[%s1 + $0x88] sm:$0xff]
  %v39 = vld [vmem:[%s1 + $0x90] sm:$0xff]
  %v40 = vld [vmem:[%s1 + $0x98] sm:$0xff]
  %v41 = vld [vmem:[%s1 + $0xa0] sm:$0xff]
  %v42 = vld [vmem:[%s1 + $0xa8] sm:$0xff]
  %v43 = vld [vmem:[%s1 + $0xb0] sm:$0xff]
  %v44 = vld [vmem:[%s1 + $0xb8] sm:$0xff]
  %v45 = vld [vmem:[%s1 + $0xc0] sm:$0xff]
  %v46 = vld [vmem:[%s1 + $0xc8] sm:$0xff]
  %v47 = vld [vmem:[%s1 + $0xd0] sm:$0xff]
  %v48 = vld [vmem:[%s1 + $0xd8] sm:$0xff]
  %v49 = vld [vmem:[%s1 + $0xe0] sm:$0xff]
  %v50 = vld [vmem:[%s1 + $0xe8] sm:$0xff]
  %v51 = vld [vmem:[%s1 + $0xf0] sm:$0xff]
  %v52 = vld [vmem:[%s1 + $0xf8] sm:$0xff]
  %v53 = vld [vmem:[%s1 + $0x100] sm:$0xff]
  %v54 = vld [vmem:[%s1 + $0x108] sm:$0xff]
  %v55 = vld [vmem:[%s1 + $0x110] sm:$0xff]
  %v56 = vld [vmem:[%s1 + $0x118] sm:$0xff]
  %v57 = vld [vmem:[%s1 + $0x120] sm:$0xff]
  %v58 = vld [vmem:[%s1 + $0x128] sm:$0xff]
  %v59 = vld [vmem:[%s1 + $0x130] sm:$0xff]
  %v60 = vld [vmem:[%s1 + $0x138] sm:$0xff]
  %v61 = vld [vmem:[%s1 + $0x140] sm:$0xff]
  %v62 = vld [vmem:[%s1 + $0x148] sm:$0xff]
  %v63 = vld [vmem:[%s1 + $0x150] sm:$0xff]
  %v64 = vld [vmem:[%s1 + $0x158] sm:$0xff]
  %v65 = vld [vmem:[%s1 + $0x160] sm:$0xff]
  %v66 = vld [vmem:[%s1 + $0x168] sm:$0xff]
  %v67 = vld [vmem:[%s1 + $0x170] sm:$0xff]
  %v68 = vld [vmem:[%s1 + $0x178] sm:$0xff]
  %v69 = vld [vmem:[%s1 + $0x180] sm:$0xff]
  %v70 = vld [vmem:[%s1 + $0x188] sm:$0xff]
  %v71 = vld [vmem:[%s1 + $0x190] sm:$0xff]
  %v72 = vld [vmem:[%s1 + $0x198] sm:$0xff]
  %v73 = vld [vmem:[%s1 + $0x1a0] sm:$0xff]
  %v74 = vld [vmem:[%s1 + $0x1a8] sm:$0xff]
  %v75 = vld [vmem:[%s1 + $0x1b0] sm:$0xff]
  %v76 = vld [vmem:[%s1 + $0x1b8] sm:$0xff]
  %v77 = vld [vmem:[%s1 + $0x1c0] sm:$0xff]
  %v78 = vld [vmem:[%s1 + $0x1c8] sm:$0xff]
  %v79 = vld [vmem:[%s1 + $0x1d0] sm:$0xff]
  %v80 = vld [vmem:[%s1 + $0x1d8] sm:$0xff]
  %v81 = vld [vmem:[%s1 + $0x1e0] sm:$0xff]
  %v82 = vld [vmem:[%s1 + $0x1e8] sm:$0xff]
  %v83 = vld [vmem:[%s1 + $0x1f0] sm:$0xff]
  %v84 = vld [vmem:[%s1 + $0x1f8] sm:$0xff]
  %v85 = vlaneseq
  %v86 = vand.u32 %v85, 127
  %v87 = vadd.s32 %v86, 128
  %v88 = vadd.s32 %v86, 256
  %v89 = vadd.s32 %v86, 384
  %vm90 = vcmp.lt.s32.totalorder %v86, 0
  %v91 = vsub.s32 0, %v86
  %v92 = vsel %vm90, %v91, %v86
  %v93 = vshrl.u32 %v92, 7
  %v94 = vand.u32 %v92, 127
  %v95 = vsub.s32 0, %v94
  %v96 = vsel %vm90, %v95, %v94
  %vm97 = vcmp.lt.s32.totalorder %v87, 0
  %v98 = vsub.s32 0, %v87
  %v99 = vsel %vm97, %v98, %v87
  %v100 = vshrl.u32 %v99, 7
  %v101 = vand.u32 %v99, 127
  %v102 = vsub.s32 0, %v101
  %v103 = vsel %vm97, %v102, %v101
  %vm104 = vcmp.lt.s32.totalorder %v88, 0
  %v105 = vsub.s32 0, %v88
  %v106 = vsel %vm104, %v105, %v88
  %v107 = vshrl.u32 %v106, 7
  %v108 = vand.u32 %v106, 127
  %v109 = vsub.s32 0, %v108
  %v110 = vsel %vm104, %v109, %v108
  %vm111 = vcmp.lt.s32.totalorder %v89, 0
  %v112 = vsub.s32 0, %v89
  %v113 = vsel %vm111, %v112, %v89
  %v114 = vshrl.u32 %v113, 7
  %v115 = vand.u32 %v113, 127
  %v116 = vsub.s32 0, %v115
  %v117 = vsel %vm111, %v116, %v115
  %vm118 = vcmp.ne.s32.totalorder %v96, 0
  %vm119 = vcmp.ne.s32.totalorder %v103, 0
  %vm120 = vcmp.ne.s32.totalorder %v110, 0
  %vm121 = vcmp.ne.s32.totalorder %v117, 0
  %vm122 = vcmp.lt.s32.totalorder %v96, 0
  %vm123 = vcmp.lt.s32.totalorder %v103, 0
  %vm124 = vcmp.lt.s32.totalorder %v110, 0
  %vm125 = vcmp.lt.s32.totalorder %v117, 0
  %vm126 = vmand %vm122, %vm118
  %vm127 = vmand %vm123, %vm119
  %vm128 = vmand %vm124, %vm120
  %vm129 = vmand %vm125, %vm121
  %v130 = vadd.s32 %v96, 128
  %v131 = vadd.s32 %v103, 128
  %v132 = vadd.s32 %v110, 128
  %v133 = vadd.s32 %v117, 128
  %v134 = vsel %vm126, %v130, %v96
  %v135 = vsel %vm127, %v131, %v103
  %v136 = vsel %vm128, %v132, %v110
  %v137 = vsel %vm129, %v133, %v117
  %vm138 = vcmp.lt.s32.totalorder %v134, 64
  %vm139 = vcmp.lt.s32.totalorder %v135, 64
  %vm140 = vcmp.lt.s32.totalorder %v136, 64
  %vm141 = vcmp.lt.s32.totalorder %v137, 64
  loop: start=0, step=1, limit=18
  $region18: #{crnn_forward.15} parent=0 // loop_pre_header
    _
  $region19: #{crnn_forward.15} parent=0 // loop_header
    %s143 = sphi 0, %s147
    %p144 = scmp.ge.s32.totalorder %s143, 18
  $region20: #{crnn_forward.15} parent=0 // loop_header_branch
    %146 = sbr.rel (%p144) target = $region24
  $region21: #{crnn_forward.15} parent=0 // loop_body
    %s148 = ssub.s32 17, %s143
    %s149 = smul.u32 %s143, 4
    %s150 = smul.addr %s149, 2
    %s151 = scalar_lea.vmem %s0, %s150
    %v152 = vld [vmem:[%s151] sm:$0xff]
    %s153 = smul.u32 %s148, 4
    %s154 = smul.addr %s153, 2
    %s155 = scalar_lea.vmem %s0, %s154
    %v156 = vld [vmem:[%s155] sm:$0xff]
    %158 = vst [vmem:[#allocation1] ss:$4 sm:$0xff] %v152
    %v159 = vld.sshfl [vmem:[#allocation1] sm:$0xff pattern:$0x73625140]
    %v160 = vld.sshfl [vmem:[#allocation1 + $0x8] sm:$0xff pattern:$0x73625140]
    %v161 = vld.sshfl [vmem:[#allocation1 + $0x10] sm:$0xff pattern:$0x73625140]
    %v162 = vld.sshfl [vmem:[#allocation1 + $0x18] sm:$0xff pattern:$0x73625140]
    %168 = vst [vmem:[#allocation1] ss:$4 sm:$0xff] %v156
    %v169 = vld.sshfl [vmem:[#allocation1] sm:$0xff pattern:$0x73625140]
    %v170 = vld.sshfl [vmem:[#allocation1 + $0x8] sm:$0xff pattern:$0x73625140]
    %v171 = vld.sshfl [vmem:[#allocation1 + $0x10] sm:$0xff pattern:$0x73625140]
    %v172 = vld.sshfl [vmem:[#allocation1 + $0x18] sm:$0xff pattern:$0x73625140]
    %v177 = vsel %vm138, %v159, %v169
    %v178 = vsel %vm139, %v160, %v170
    %v179 = vsel %vm140, %v161, %v171
    %v180 = vsel %vm141, %v162, %v172
    %v181 = vld [vmem:[#allocation2] sm:$0x3]
    %182 = vmatpush.msra.mxu0 %v81
    %183 = vmatpush.msra.mxu0 %v77
    %184 = vmatpush.msra.mxu0 %v73
    %185 = vmatpush.msra.mxu0 %v69
    %186 = vmatpush.msra.mxu0 %v65
    %187 = vmatpush.msra.mxu0 %v61
    %188 = vmatpush.msra.mxu0 %v57
    %189 = vmatpush.msra.mxu0 %v53
    %190 = vmatpush.msra.mxu0 %v49
    %191 = vmatpush.msra.mxu0 %v45
    %192 = vmatpush.msra.mxu0 %v41
    %193 = vmatpush.msra.mxu0 %v37
    %194 = vmatpush.msra.mxu0 %v33
    %195 = vmatpush.msra.mxu0 %v29
    %196 = vmatpush.msra.mxu0 %v25
    %197 = vmatpush.msra.mxu0 %v21
    %198 = vmatmul.f32.gmra.mxu0 %v181
    %v199 = vpop.f32.mrf.mxu0
    %v200 = vadd.f32 0.0, %v199
    %201 = vdwg.mxu0
    %202 = vmatpush.msra.mxu0 %v82
    %203 = vmatpush.msra.mxu0 %v78
    %204 = vmatpush.msra.mxu0 %v74
    %205 = vmatpush.msra.mxu0 %v70
    %206 = vmatpush.msra.mxu0 %v66
    %207 = vmatpush.msra.mxu0 %v62
    %208 = vmatpush.msra.mxu0 %v58
    %209 = vmatpush.msra.mxu0 %v54
    %210 = vmatpush.msra.mxu0 %v50
    %211 = vmatpush.msra.mxu0 %v46
    %212 = vmatpush.msra.mxu0 %v42
    %213 = vmatpush.msra.mxu0 %v38
    %214 = vmatpush.msra.mxu0 %v34
    %215 = vmatpush.msra.mxu0 %v30
    %216 = vmatpush.msra.mxu0 %v26
    %217 = vmatpush.msra.mxu0 %v22
    %218 = vmatmul.f32.gmra.mxu0 %v181
    %v219 = vpop.f32.mrf.mxu0
    %v220 = vadd.f32 0.0, %v219
    %221 = vdwg.mxu0
    %222 = vmatpush.msra.mxu0 %v83
    %223 = vmatpush.msra.mxu0 %v79
    %224 = vmatpush.msra.mxu0 %v75
    %225 = vmatpush.msra.mxu0 %v71
    %226 = vmatpush.msra.mxu0 %v67
    %227 = vmatpush.msra.mxu0 %v63
    %228 = vmatpush.msra.mxu0 %v59
    %229 = vmatpush.msra.mxu0 %v55
    %230 = vmatpush.msra.mxu0 %v51
    %231 = vmatpush.msra.mxu0 %v47
    %232 = vmatpush.msra.mxu0 %v43
    %233 = vmatpush.msra.mxu0 %v39
    %234 = vmatpush.msra.mxu0 %v35
    %235 = vmatpush.msra.mxu0 %v31
    %236 = vmatpush.msra.mxu0 %v27
    %237 = vmatpush.msra.mxu0 %v23
    %238 = vmatmul.f32.gmra.mxu0 %v181
    %v239 = vpop.f32.mrf.mxu0
    %v240 = vadd.f32 0.0, %v239
    %241 = vdwg.mxu0
    %242 = vmatpush.msra.mxu0 %v84
    %243 = vmatpush.msra.mxu0 %v80
    %244 = vmatpush.msra.mxu0 %v76
    %245 = vmatpush.msra.mxu0 %v72
    %246 = vmatpush.msra.mxu0 %v68
    %247 = vmatpush.msra.mxu0 %v64
    %248 = vmatpush.msra.mxu0 %v60
    %249 = vmatpush.msra.mxu0 %v56
    %250 = vmatpush.msra.mxu0 %v52
    %251 = vmatpush.msra.mxu0 %v48
    %252 = vmatpush.msra.mxu0 %v44
    %253 = vmatpush.msra.mxu0 %v40
    %254 = vmatpush.msra.mxu0 %v36
    %255 = vmatpush.msra.mxu0 %v32
    %256 = vmatpush.msra.mxu0 %v28
    %257 = vmatpush.msra.mxu0 %v24
    %258 = vmatmul.f32.gmra.mxu0 %v181
    %v259 = vpop.f32.mrf.mxu0
    %v260 = vadd.f32 0.0, %v259
    %261 = vdwg.mxu0
    %v262 = vadd.f32 %v177, %v200
    %v263 = vadd.f32 %v178, %v220
    %v264 = vadd.f32 %v179, %v240
    %v265 = vadd.f32 %v180, %v260
    %v266 = vsub.f32 0.0, %v262
    %v267 = vmul.f32 %v266, 1.442695
    %v268 = vpow.pop %v267
    %v269 = vadd.f32 %v268, 1.0
    %v270 = vrcp.pop %v269
    %v271 = vmul.f32 %v269, %v270
    %v272 = vsub.f32 1.0, %v271
    %v273 = vmul.f32 %v270, %v272
    %v274 = vadd.f32 %v270, %v273
    %vm275 = vweird.f32 %v269
    %vm276 = vweird.f32 %v270
    %vm277 = vmor %vm275, %vm276
    %v278 = vsel %vm277, %v270, %v274
    %v279 = vand.u32 2147483647, %v269
    %vm280 = vcmp.eq.f32.partialorder %v279, 8.507059e+37
    %v281 = vand.u32 %v269, 2147483648
    %v282 = vor.u32 1.1754944e-38, %v281
    %v283 = vsel %vm280, %v282, %v278
    %v284 = vmul.f32 1.0, %v283
    %v285 = vsub.f32 0.0, %v263
    %v286 = vmul.f32 %v285, 1.442695
    %v287 = vpow.pop %v286
    %v288 = vadd.f32 %v287, 1.0
    %v289 = vrcp.pop %v288
    %v290 = vmul.f32 %v288, %v289
    %v291 = vsub.f32 1.0, %v290
    %v292 = vmul.f32 %v289, %v291
    %v293 = vadd.f32 %v289, %v292
    %vm294 = vweird.f32 %v288
    %vm295 = vweird.f32 %v289
    %vm296 = vmor %vm294, %vm295
    %v297 = vsel %vm296, %v289, %v293
    %v298 = vand.u32 2147483647, %v288
    %vm299 = vcmp.eq.f32.partialorder %v298, 8.507059e+37
    %v300 = vand.u32 %v288, 2147483648
    %v301 = vor.u32 1.1754944e-38, %v300
    %v302 = vsel %vm299, %v301, %v297
    %v303 = vmul.f32 1.0, %v302
    %v304 = vtanh.pop %v264
    %v305 = vsub.f32 0.0, %v265
    %v306 = vmul.f32 %v305, 1.442695
    %v307 = vpow.pop %v306
    %v308 = vadd.f32 %v307, 1.0
    %v309 = vrcp.pop %v308
    %v310 = vmul.f32 %v308, %v309
    %v311 = vsub.f32 1.0, %v310
    %v312 = vmul.f32 %v309, %v311
    %v313 = vadd.f32 %v309, %v312
    %vm314 = vweird.f32 %v308
    %vm315 = vweird.f32 %v309
    %vm316 = vmor %vm314, %vm315
    %v317 = vsel %vm316, %v309, %v313
    %v318 = vand.u32 2147483647, %v308
    %vm319 = vcmp.eq.f32.partialorder %v318, 8.507059e+37
    %v320 = vand.u32 %v308, 2147483648
    %v321 = vor.u32 1.1754944e-38, %v320
    %v322 = vsel %vm319, %v321, %v317
    %v323 = vmul.f32 1.0, %v322
    %v324 = vld [vmem:[#allocation3] sm:$0x3]
    %v325 = vmul.f32 %v303, %v324
    %v326 = vmul.f32 %v284, %v304
    %v327 = vadd.f32 %v325, %v326
    %v328 = vtanh.pop %v327
    %v329 = vmul.f32 %v323, %v328
    %330 = vst [vmem:[#allocation3] sm:$0x3] %v327
    %331 = vst [vmem:[#allocation2] sm:$0x3] %v329
    %s332 = smul.u32 %s143, 2
    %s333 = scalar_lea.vmem [#allocation4], %s332
    %334 = vst [vmem:[%s333] sm:$0x3] %v329
  $region22: #{crnn_forward.15} parent=0 // loop_footer
    %s147 = sadd.s32 1, %s143
  $region23: #{crnn_forward.15} parent=0 // loop_footer_branch
    %142 = sbr.rel target = $region19
  $region24: #{crnn_forward.15} parent=0 // loop_exit
    _
  %s335 = scalar_lea.vmem [#allocation4], 34
  %v336 = vld [vmem:[%s335] sm:$0x3]
  %v337 = vld [vmem:[#allocation4] sm:$0x3]
  %v338 = vsel %vm138, %v336, %v337
  %v339 = vld [vmem:[%s2] sm:$0xff]
  %v340 = vld [vmem:[%s2 + $0x8] sm:$0xff]
  %v341 = vld [vmem:[%s2 + $0x10] sm:$0xff]
  %v342 = vld [vmem:[%s2 + $0x18] sm:$0xff]
  %v343 = vld [vmem:[%s2 + $0x20] sm:$0xff]
  %v344 = vld [vmem:[%s2 + $0x28] sm:$0xff]
  %v345 = vld [vmem:[%s2 + $0x30] sm:$0xff]
  %v346 = vld [vmem:[%s2 + $0x38] sm:$0xff]
  %v347 = vld [vmem:[%s2 + $0x40] sm:$0xff]
  %v348 = vld [vmem:[%s2 + $0x48] sm:$0xff]
  %v349 = vld [vmem:[%s2 + $0x50] sm:$0xff]
  %v350 = vld [vmem:[%s2 + $0x58] sm:$0xff]
  %v351 = vld [vmem:[%s2 + $0x60] sm:$0xff]
  %v352 = vld [vmem:[%s2 + $0x68] sm:$0xff]
  %v353 = vld [vmem:[%s2 + $0x70] sm:$0xff]
  %v354 = vld [vmem:[%s2 + $0x78] sm:$0xff]
  %v355 = vld [vmem:[#allocation5] sm:$0x1]
  %v357 = vperm.slane %v355, 0
  %359 = vmatpush.msra.mxu0 %v354
  %360 = vmatpush.msra.mxu0 %v353
  %361 = vmatpush.msra.mxu0 %v352
  %362 = vmatpush.msra.mxu0 %v351
  %363 = vmatpush.msra.mxu0 %v350
  %364 = vmatpush.msra.mxu0 %v349
  %365 = vmatpush.msra.mxu0 %v348
  %366 = vmatpush.msra.mxu0 %v347
  %367 = vmatpush.msra.mxu0 %v346
  %368 = vmatpush.msra.mxu0 %v345
  %369 = vmatpush.msra.mxu0 %v344
  %370 = vmatpush.msra.mxu0 %v343
  %371 = vmatpush.msra.mxu0 %v342
  %372 = vmatpush.msra.mxu0 %v341
  %373 = vmatpush.msra.mxu0 %v340
  %374 = vmatpush.msra.mxu0 %v339
  %375 = vmatmul.f32.gmra.mxu0 %v338
  %v376 = vpop.f32.mrf.mxu0
  %v377 = vadd.f32 %v357, %v376
  %378 = vdwg.mxu0
  %v379 = vsub.f32 0.0, %v377
  %v380 = vmul.f32 %v379, 1.442695
  %v381 = vpow.pop %v380
  %v382 = vadd.f32 %v381, 1.0
  %v383 = vrcp.pop %v382
  %v384 = vmul.f32 %v382, %v383
  %v385 = vsub.f32 1.0, %v384
  %v386 = vmul.f32 %v383, %v385
  %v387 = vadd.f32 %v383, %v386
  %vm388 = vweird.f32 %v382
  %vm389 = vweird.f32 %v383
  %vm390 = vmor %vm388, %vm389
  %v391 = vsel %vm390, %v383, %v387
  %v392 = vand.u32 2147483647, %v382
  %vm393 = vcmp.eq.f32.partialorder %v392, 8.507059e+37
  %v394 = vand.u32 %v382, 2147483648
  %v395 = vor.u32 1.1754944e-38, %v394
  %v396 = vsel %vm393, %v395, %v391
  %v397 = vmul.f32 1.0, %v396
  %vm398 = vcmask 1024
  %399 = vst.msk [vmem:[%s4] sm:$0x3] %vm398, %v397
  // Predicated region
  $region25: #{crnn_forward.15} parent=0 // pred_check
    _
  $region26: #{crnn_forward.15} parent=0 // pred_check_branch
    %401 = sbr.rel (0) target = $region28
  $region27: #{crnn_forward.15} parent=0 // pred_region
    _
  $region28: #{crnn_forward.15} parent=0 // pred_fallthru
    _
  // Predicated region
  $region29: #{crnn_forward.15} parent=0 // pred_check
    _
  $region30: #{crnn_forward.15} parent=0 // pred_check_branch
    %403 = sbr.rel (0) target = $region32
  $region31: #{crnn_forward.15} parent=0 // pred_region
    _
  $region32: #{crnn_forward.15} parent=0 // pred_fallthru
    _

</llo_original>
